<compile_context>
chip_gen: v7x
topology: tpu7x:2x2x1
jax: 0.10.0
libtpu: 0.0.40
codegen_flags: <defaults>
</compile_context>

<pallas_src>
import functools

import jax
import jax.numpy as jnp
from jax import lax
from jax.experimental import pallas as pl
from jax.experimental.pallas import tpu as pltpu


def _resblock_kernel(x_ref, t1_ref, b1_ref, t2_ref, b2_ref, out_ref,
                     pad_ref, *, neg_slope):
    # x_ref  : (Bt, H, W*C)   f32   lane-dense input block (also the residual)
    # t1_ref : (3, W*C, W*C)  bf16  banded-Toeplitz conv1 weights, one per kh
    # b1_ref : (1, W*C)       f32   conv1 bias tiled along W
    # t2_ref : (3, W*C, W*C)  bf16  conv2 weights
    # b2_ref : (1, W*C)       f32   conv2 bias tiled along W
    # out_ref: (Bt, H, W*C)   f32   lane-dense output block
    # pad_ref: (Bt, H+2, W*C) bf16  row-padded slab shared by both convs
    Bt, H, WC = x_ref.shape

    # Zero the two halo rows.  Re-done EVERY step (not gated on program_id==0)
    # so each TensorCore's private scratch stays valid when the "parallel"
    # batch axis is split across cores.  Two dense 512-lane single-row stores.
    zero_row = jnp.zeros((Bt, 1, WC), pad_ref.dtype)
    pad_ref[:, 0:1, :] = zero_row
    pad_ref[:, H + 1:H + 2, :] = zero_row

    def conv3x3(t_ref, b_ref):
        # y[b, h, w*C + co] = sum_kh  pad[b, h + kh, :] @ T_kh[:, w*C + co]
        # pad row r holds x row r-1 (rows 0 / H+1 are the zero halo); T_kh is
        # banded along W so the kw taps and the W-boundary zero padding happen
        # inside the MXU.  Accumulation stays f32.
        acc = jnp.zeros((Bt * H, WC), jnp.float32)
        for kh in range(3):                      # static -> fully unrolled
            lhs = pad_ref[:, kh:kh + H, :].reshape(Bt * H, WC)   # bf16 operand
            acc = acc + jnp.dot(lhs, t_ref[kh],
                                preferred_element_type=jnp.float32)
        return acc + b_ref[...]                  # (Bt*H, WC) f32

    x = x_ref[...]                                          # f32, for residual

    # ---- conv1 + LeakyReLU(0.2) -------------------------------------------
    # Interior write is a dense 512-lane store (sublane offset 1 only; ~16 KiB
    # of bf16 per conv -> negligible vs the old lane-sparse copy traffic).
    pad_ref[:, 1:H + 1, :] = x.astype(pad_ref.dtype)
    y = conv3x3(t1_ref, b1_ref)
    y = jnp.where(y > 0, y, neg_slope * y)                  # f32 VPU

    # ---- conv2 (reuse the slab; halo rows are still zero) -------------------
    pad_ref[:, 1:H + 1, :] = y.reshape(Bt, H, WC).astype(pad_ref.dtype)
    z = conv3x3(t2_ref, b2_ref)

    # ---- residual add + single lane-dense writeback -------------------------
    out_ref[...] = (z.reshape(Bt, H, WC) + x).astype(out_ref.dtype)


def _toeplitz_weights(w_hwio, width):
    """(3, 3, Cin, Cout) HWIO -> (3, W*Cin, W*Cout) banded-Toeplitz, bf16.

    T[kh, (w+kw-1)*Cin + ci, w*Cout + co] = w[kh, kw, ci, co] for valid w+kw-1;
    out-of-range kw taps (W-boundary zero padding) simply have no band entry.
    """
    _, _, c_in, c_out = w_hwio.shape
    ts = []
    for kh in range(3):
        t = jnp.zeros((width * c_in, width * c_out), jnp.float32)
        for kw in range(3):
            # sel[src, w] = 1  iff  src == w + (kw - 1)
            sel = jnp.eye(width, k=-(kw - 1), dtype=jnp.float32)
            t = t + jnp.kron(sel, w_hwio[kh, kw].astype(jnp.float32))
        ts.append(t)
    return jnp.stack(ts).astype(jnp.bfloat16)


def _pick_batch_block(n, h, wc, *, min_steps=4, vmem_budget_bytes=8 << 20):
    """Largest bt dividing n such that the grid keeps >= min(min_steps, n)
    steps (v7x has 2 TensorCores, and >=2 steps also enables cross-step DMA /
    compute overlap) and the per-step activation blocks stay small."""
    best = 1
    for bt in range(1, n + 1):
        if n % bt:
            continue
        if n // bt < min(min_steps, n):
            continue
        per_step = (2 * bt * h * wc * 4 * 2      # f32 in + out, double-buffered
                    + bt * (h + 2) * wc * 2)     # bf16 padded slab
        if per_step <= vmem_budget_bytes:
            best = bt
    return best


def resblock_pallas(x_nchw, w1, b1, w2, b2, *, neg_slope=0.2):
    """ResBlock forward. x_nchw: (N,C,H,W); w*: (3,3,Cin,Cout) HWIO; b*: (Cout,)."""
    N, C, H, W = x_nchw.shape
    kh, kw, c_in, c_out = w1.shape
    assert (kh, kw) == (3, 3) and c_in == C and c_out == C, \
        "residual add requires in_nf == out_nf"
    WC = W * C

    # Lane-dense activations: NCHW -> NHWC -> (N, H, W*C).  Kept f32 so the
    # residual add and LeakyReLU match the module's f32 numerics exactly.
    x_dense = jnp.transpose(x_nchw, (0, 2, 3, 1)).astype(jnp.float32)
    x_dense = x_dense.reshape(N, H, WC)

    # bf16 MXU operands (f32 accumulation in-kernel) + W-tiled f32 biases.
    t1 = _toeplitz_weights(w1, W)
    t2 = _toeplitz_weights(w2, W)
    b1_wc = jnp.tile(b1.astype(jnp.float32), W).reshape(1, WC)
    b2_wc = jnp.tile(b2.astype(jnp.float32), W).reshape(1, WC)

    bt = _pick_batch_block(N, H, WC)
    grid = (N // bt,)

    kernel = functools.partial(_resblock_kernel, neg_slope=neg_slope)

    flops = 2 * 3 * 2 * N * H * WC * WC          # 2 convs x 3 kh-matmuls each
    bytes_accessed = (2 * x_dense.size * 4       # x in + out (f32)
                      + (t1.size + t2.size) * 2  # bf16 Toeplitz weights
                      + (b1_wc.size + b2_wc.size) * 4)

    # NOTE: for much larger H/W an H-tiled grid axis with a 1-row halo would
    # be added (budget VMEM against v7x's 64 MiB/TC); unnecessary here — the
    # whole working set is a few MiB.  Weights/biases have constant index_maps
    # so they stay resident across steps.
    out_dense = pl.pallas_call(
        kernel,
        out_shape=jax.ShapeDtypeStruct((N, H, WC), jnp.float32),
        grid_spec=pltpu.PrefetchScalarGridSpec(
            num_scalar_prefetch=0,
            grid=grid,
            in_specs=[
                pl.BlockSpec((bt, H, WC), lambda b: (b, 0, 0)),
                pl.BlockSpec((3, WC, WC), lambda b: (0, 0, 0)),
                pl.BlockSpec((1, WC), lambda b: (0, 0)),
                pl.BlockSpec((3, WC, WC), lambda b: (0, 0, 0)),
                pl.BlockSpec((1, WC), lambda b: (0, 0)),
            ],
            out_specs=pl.BlockSpec((bt, H, WC), lambda b: (b, 0, 0)),
            scratch_shapes=[
                pltpu.VMEM((bt, H + 2, WC), jnp.bfloat16),   # row-padded slab
            ],
        ),
        compiler_params=pltpu.CompilerParams(
            dimension_semantics=("parallel",),
            vmem_limit_bytes=32 * 1024 * 1024,   # v5e scoped default is 16 MiB
        ),
        cost_estimate=pl.CostEstimate(flops=flops, transcendentals=0,
                                      bytes_accessed=bytes_accessed),
    )(x_dense, t1, b1_wc, t2, b2_wc)

    out_nhwc = out_dense.reshape(N, H, W, C)     # leading-dim split (free)
    return jnp.transpose(out_nhwc, (0, 3, 1, 2))  # back to NCHW


def _reference(x_nchw, w1, b1, w2, b2, *, operand_dtype=jnp.float32,
               neg_slope=0.2):
    """Pure-JAX reference.  operand_dtype=bf16 reproduces the kernel's
    bf16-operand / f32-accumulation precision for a tight layout check."""
    x = jnp.transpose(x_nchw, (0, 2, 3, 1)).astype(jnp.float32)
    dn = lax.conv_dimension_numbers(x.shape, w1.shape, ("NHWC", "HWIO", "NHWC"))

    def conv(inp, w):
        return lax.conv_general_dilated(
            inp.astype(operand_dtype), w.astype(operand_dtype), (1, 1), "SAME",
            dimension_numbers=dn, preferred_element_type=jnp.float32)

    y = conv(x, w1) + b1
    y = jnp.where(y > 0, y, neg_slope * y)
    z = conv(y, w2) + b2
    out = z + x
    return jnp.transpose(out, (0, 3, 1, 2))


if __name__ == "__main__":
    # in_nf must equal out_nf for the residual add; use the module default 32.
    N, C, H, W = 2, 32, 16, 16

    key = jax.random.PRNGKey(0)
    kx, kw1, kb1, kw2, kb2 = jax.random.split(key, 5)

    x = jax.random.normal(kx, (N, C, H, W), jnp.float32)
    # Deterministic synthetic parameters (HWIO layout for the conv weights).
    w1 = 0.05 * jax.random.normal(kw1, (3, 3, C, C), jnp.float32)
    b1 = 0.01 * jax.random.normal(kb1, (C,), jnp.float32)
    w2 = 0.05 * jax.random.normal(kw2, (3, 3, C, C), jnp.float32)
    b2 = 0.01 * jax.random.normal(kb2, (C,), jnp.float32)

    out = jax.block_until_ready(resblock_pallas(x, w1, b1, w2, b2))
    assert out.shape == (N, C, H, W)

    # Tight check against a same-precision (bf16 operand, f32 accum) reference:
    # catches any Toeplitz band / tap-ordering / layout bug.
    ref_bf16 = jax.block_until_ready(
        _reference(x, w1, b1, w2, b2, operand_dtype=jnp.bfloat16))
    assert jnp.max(jnp.abs(out - ref_bf16)) < 5e-3, "layout mismatch vs bf16 ref"

    # Looser check against the full-f32 reference: bounds the bf16-operand
    # deviation (f32 accumulation keeps it small).
    ref_f32 = jax.block_until_ready(_reference(x, w1, b1, w2, b2))
    assert jnp.max(jnp.abs(out - ref_f32)) < 6e-2, "mismatch vs f32 reference"

    print("KERNEL_OK")
</pallas_src>

<mosaic_0001>
module attributes {stable_mosaic.version = 11 : i64} {
  func.func @_resblock_kernel(%arg0: i32, %arg1: memref<1x16x512xf32, #tpu.memory_space<vmem>>, %arg2: memref<3x512x512xbf16, #tpu.memory_space<vmem>>, %arg3: memref<1x512xf32, #tpu.memory_space<vmem>>, %arg4: memref<3x512x512xbf16, #tpu.memory_space<vmem>>, %arg5: memref<1x512xf32, #tpu.memory_space<vmem>>, %arg6: memref<1x16x512xf32, #tpu.memory_space<vmem>>, %arg7: memref<1x18x512xbf16, #tpu.memory_space<vmem>>) attributes {dimension_semantics = [#tpu.dimension_semantics<parallel>], iteration_bounds = array<i64: 2>, scalar_prefetch = 0 : i64, scratch_operands = 1 : i64, tpu.core_type = #tpu.core_type<tc>, window_params = [{transform_indices = @transform_0, window_bounds = array<i64: 1, 16, 512>}, {pipeline_mode = #tpu.pipeline_mode<synchronous>, transform_indices = @transform_1, window_bounds = array<i64: 3, 512, 512>}, {pipeline_mode = #tpu.pipeline_mode<synchronous>, transform_indices = @transform_2, window_bounds = array<i64: 1, 512>}, {pipeline_mode = #tpu.pipeline_mode<synchronous>, transform_indices = @transform_3, window_bounds = array<i64: 3, 512, 512>}, {pipeline_mode = #tpu.pipeline_mode<synchronous>, transform_indices = @transform_4, window_bounds = array<i64: 1, 512>}, {transform_indices = @transform_5, window_bounds = array<i64: 1, 16, 512>}]} {
    %cst = arith.constant 0.000000e+00 : bf16
    %0 = vector.broadcast %cst : bf16 to vector<1x1x512xbf16>
    %c0 = arith.constant 0 : index
    %c0_0 = arith.constant 0 : index
    %c0_1 = arith.constant 0 : index
    %1 = vector.load %arg7[%c0, %c0_0, %c0_1] : memref<1x18x512xbf16, #tpu.memory_space<vmem>>, vector<1x1x512xbf16>
    tpu.vector_store %arg7[%c0, %c0_0, %c0_1], %0 {strides = array<i32>} : memref<1x18x512xbf16, #tpu.memory_space<vmem>>, vector<1x1x512xbf16>,
    %c0_2 = arith.constant 0 : index
    %c17 = arith.constant 17 : index
    %c0_3 = arith.constant 0 : index
    %2 = vector.load %arg7[%c0_2, %c17, %c0_3] : memref<1x18x512xbf16, #tpu.memory_space<vmem>>, vector<1x1x512xbf16>
    tpu.vector_store %arg7[%c0_2, %c17, %c0_3], %0 {strides = array<i32>} : memref<1x18x512xbf16, #tpu.memory_space<vmem>>, vector<1x1x512xbf16>,
    %c0_4 = arith.constant 0 : index
    %c0_5 = arith.constant 0 : index
    %c0_6 = arith.constant 0 : index
    %3 = vector.load %arg1[%c0_4, %c0_5, %c0_6] : memref<1x16x512xf32, #tpu.memory_space<vmem>>, vector<1x16x512xf32>
    %4 = arith.truncf %3 : vector<1x16x512xf32> to vector<1x16x512xbf16>
    %c0_7 = arith.constant 0 : index
    %c1 = arith.constant 1 : index
    %c0_8 = arith.constant 0 : index
    %5 = vector.load %arg7[%c0_7, %c1, %c0_8] : memref<1x18x512xbf16, #tpu.memory_space<vmem>>, vector<1x16x512xbf16>
    tpu.vector_store %arg7[%c0_7, %c1, %c0_8], %4 {strides = array<i32>} : memref<1x18x512xbf16, #tpu.memory_space<vmem>>, vector<1x16x512xbf16>,
    %cst_9 = arith.constant 0.000000e+00 : f32
    %6 = vector.broadcast %cst_9 : f32 to vector<16x512xf32>
    %c0_10 = arith.constant 0 : index
    %c0_11 = arith.constant 0 : index
    %c0_12 = arith.constant 0 : index
    %7 = vector.load %arg7[%c0_10, %c0_11, %c0_12] : memref<1x18x512xbf16, #tpu.memory_space<vmem>>, vector<1x16x512xbf16>
    %8 = vector.shape_cast %7 : vector<1x16x512xbf16> to vector<16x512xbf16>
    %c0_13 = arith.constant 0 : index
    %c0_14 = arith.constant 0 : index
    %c0_15 = arith.constant 0 : index
    %9 = vector.load %arg2[%c0_13, %c0_14, %c0_15] : memref<3x512x512xbf16, #tpu.memory_space<vmem>>, vector<1x512x512xbf16>
    %10 = vector.shape_cast %9 : vector<1x512x512xbf16> to vector<512x512xbf16>
    %cst_16 = arith.constant dense<0.000000e+00> : vector<16x512xf32>
    %11 = tpu.matmul %8, %10, %cst_16 {dimension_numbers = #tpu.dot_dimension_numbers<[1], [0], [0], [1], [0, 0, 1, 1], [], []>} : vector<16x512xbf16>, vector<512x512xbf16>, vector<16x512xf32> -> vector<16x512xf32>
    %12 = arith.addf %6, %11 : vector<16x512xf32>
    %c0_17 = arith.constant 0 : index
    %c1_18 = arith.constant 1 : index
    %c0_19 = arith.constant 0 : index
    %13 = vector.load %arg7[%c0_17, %c1_18, %c0_19] : memref<1x18x512xbf16, #tpu.memory_space<vmem>>, vector<1x16x512xbf16>
    %14 = vector.shape_cast %13 : vector<1x16x512xbf16> to vector<16x512xbf16>
    %c1_20 = arith.constant 1 : index
    %c0_21 = arith.constant 0 : index
    %c0_22 = arith.constant 0 : index
    %15 = vector.load %arg2[%c1_20, %c0_21, %c0_22] : memref<3x512x512xbf16, #tpu.memory_space<vmem>>, vector<1x512x512xbf16>
    %16 = vector.shape_cast %15 : vector<1x512x512xbf16> to vector<512x512xbf16>
    %cst_23 = arith.constant dense<0.000000e+00> : vector<16x512xf32>
    %17 = tpu.matmul %14, %16, %cst_23 {dimension_numbers = #tpu.dot_dimension_numbers<[1], [0], [0], [1], [0, 0, 1, 1], [], []>} : vector<16x512xbf16>, vector<512x512xbf16>, vector<16x512xf32> -> vector<16x512xf32>
    %18 = arith.addf %12, %17 : vector<16x512xf32>
    %c0_24 = arith.constant 0 : index
    %c2 = arith.constant 2 : index
    %c0_25 = arith.constant 0 : index
    %19 = vector.load %arg7[%c0_24, %c2, %c0_25] : memref<1x18x512xbf16, #tpu.memory_space<vmem>>, vector<1x16x512xbf16>
    %20 = vector.shape_cast %19 : vector<1x16x512xbf16> to vector<16x512xbf16>
    %c2_26 = arith.constant 2 : index
    %c0_27 = arith.constant 0 : index
    %c0_28 = arith.constant 0 : index
    %21 = vector.load %arg2[%c2_26, %c0_27, %c0_28] : memref<3x512x512xbf16, #tpu.memory_space<vmem>>, vector<1x512x512xbf16>
    %22 = vector.shape_cast %21 : vector<1x512x512xbf16> to vector<512x512xbf16>
    %cst_29 = arith.constant dense<0.000000e+00> : vector<16x512xf32>
    %23 = tpu.matmul %20, %22, %cst_29 {dimension_numbers = #tpu.dot_dimension_numbers<[1], [0], [0], [1], [0, 0, 1, 1], [], []>} : vector<16x512xbf16>, vector<512x512xbf16>, vector<16x512xf32> -> vector<16x512xf32>
    %24 = arith.addf %18, %23 : vector<16x512xf32>
    %c0_30 = arith.constant 0 : index
    %c0_31 = arith.constant 0 : index
    %25 = vector.load %arg3[%c0_30, %c0_31] : memref<1x512xf32, #tpu.memory_space<vmem>>, vector<1x512xf32>
    %26 = vector.broadcast %25 : vector<1x512xf32> to vector<16x512xf32>
    %27 = arith.addf %24, %26 : vector<16x512xf32>
    %cst_32 = arith.constant 0.000000e+00 : f32
    %28 = vector.broadcast %cst_32 : f32 to vector<16x512xf32>
    %29 = arith.cmpf ogt, %27, %28 : vector<16x512xf32>
    %cst_33 = arith.constant 2.000000e-01 : f32
    %30 = vector.broadcast %cst_33 : f32 to vector<16x512xf32>
    %31 = arith.mulf %30, %27 : vector<16x512xf32>
    %32 = arith.select %29, %27, %31 : vector<16x512xi1>, vector<16x512xf32>
    %33 = vector.shape_cast %32 : vector<16x512xf32> to vector<1x16x512xf32>
    %34 = arith.truncf %33 : vector<1x16x512xf32> to vector<1x16x512xbf16>
    %c0_34 = arith.constant 0 : index
    %c1_35 = arith.constant 1 : index
    %c0_36 = arith.constant 0 : index
    %35 = vector.load %arg7[%c0_34, %c1_35, %c0_36] : memref<1x18x512xbf16, #tpu.memory_space<vmem>>, vector<1x16x512xbf16>
    tpu.vector_store %arg7[%c0_34, %c1_35, %c0_36], %34 {strides = array<i32>} : memref<1x18x512xbf16, #tpu.memory_space<vmem>>, vector<1x16x512xbf16>,
    %cst_37 = arith.constant 0.000000e+00 : f32
    %36 = vector.broadcast %cst_37 : f32 to vector<16x512xf32>
    %c0_38 = arith.constant 0 : index
    %c0_39 = arith.constant 0 : index
    %c0_40 = arith.constant 0 : index
    %37 = vector.load %arg7[%c0_38, %c0_39, %c0_40] : memref<1x18x512xbf16, #tpu.memory_space<vmem>>, vector<1x16x512xbf16>
    %38 = vector.shape_cast %37 : vector<1x16x512xbf16> to vector<16x512xbf16>
    %c0_41 = arith.constant 0 : index
    %c0_42 = arith.constant 0 : index
    %c0_43 = arith.constant 0 : index
    %39 = vector.load %arg4[%c0_41, %c0_42, %c0_43] : memref<3x512x512xbf16, #tpu.memory_space<vmem>>, vector<1x512x512xbf16>
    %40 = vector.shape_cast %39 : vector<1x512x512xbf16> to vector<512x512xbf16>
    %cst_44 = arith.constant dense<0.000000e+00> : vector<16x512xf32>
    %41 = tpu.matmul %38, %40, %cst_44 {dimension_numbers = #tpu.dot_dimension_numbers<[1], [0], [0], [1], [0, 0, 1, 1], [], []>} : vector<16x512xbf16>, vector<512x512xbf16>, vector<16x512xf32> -> vector<16x512xf32>
    %42 = arith.addf %36, %41 : vector<16x512xf32>
    %c0_45 = arith.constant 0 : index
    %c1_46 = arith.constant 1 : index
    %c0_47 = arith.constant 0 : index
    %43 = vector.load %arg7[%c0_45, %c1_46, %c0_47] : memref<1x18x512xbf16, #tpu.memory_space<vmem>>, vector<1x16x512xbf16>
    %44 = vector.shape_cast %43 : vector<1x16x512xbf16> to vector<16x512xbf16>
    %c1_48 = arith.constant 1 : index
    %c0_49 = arith.constant 0 : index
    %c0_50 = arith.constant 0 : index
    %45 = vector.load %arg4[%c1_48, %c0_49, %c0_50] : memref<3x512x512xbf16, #tpu.memory_space<vmem>>, vector<1x512x512xbf16>
    %46 = vector.shape_cast %45 : vector<1x512x512xbf16> to vector<512x512xbf16>
    %cst_51 = arith.constant dense<0.000000e+00> : vector<16x512xf32>
    %47 = tpu.matmul %44, %46, %cst_51 {dimension_numbers = #tpu.dot_dimension_numbers<[1], [0], [0], [1], [0, 0, 1, 1], [], []>} : vector<16x512xbf16>, vector<512x512xbf16>, vector<16x512xf32> -> vector<16x512xf32>
    %48 = arith.addf %42, %47 : vector<16x512xf32>
    %c0_52 = arith.constant 0 : index
    %c2_53 = arith.constant 2 : index
    %c0_54 = arith.constant 0 : index
    %49 = vector.load %arg7[%c0_52, %c2_53, %c0_54] : memref<1x18x512xbf16, #tpu.memory_space<vmem>>, vector<1x16x512xbf16>
    %50 = vector.shape_cast %49 : vector<1x16x512xbf16> to vector<16x512xbf16>
    %c2_55 = arith.constant 2 : index
    %c0_56 = arith.constant 0 : index
    %c0_57 = arith.constant 0 : index
    %51 = vector.load %arg4[%c2_55, %c0_56, %c0_57] : memref<3x512x512xbf16, #tpu.memory_space<vmem>>, vector<1x512x512xbf16>
    %52 = vector.shape_cast %51 : vector<1x512x512xbf16> to vector<512x512xbf16>
    %cst_58 = arith.constant dense<0.000000e+00> : vector<16x512xf32>
    %53 = tpu.matmul %50, %52, %cst_58 {dimension_numbers = #tpu.dot_dimension_numbers<[1], [0], [0], [1], [0, 0, 1, 1], [], []>} : vector<16x512xbf16>, vector<512x512xbf16>, vector<16x512xf32> -> vector<16x512xf32>
    %54 = arith.addf %48, %53 : vector<16x512xf32>
    %c0_59 = arith.constant 0 : index
    %c0_60 = arith.constant 0 : index
    %55 = vector.load %arg5[%c0_59, %c0_60] : memref<1x512xf32, #tpu.memory_space<vmem>>, vector<1x512xf32>
    %56 = vector.broadcast %55 : vector<1x512xf32> to vector<16x512xf32>
    %57 = arith.addf %54, %56 : vector<16x512xf32>
    %58 = vector.shape_cast %57 : vector<16x512xf32> to vector<1x16x512xf32>
    %59 = arith.addf %58, %3 : vector<1x16x512xf32>
    %c0_61 = arith.constant 0 : index
    %c0_62 = arith.constant 0 : index
    %c0_63 = arith.constant 0 : index
    %60 = vector.load %arg6[%c0_61, %c0_62, %c0_63] : memref<1x16x512xf32, #tpu.memory_space<vmem>>, vector<1x16x512xf32>
    tpu.vector_store %arg6[%c0_61, %c0_62, %c0_63], %59 {strides = array<i32>} : memref<1x16x512xf32, #tpu.memory_space<vmem>>, vector<1x16x512xf32>,
    return
  }
  func.func @transform_0(%arg0: i32) -> (i32, i32, i32) {
    %c0_i32 = arith.constant 0 : i32
    %c0_i32_0 = arith.constant 0 : i32
    %c0_i32_1 = arith.constant 0 : i32
    return %arg0, %c0_i32, %c0_i32_0 : i32, i32, i32
  }
  func.func @transform_1(%arg0: i32) -> (i32, i32, i32) {
    %c0_i32 = arith.constant 0 : i32
    %c0_i32_0 = arith.constant 0 : i32
    %c0_i32_1 = arith.constant 0 : i32
    %c0_i32_2 = arith.constant 0 : i32
    return %c0_i32, %c0_i32_0, %c0_i32_1 : i32, i32, i32
  }
  func.func @transform_2(%arg0: i32) -> (i32, i32) {
    %c0_i32 = arith.constant 0 : i32
    %c0_i32_0 = arith.constant 0 : i32
    %c0_i32_1 = arith.constant 0 : i32
    return %c0_i32, %c0_i32_0 : i32, i32
  }
  func.func @transform_3(%arg0: i32) -> (i32, i32, i32) {
    %c0_i32 = arith.constant 0 : i32
    %c0_i32_0 = arith.constant 0 : i32
    %c0_i32_1 = arith.constant 0 : i32
    %c0_i32_2 = arith.constant 0 : i32
    return %c0_i32, %c0_i32_0, %c0_i32_1 : i32, i32, i32
  }
  func.func @transform_4(%arg0: i32) -> (i32, i32) {
    %c0_i32 = arith.constant 0 : i32
    %c0_i32_0 = arith.constant 0 : i32
    %c0_i32_1 = arith.constant 0 : i32
    return %c0_i32, %c0_i32_0 : i32, i32
  }
  func.func @transform_5(%arg0: i32) -> (i32, i32, i32) {
    %c0_i32 = arith.constant 0 : i32
    %c0_i32_0 = arith.constant 0 : i32
    %c0_i32_1 = arith.constant 0 : i32
    return %arg0, %c0_i32, %c0_i32_0 : i32, i32, i32
  }
}

</mosaic_0001>

<llo_original>
// kernel: tpu_custom_call.1
$region0: #{tpu_custom_call.1}
  #allocation0 [shape = 'u32[]', space=smem, size = 0x4, offset = 0x4, fixed_abs, tag = 'smem constant byte address 0x4 - core index']
  #allocation1 [shape = 'u32[144,128]{1,0:T(1,128)}', space=vmem, size = 0x12000, scoped, tag = 'internal scratch']
  #allocation2 [shape = 'bf16[1,18,512]{2,1,0:T(8,128)(2,1)}', space=vmem, size = 0x6000, scoped, tag = 'scratch operand']
  %s0 = inlined_call_operand.hbm [shape: f32[2,16,512], index: 0, kind: input, shape index: {}]
  %s1 = inlined_call_operand.hbm [shape: bf16[3,512,512], index: 1, kind: input, shape index: {}]
  %s2 = inlined_call_operand.hbm [shape: f32[1,512], index: 2, kind: input, shape index: {}]
  %s3 = inlined_call_operand.hbm [shape: bf16[3,512,512], index: 3, kind: input, shape index: {}]
  %s4 = inlined_call_operand.hbm [shape: f32[1,512], index: 4, kind: input, shape index: {}]
  %s5 = inlined_call_operand.hbm [shape: f32[2,16,512], index: 5, kind: output, shape index: {}]
  %s6 = sld [smem:[#allocation0]]
  $region73: #{tpu_custom_call.1} parent=0
    _
  %s8 = ssub.s32 1, %s6
  %s9 = scalar_select 0, %s8, %s6
  $region1: #{tpu_custom_call.1} parent=0
    #allocation3 [shape = 'u8[65536]{0}', space=vmem, size = 0x10000, scoped, tag = 'input window, operand 0']
    #allocation4 [shape = 's32[2]{0}', space=sflag, size = 0x8, scoped, tag = 'scoped memory for tpu_custom_call.1']
    #allocation5 [shape = 's32[2]{0}', space=sflag, size = 0x8, scoped, tag = 'scoped memory for tpu_custom_call.1']
    #allocation6 [shape = 'u8[1572864]{0}', space=vmem, size = 0x180000, scoped, tag = 'input window, operand 1, single buffered']
    #allocation7 [shape = 's32[1]{0}', space=sflag, size = 0x4, scoped, tag = 'scoped memory for tpu_custom_call.1']
    #allocation8 [shape = 'u8[2048]{0}', space=vmem, size = 0x800, scoped, tag = 'input window, operand 2, single buffered']
    #allocation9 [shape = 'u8[1572864]{0}', space=vmem, size = 0x180000, scoped, tag = 'input window, operand 3, single buffered']
    #allocation10 [shape = 's32[1]{0}', space=sflag, size = 0x4, scoped, tag = 'scoped memory for tpu_custom_call.1']
    #allocation11 [shape = 'u8[2048]{0}', space=vmem, size = 0x800, scoped, tag = 'input window, operand 4, single buffered']
    #allocation12 [shape = 'u8[65536]{0}', space=vmem, size = 0x10000, scoped, tag = 'output window, operand 0']
    %10 = vsyncpa [#allocation4], 0
    %s11 = scalar_lea.sflag [#allocation4], 1
    %12 = vsyncpa %s11, 0
    %13 = vsyncpa [#allocation7], 0
    %14 = vsyncpa [#allocation10], 0
    %15 = vsyncpa [#allocation5], 0
    %s16 = scalar_lea.sflag [#allocation5], 1
    %17 = vsyncpa %s16, 0
    loop: start=0, step=1, limit=4
    $region2: #{tpu_custom_call.1} parent=1 // loop_pre_header
      _
    $region3: #{tpu_custom_call.1} parent=1 // loop_header
      %s19 = sphi 0, %s23
      %p20 = scmp.ge.s32.totalorder %s19, 4
      %s29 = sphi 0, %s31
      %s32 = sphi 0, %s29
      %s33 = sphi 0, %s32
      %s49 = sphi 0, %s33
      %s53 = sphi 0, %s53
      %s55 = sphi 0, %s53
      %s56 = sphi 0, %s55
      %s70 = sphi 0, %s56
      %s74 = sphi 0, %s74
      %s76 = sphi 0, %s74
      %s77 = sphi 0, %s76
      %s91 = sphi 0, %s77
      %s95 = sphi 0, %s95
      %s97 = sphi 0, %s95
      %s98 = sphi 0, %s97
      %s112 = sphi 0, %s98
      %s116 = sphi 0, %s116
      %s118 = sphi 0, %s116
      %s119 = sphi 0, %s118
      %s133 = sphi 0, %s119
      %s139 = sphi 0, %s141
      %s142 = sphi 0, %s139
      %s143 = sphi 0, %s142
      %s159 = sphi 0, %s143
    $region4: #{tpu_custom_call.1} parent=1 // loop_header_branch
      %22 = sbr.rel (%p20) target = $region8
    $region5: #{tpu_custom_call.1} parent=1 // loop_body
      %s24 = ssub.s32 %s19, 1
      %s25 = ssub.s32 %s19, 2
      %s26 = sadd.s32 %s19, 1
      %s27 = ssub.s32 %s19, %s26
      %p28 = scmp.eq.s32.totalorder %s27, 0
      %s30 = sadd.s32 %s29, 1
      %s31 = scalar_select %p28, %s29, %s30
      %p34 = pneg %p28
      %p35 = scmp.eq.s32.totalorder %s19, 1
      %p36 = por %p34, %p35
      %p37 = scmp.ne.s32.totalorder %s29, %s32
      %p38 = scmp.eq.s32.totalorder %s19, 0
      %p39 = por %p37, %p38
      %p40 = scmp.ne.s32.totalorder %s29, %s32
      %p41 = scmp.eq.s32.totalorder %s24, 1
      %p42 = por %p40, %p41
      %p43 = scmp.ne.s32.totalorder %s32, %s33
      %p44 = scmp.eq.s32.totalorder %s24, 0
      %p45 = por %p43, %p44
      %p46 = scmp.ne.s32.totalorder %s32, %s33
      %p47 = scmp.eq.s32.totalorder %s25, 1
      %p48 = por %p46, %p47
      %p50 = scmp.ne.s32.totalorder %s33, %s49
      %p51 = scmp.eq.s32.totalorder %s25, 0
      %p52 = por %p50, %p51
      %s54 = sadd.s32 %s53, 1
      %p57 = scmp.eq.s32.totalorder %s19, 1
      %p58 = scmp.ne.s32.totalorder %s53, %s55
      %p59 = scmp.eq.s32.totalorder %s19, 0
      %p60 = por %p58, %p59
      %p61 = scmp.ne.s32.totalorder %s53, %s55
      %p62 = scmp.eq.s32.totalorder %s24, 1
      %p63 = por %p61, %p62
      %p64 = scmp.ne.s32.totalorder %s55, %s56
      %p65 = scmp.eq.s32.totalorder %s24, 0
      %p66 = por %p64, %p65
      %p67 = scmp.ne.s32.totalorder %s55, %s56
      %p68 = scmp.eq.s32.totalorder %s25, 1
      %p69 = por %p67, %p68
      %p71 = scmp.ne.s32.totalorder %s56, %s70
      %p72 = scmp.eq.s32.totalorder %s25, 0
      %p73 = por %p71, %p72
      %s75 = sadd.s32 %s74, 1
      %p78 = scmp.eq.s32.totalorder %s19, 1
      %p79 = scmp.ne.s32.totalorder %s74, %s76
      %p80 = scmp.eq.s32.totalorder %s19, 0
      %p81 = por %p79, %p80
      %p82 = scmp.ne.s32.totalorder %s74, %s76
      %p83 = scmp.eq.s32.totalorder %s24, 1
      %p84 = por %p82, %p83
      %p85 = scmp.ne.s32.totalorder %s76, %s77
      %p86 = scmp.eq.s32.totalorder %s24, 0
      %p87 = por %p85, %p86
      %p88 = scmp.ne.s32.totalorder %s76, %s77
      %p89 = scmp.eq.s32.totalorder %s25, 1
      %p90 = por %p88, %p89
      %p92 = scmp.ne.s32.totalorder %s77, %s91
      %p93 = scmp.eq.s32.totalorder %s25, 0
      %p94 = por %p92, %p93
      %s96 = sadd.s32 %s95, 1
      %p99 = scmp.eq.s32.totalorder %s19, 1
      %p100 = scmp.ne.s32.totalorder %s95, %s97
      %p101 = scmp.eq.s32.totalorder %s19, 0
      %p102 = por %p100, %p101
      %p103 = scmp.ne.s32.totalorder %s95, %s97
      %p104 = scmp.eq.s32.totalorder %s24, 1
      %p105 = por %p103, %p104
      %p106 = scmp.ne.s32.totalorder %s97, %s98
      %p107 = scmp.eq.s32.totalorder %s24, 0
      %p108 = por %p106, %p107
      %p109 = scmp.ne.s32.totalorder %s97, %s98
      %p110 = scmp.eq.s32.totalorder %s25, 1
      %p111 = por %p109, %p110
      %p113 = scmp.ne.s32.totalorder %s98, %s112
      %p114 = scmp.eq.s32.totalorder %s25, 0
      %p115 = por %p113, %p114
      %s117 = sadd.s32 %s116, 1
      %p120 = scmp.eq.s32.totalorder %s19, 1
      %p121 = scmp.ne.s32.totalorder %s116, %s118
      %p122 = scmp.eq.s32.totalorder %s19, 0
      %p123 = por %p121, %p122
      %p124 = scmp.ne.s32.totalorder %s116, %s118
      %p125 = scmp.eq.s32.totalorder %s24, 1
      %p126 = por %p124, %p125
      %p127 = scmp.ne.s32.totalorder %s118, %s119
      %p128 = scmp.eq.s32.totalorder %s24, 0
      %p129 = por %p127, %p128
      %p130 = scmp.ne.s32.totalorder %s118, %s119
      %p131 = scmp.eq.s32.totalorder %s25, 1
      %p132 = por %p130, %p131
      %p134 = scmp.ne.s32.totalorder %s119, %s133
      %p135 = scmp.eq.s32.totalorder %s25, 0
      %p136 = por %p134, %p135
      %s137 = ssub.s32 %s19, %s26
      %p138 = scmp.eq.s32.totalorder %s137, 0
      %s140 = sadd.s32 %s139, 1
      %s141 = scalar_select %p138, %s139, %s140
      %p144 = pneg %p138
      %p145 = scmp.eq.s32.totalorder %s19, 1
      %p146 = por %p144, %p145
      %p147 = scmp.ne.s32.totalorder %s139, %s142
      %p148 = scmp.eq.s32.totalorder %s19, 0
      %p149 = por %p147, %p148
      %p150 = scmp.ne.s32.totalorder %s139, %s142
      %p151 = scmp.eq.s32.totalorder %s24, 1
      %p152 = por %p150, %p151
      %p153 = scmp.ne.s32.totalorder %s142, %s143
      %p154 = scmp.eq.s32.totalorder %s24, 0
      %p155 = por %p153, %p154
      %p156 = scmp.ne.s32.totalorder %s142, %s143
      %p157 = scmp.eq.s32.totalorder %s25, 1
      %p158 = por %p156, %p157
      %p160 = scmp.ne.s32.totalorder %s143, %s159
      %p161 = scmp.eq.s32.totalorder %s25, 0
      %p162 = por %p160, %p161
      %p163 = scmp.le.s32.totalorder 1, %s19
      %p164 = scmp.lt.s32.totalorder %s19, 3
      %p165 = pnand %p163, %p164
      %p166 = pneg %p165
      // Predicated region
      $region9: #{tpu_custom_call.1} parent=5 // pred_check
        _
      $region10: #{tpu_custom_call.1} parent=5 // pred_check_branch
        %168 = sbr.rel (%p165) target = $region12
      $region11: #{tpu_custom_call.1} parent=5 // pred_region
        %s169 = ssub.s32 %s19, 1
        // Predicated region
        $region13: #{tpu_custom_call.1} parent=11 // pred_check
          %p170 = pneg %p66
        $region14: #{tpu_custom_call.1} parent=11 // pred_check_branch
          %172 = sbr.rel (%p170) target = $region16
        $region15: #{tpu_custom_call.1} parent=11 // pred_region
          %s174 = ssub.s32 49152, 49152
          %175 = vsyncadd [#allocation7], %s174
          %s176 = sshll.u32 [#allocation6], 4
          %s177 = int_to_ptr.vmem [resolvable:$true] %s176
          %182 = dma.hbm_to_vmem [thread:$0]  %s1, 49152, %s177, [#allocation7], 256, 256, 16
        $region16: #{tpu_custom_call.1} parent=11 // pred_fallthru
          _
        // Predicated region
        $region17: #{tpu_custom_call.1} parent=11 // pred_check
          %p183 = pneg %p87
        $region18: #{tpu_custom_call.1} parent=11 // pred_check_branch
          %185 = sbr.rel (%p183) target = $region20
        $region19: #{tpu_custom_call.1} parent=11 // pred_region
          %s187 = ssub.s32 64, 64
          %188 = vsyncadd [#allocation7], %s187
          %s190 = sshll.u32 [#allocation8], 4
          %s191 = int_to_ptr.vmem [resolvable:$true] %s190
          %193 = dma.hbm_to_vmem [thread:$0]  %s2, 64, %s191, [#allocation7]
        $region20: #{tpu_custom_call.1} parent=11 // pred_fallthru
          _
        // Predicated region
        $region21: #{tpu_custom_call.1} parent=11 // pred_check
          %p194 = pneg %p108
        $region22: #{tpu_custom_call.1} parent=11 // pred_check_branch
          %196 = sbr.rel (%p194) target = $region24
        $region23: #{tpu_custom_call.1} parent=11 // pred_region
          %s198 = ssub.s32 49152, 49152
          %199 = vsyncadd [#allocation10], %s198
          %s200 = sshll.u32 [#allocation9], 4
          %s201 = int_to_ptr.vmem [resolvable:$true] %s200
          %206 = dma.hbm_to_vmem [thread:$0]  %s3, 49152, %s201, [#allocation10], 256, 256, 16
        $region24: #{tpu_custom_call.1} parent=11 // pred_fallthru
          _
        // Predicated region
        $region25: #{tpu_custom_call.1} parent=11 // pred_check
          %p207 = pneg %p129
        $region26: #{tpu_custom_call.1} parent=11 // pred_check_branch
          %209 = sbr.rel (%p207) target = $region28
        $region27: #{tpu_custom_call.1} parent=11 // pred_region
          %s211 = ssub.s32 64, 64
          %212 = vsyncadd [#allocation10], %s211
          %s214 = sshll.u32 [#allocation11], 4
          %s215 = int_to_ptr.vmem [resolvable:$true] %s214
          %217 = dma.hbm_to_vmem [thread:$0]  %s4, 64, %s215, [#allocation10]
        $region28: #{tpu_custom_call.1} parent=11 // pred_fallthru
          _
      $region12: #{tpu_custom_call.1} parent=5 // pred_fallthru
        _
      %p218 = scmp.lt.s32.totalorder %s19, 2
      // Predicated region
      $region29: #{tpu_custom_call.1} parent=5 // pred_check
        %p219 = pneg %p218
      $region30: #{tpu_custom_call.1} parent=5 // pred_check_branch
        %221 = sbr.rel (%p219) target = $region32
      $region31: #{tpu_custom_call.1} parent=5 // pred_region
        // Predicated region
        $region33: #{tpu_custom_call.1} parent=31 // pred_check
          %p222 = pneg %p39
        $region34: #{tpu_custom_call.1} parent=31 // pred_check_branch
          %224 = sbr.rel (%p222) target = $region36
        $region35: #{tpu_custom_call.1} parent=31 // pred_region
          %s225 = sand.u32 %s29, 1
          %s226 = scalar_lea.sflag [#allocation4], %s225
          %s227 = sand.u32 %s29, 1
          %s228 = smul.addr %s227, 64
          %s229 = scalar_lea.vmem [#allocation3], %s228
          %s231 = ssub.s32 1024, 1024
          %232 = vsyncadd %s226, %s231
          %s233 = smul.addr %s19, 8
          %s234 = smul.addr %s233, 128
          %s235 = scalar_lea.hbm %s0, %s234
          %s236 = sshll.u32 %s229, 4
          %s237 = int_to_ptr.vmem [resolvable:$true] %s236
          %242 = dma.hbm_to_vmem [thread:$0]  %s235, 1024, %s237, %s226, 512, 512, 32
        $region36: #{tpu_custom_call.1} parent=31 // pred_fallthru
          _
      $region32: #{tpu_custom_call.1} parent=5 // pred_fallthru
        _
      %p243 = scmp.le.s32.totalorder 1, %s19
      %p244 = scmp.lt.s32.totalorder %s19, 3
      %p245 = pnand %p243, %p244
      %p246 = pneg %p245
      // Predicated region
      $region37: #{tpu_custom_call.1} parent=5 // pred_check
        _
      $region38: #{tpu_custom_call.1} parent=5 // pred_check_branch
        %248 = sbr.rel (%p245) target = $region40
      $region39: #{tpu_custom_call.1} parent=5 // pred_region
        %s249 = ssub.s32 %s19, 1
        %s250 = sand.u32 %s32, 1
        %s251 = scalar_lea.sflag [#allocation4], %s250
        %s252 = sand.u32 %s32, 1
        %s253 = smul.addr %s252, 64
        %s254 = scalar_lea.vmem [#allocation3], %s253
        // Predicated region
        $region41: #{tpu_custom_call.1} parent=39 // pred_check
          %p255 = pneg %p45
        $region42: #{tpu_custom_call.1} parent=39 // pred_check_branch
          %257 = sbr.rel (%p255) target = $region44
        $region43: #{tpu_custom_call.1} parent=39 // pred_region
          %258 = dma.done %s251, 1024
        $region44: #{tpu_custom_call.1} parent=39 // pred_fallthru
          _
        // Predicated region
        $region45: #{tpu_custom_call.1} parent=39 // pred_check
          %p259 = pneg %p66
        $region46: #{tpu_custom_call.1} parent=39 // pred_check_branch
          %261 = sbr.rel (%p259) target = $region48
        $region47: #{tpu_custom_call.1} parent=39 // pred_region
          %262 = dma.done [#allocation7], 49152
        $region48: #{tpu_custom_call.1} parent=39 // pred_fallthru
          _
        // Predicated region
        $region49: #{tpu_custom_call.1} parent=39 // pred_check
          %p263 = pneg %p87
        $region50: #{tpu_custom_call.1} parent=39 // pred_check_branch
          %265 = sbr.rel (%p263) target = $region52
        $region51: #{tpu_custom_call.1} parent=39 // pred_region
          %266 = dma.done [#allocation7], 64
        $region52: #{tpu_custom_call.1} parent=39 // pred_fallthru
          _
        // Predicated region
        $region53: #{tpu_custom_call.1} parent=39 // pred_check
          %p267 = pneg %p108
        $region54: #{tpu_custom_call.1} parent=39 // pred_check_branch
          %269 = sbr.rel (%p267) target = $region56
        $region55: #{tpu_custom_call.1} parent=39 // pred_region
          %270 = dma.done [#allocation10], 49152
        $region56: #{tpu_custom_call.1} parent=39 // pred_fallthru
          _
        // Predicated region
        $region57: #{tpu_custom_call.1} parent=39 // pred_check
          %p271 = pneg %p129
        $region58: #{tpu_custom_call.1} parent=39 // pred_check_branch
          %273 = sbr.rel (%p271) target = $region60
        $region59: #{tpu_custom_call.1} parent=39 // pred_region
          %274 = dma.done [#allocation10], 64
        $region60: #{tpu_custom_call.1} parent=39 // pred_fallthru
          _
        %s275 = sand.u32 %s32, 1
        %s276 = scalar_lea.sflag [#allocation4], %s275
        %s277 = sand.u32 %s32, 1
        %s278 = smul.addr %s277, 64
        %s279 = scalar_lea.vmem [#allocation3], %s278
        %p280 = pneg %p45
        %p281 = pneg %p42
        %p282 = pneg %p66
        %p283 = pneg %p63
        %p284 = pneg %p87
        %p285 = pneg %p84
        %p286 = pneg %p108
        %p287 = pneg %p105
        %p288 = pneg %p129
        %p289 = pneg %p126
        %p290 = pneg %p155
        %p291 = pneg %p152
        %s292 = sand.u32 %s142, 1
        %s293 = scalar_lea.sflag [#allocation5], %s292
        %s294 = sand.u32 %s142, 1
        %s295 = smul.addr %s294, 64
        %s296 = scalar_lea.vmem [#allocation12], %s295
        %vm298 = vcmask 1040384
        %vm299 = vsmask.f32 256
        %vm300 = vmand %vm298, %vm299
        %vm301 = vcmask 1044484
        %vm302 = vsmask.f32 4352
        %vm303 = vmand %vm301, %vm302
        %vm304 = vmor %vm303, %vm300
        %v305 = vld [vmem:[#allocation2] sm:$0x11]
        %v306 = vsel %vm304, 0, %v305
        %307 = vst [vmem:[#allocation2] sm:$0x11] %v306
        %v308 = vld [vmem:[#allocation2 + $0x8] sm:$0x11]
        %v309 = vsel %vm304, 0, %v308
        %310 = vst [vmem:[#allocation2 + $0x8] sm:$0x11] %v309
        %vm311 = vsmask.f32 7938
        %vm312 = vmand %vm298, %vm311
        %vm313 = vsmask.f32 7954
        %vm314 = vmand %vm301, %vm313
        %vm315 = vmor %vm314, %vm312
        %v316 = vld [vmem:[#allocation2 + $0x20] sm:$0x11]
        %v317 = vsel %vm315, 0, %v316
        %318 = vst [vmem:[#allocation2 + $0x20] sm:$0x11] %v317
        %v319 = vld [vmem:[#allocation2 + $0x28] sm:$0x11]
        %v320 = vsel %vm315, 0, %v319
        %321 = vst [vmem:[#allocation2 + $0x28] sm:$0x11] %v320
        %v322 = vld [vmem:[%s254] sm:$0xff]
        %v323 = vld [vmem:[%s254 + $0x8] sm:$0xff]
        %v324 = vld [vmem:[%s254 + $0x10] sm:$0xff]
        %v325 = vld [vmem:[%s254 + $0x18] sm:$0xff]
        %v326 = vld [vmem:[%s254 + $0x20] sm:$0xff]
        %v327 = vld [vmem:[%s254 + $0x28] sm:$0xff]
        %v328 = vld [vmem:[%s254 + $0x30] sm:$0xff]
        %v329 = vld [vmem:[%s254 + $0x38] sm:$0xff]
        %v330 = vpack.c.bf16 %v326, %v322
        %v331 = vpack.c.bf16 %v327, %v323
        %v332 = vpack.c.bf16 %v328, %v324
        %v333 = vpack.c.bf16 %v329, %v325
        %v338 = vunpack.c.l.b16 %v330
        %v339 = vunpack.c.l.b16 %v331
        %v340 = vunpack.c.l.b16 %v332
        %v341 = vunpack.c.l.b16 %v333
        %v342 = vunpack.c.h.b16 %v330
        %v343 = vunpack.c.h.b16 %v331
        %v344 = vunpack.c.h.b16 %v332
        %v345 = vunpack.c.h.b16 %v333
        %v346 = vpack.c.b16 %v339, %v338
        %v347 = vpack.c.b16 %v341, %v340
        %v348 = vpack.c.b16 %v343, %v342
        %v349 = vpack.c.b16 %v345, %v344
        %vm350 = vsmask.f32 4368
        %vm351 = vmor %vm299, %vm350
        %v353 = vshrl.u32 %v346, 16
        %v355 = vrot.slane %v353, 7
        %v356 = vshll.u32 %v346, 16
        %v358 = vor.u32 %v355, %v356
        %v360 = vshrl.u32 %v347, 16
        %v362 = vrot.slane %v360, 7
        %v363 = vshll.u32 %v347, 16
        %v365 = vor.u32 %v362, %v363
        %v366 = vrot.slane %v355, 4
        %v368 = vshrl.u32 %v348, 16
        %v370 = vrot.slane %v368, 7
        %v371 = vshll.u32 %v348, 16
        %v373 = vor.u32 %v370, %v371
        %v374 = vsel %vm351, %v366, %v373
        %v375 = vrot.slane %v362, 4
        %v377 = vshrl.u32 %v349, 16
        %v379 = vrot.slane %v377, 7
        %v380 = vshll.u32 %v349, 16
        %v382 = vor.u32 %v379, %v380
        %v383 = vsel %vm351, %v375, %v382
        %v384 = vrot.slane %v370, 4
        %v385 = vrot.slane %v379, 4
        %vm392 = vcmask 1043456
        %vm393 = vmand %vm392, %vm311
        %vm394 = vcmask 1047556
        %vm395 = vmand %vm394, %vm313
        %vm396 = vmor %vm395, %vm393
        %v397 = vld [vmem:[#allocation2] sm:$0xff]
        %v398 = vsel %vm396, %v358, %v397
        %399 = vst [vmem:[#allocation2] sm:$0xff] %v398
        %v400 = vld [vmem:[#allocation2 + $0x8] sm:$0xff]
        %v401 = vsel %vm396, %v365, %v400
        %402 = vst [vmem:[#allocation2 + $0x8] sm:$0xff] %v401
        %403 = vst [vmem:[#allocation2 + $0x10] sm:$0xff] %v374
        %404 = vst [vmem:[#allocation2 + $0x18] sm:$0xff] %v383
        %v405 = vld [vmem:[#allocation2 + $0x20] sm:$0x11]
        %v406 = vsel %vm304, %v384, %v405
        %407 = vst [vmem:[#allocation2 + $0x20] sm:$0x11] %v406
        %v408 = vld [vmem:[#allocation2 + $0x28] sm:$0x11]
        %v409 = vsel %vm304, %v385, %v408
        %410 = vst [vmem:[#allocation2 + $0x28] sm:$0x11] %v409
        %v411 = vld [vmem:[#allocation2] sm:$0xff]
        %v412 = vld [vmem:[#allocation2 + $0x8] sm:$0xff]
        %v413 = vld [vmem:[#allocation2 + $0x10] sm:$0xff]
        %v414 = vld [vmem:[#allocation2 + $0x18] sm:$0xff]
        %v415 = vld [vmem:[#allocation6] sm:$0xff]
        %v416 = vld [vmem:[#allocation6 + $0x8] sm:$0xff]
        %v417 = vld [vmem:[#allocation6 + $0x10] sm:$0xff]
        %v418 = vld [vmem:[#allocation6 + $0x18] sm:$0xff]
        %v419 = vld [vmem:[#allocation6 + $0x20] sm:$0xff]
        %v420 = vld [vmem:[#allocation6 + $0x28] sm:$0xff]
        %v421 = vld [vmem:[#allocation6 + $0x30] sm:$0xff]
        %v422 = vld [vmem:[#allocation6 + $0x38] sm:$0xff]
        %v423 = vld [vmem:[#allocation6 + $0x40] sm:$0xff]
        %v424 = vld [vmem:[#allocation6 + $0x48] sm:$0xff]
        %v425 = vld [vmem:[#allocation6 + $0x50] sm:$0xff]
        %v426 = vld [vmem:[#allocation6 + $0x58] sm:$0xff]
        %v427 = vld [vmem:[#allocation6 + $0x60] sm:$0xff]
        %v428 = vld [vmem:[#allocation6 + $0x68] sm:$0xff]
        %v429 = vld [vmem:[#allocation6 + $0x70] sm:$0xff]
        %v430 = vld [vmem:[#allocation6 + $0x78] sm:$0xff]
        %v431 = vld [vmem:[#allocation6 + $0x80] sm:$0xff]
        %v432 = vld [vmem:[#allocation6 + $0x88] sm:$0xff]
        %v433 = vld [vmem:[#allocation6 + $0x90] sm:$0xff]
        %v434 = vld [vmem:[#allocation6 + $0x98] sm:$0xff]
        %v435 = vld [vmem:[#allocation6 + $0xa0] sm:$0xff]
        %v436 = vld [vmem:[#allocation6 + $0xa8] sm:$0xff]
        %v437 = vld [vmem:[#allocation6 + $0xb0] sm:$0xff]
        %v438 = vld [vmem:[#allocation6 + $0xb8] sm:$0xff]
        %v439 = vld [vmem:[#allocation6 + $0xc0] sm:$0xff]
        %v440 = vld [vmem:[#allocation6 + $0xc8] sm:$0xff]
        %v441 = vld [vmem:[#allocation6 + $0xd0] sm:$0xff]
        %v442 = vld [vmem:[#allocation6 + $0xd8] sm:$0xff]
        %v443 = vld [vmem:[#allocation6 + $0xe0] sm:$0xff]
        %v444 = vld [vmem:[#allocation6 + $0xe8] sm:$0xff]
        %v445 = vld [vmem:[#allocation6 + $0xf0] sm:$0xff]
        %v446 = vld [vmem:[#allocation6 + $0xf8] sm:$0xff]
        %v447 = vld [vmem:[#allocation6 + $0x100] sm:$0xff]
        %v448 = vld [vmem:[#allocation6 + $0x108] sm:$0xff]
        %v449 = vld [vmem:[#allocation6 + $0x110] sm:$0xff]
        %v450 = vld [vmem:[#allocation6 + $0x118] sm:$0xff]
        %v451 = vld [vmem:[#allocation6 + $0x120] sm:$0xff]
        %v452 = vld [vmem:[#allocation6 + $0x128] sm:$0xff]
        %v453 = vld [vmem:[#allocation6 + $0x130] sm:$0xff]
        %v454 = vld [vmem:[#allocation6 + $0x138] sm:$0xff]
        %v455 = vld [vmem:[#allocation6 + $0x140] sm:$0xff]
        %v456 = vld [vmem:[#allocation6 + $0x148] sm:$0xff]
        %v457 = vld [vmem:[#allocation6 + $0x150] sm:$0xff]
        %v458 = vld [vmem:[#allocation6 + $0x158] sm:$0xff]
        %v459 = vld [vmem:[#allocation6 + $0x160] sm:$0xff]
        %v460 = vld [vmem:[#allocation6 + $0x168] sm:$0xff]
        %v461 = vld [vmem:[#allocation6 + $0x170] sm:$0xff]
        %v462 = vld [vmem:[#allocation6 + $0x178] sm:$0xff]
        %v463 = vld [vmem:[#allocation6 + $0x180] sm:$0xff]
        %v464 = vld [vmem:[#allocation6 + $0x188] sm:$0xff]
        %v465 = vld [vmem:[#allocation6 + $0x190] sm:$0xff]
        %v466 = vld [vmem:[#allocation6 + $0x198] sm:$0xff]
        %v467 = vld [vmem:[#allocation6 + $0x1a0] sm:$0xff]
        %v468 = vld [vmem:[#allocation6 + $0x1a8] sm:$0xff]
        %v469 = vld [vmem:[#allocation6 + $0x1b0] sm:$0xff]
        %v470 = vld [vmem:[#allocation6 + $0x1b8] sm:$0xff]
        %v471 = vld [vmem:[#allocation6 + $0x1c0] sm:$0xff]
        %v472 = vld [vmem:[#allocation6 + $0x1c8] sm:$0xff]
        %v473 = vld [vmem:[#allocation6 + $0x1d0] sm:$0xff]
        %v474 = vld [vmem:[#allocation6 + $0x1d8] sm:$0xff]
        %v475 = vld [vmem:[#allocation6 + $0x1e0] sm:$0xff]
        %v476 = vld [vmem:[#allocation6 + $0x1e8] sm:$0xff]
        %v477 = vld [vmem:[#allocation6 + $0x1f0] sm:$0xff]
        %v478 = vld [vmem:[#allocation6 + $0x1f8] sm:$0xff]
        %v479 = vld [vmem:[#allocation6 + $0x200] sm:$0xff]
        %v480 = vld [vmem:[#allocation6 + $0x208] sm:$0xff]
        %v481 = vld [vmem:[#allocation6 + $0x210] sm:$0xff]
        %v482 = vld [vmem:[#allocation6 + $0x218] sm:$0xff]
        %v483 = vld [vmem:[#allocation6 + $0x220] sm:$0xff]
        %v484 = vld [vmem:[#allocation6 + $0x228] sm:$0xff]
        %v485 = vld [vmem:[#allocation6 + $0x230] sm:$0xff]
        %v486 = vld [vmem:[#allocation6 + $0x238] sm:$0xff]
        %v487 = vld [vmem:[#allocation6 + $0x240] sm:$0xff]
        %v488 = vld [vmem:[#allocation6 + $0x248] sm:$0xff]
        %v489 = vld [vmem:[#allocation6 + $0x250] sm:$0xff]
        %v490 = vld [vmem:[#allocation6 + $0x258] sm:$0xff]
        %v491 = vld [vmem:[#allocation6 + $0x260] sm:$0xff]
        %v492 = vld [vmem:[#allocation6 + $0x268] sm:$0xff]
        %v493 = vld [vmem:[#allocation6 + $0x270] sm:$0xff]
        %v494 = vld [vmem:[#allocation6 + $0x278] sm:$0xff]
        %v495 = vld [vmem:[#allocation6 + $0x280] sm:$0xff]
        %v496 = vld [vmem:[#allocation6 + $0x288] sm:$0xff]
        %v497 = vld [vmem:[#allocation6 + $0x290] sm:$0xff]
        %v498 = vld [vmem:[#allocation6 + $0x298] sm:$0xff]
        %v499 = vld [vmem:[#allocation6 + $0x2a0] sm:$0xff]
        %v500 = vld [vmem:[#allocation6 + $0x2a8] sm:$0xff]
        %v501 = vld [vmem:[#allocation6 + $0x2b0] sm:$0xff]
        %v502 = vld [vmem:[#allocation6 + $0x2b8] sm:$0xff]
        %v503 = vld [vmem:[#allocation6 + $0x2c0] sm:$0xff]
        %v504 = vld [vmem:[#allocation6 + $0x2c8] sm:$0xff]
        %v505 = vld [vmem:[#allocation6 + $0x2d0] sm:$0xff]
        %v506 = vld [vmem:[#allocation6 + $0x2d8] sm:$0xff]
        %v507 = vld [vmem:[#allocation6 + $0x2e0] sm:$0xff]
        %v508 = vld [vmem:[#allocation6 + $0x2e8] sm:$0xff]
        %v509 = vld [vmem:[#allocation6 + $0x2f0] sm:$0xff]
        %v510 = vld [vmem:[#allocation6 + $0x2f8] sm:$0xff]
        %v511 = vld [vmem:[#allocation6 + $0x300] sm:$0xff]
        %v512 = vld [vmem:[#allocation6 + $0x308] sm:$0xff]
        %v513 = vld [vmem:[#allocation6 + $0x310] sm:$0xff]
        %v514 = vld [vmem:[#allocation6 + $0x318] sm:$0xff]
        %v515 = vld [vmem:[#allocation6 + $0x320] sm:$0xff]
        %v516 = vld [vmem:[#allocation6 + $0x328] sm:$0xff]
        %v517 = vld [vmem:[#allocation6 + $0x330] sm:$0xff]
        %v518 = vld [vmem:[#allocation6 + $0x338] sm:$0xff]
        %v519 = vld [vmem:[#allocation6 + $0x340] sm:$0xff]
        %v520 = vld [vmem:[#allocation6 + $0x348] sm:$0xff]
        %v521 = vld [vmem:[#allocation6 + $0x350] sm:$0xff]
        %v522 = vld [vmem:[#allocation6 + $0x358] sm:$0xff]
        %v523 = vld [vmem:[#allocation6 + $0x360] sm:$0xff]
        %v524 = vld [vmem:[#allocation6 + $0x368] sm:$0xff]
        %v525 = vld [vmem:[#allocation6 + $0x370] sm:$0xff]
        %v526 = vld [vmem:[#allocation6 + $0x378] sm:$0xff]
        %v527 = vld [vmem:[#allocation6 + $0x380] sm:$0xff]
        %v528 = vld [vmem:[#allocation6 + $0x388] sm:$0xff]
        %v529 = vld [vmem:[#allocation6 + $0x390] sm:$0xff]
        %v530 = vld [vmem:[#allocation6 + $0x398] sm:$0xff]
        %v531 = vld [vmem:[#allocation6 + $0x3a0] sm:$0xff]
        %v532 = vld [vmem:[#allocation6 + $0x3a8] sm:$0xff]
        %v533 = vld [vmem:[#allocation6 + $0x3b0] sm:$0xff]
        %v534 = vld [vmem:[#allocation6 + $0x3b8] sm:$0xff]
        %v535 = vld [vmem:[#allocation6 + $0x3c0] sm:$0xff]
        %v536 = vld [vmem:[#allocation6 + $0x3c8] sm:$0xff]
        %v537 = vld [vmem:[#allocation6 + $0x3d0] sm:$0xff]
        %v538 = vld [vmem:[#allocation6 + $0x3d8] sm:$0xff]
        %v539 = vld [vmem:[#allocation6 + $0x3e0] sm:$0xff]
        %v540 = vld [vmem:[#allocation6 + $0x3e8] sm:$0xff]
        %v541 = vld [vmem:[#allocation6 + $0x3f0] sm:$0xff]
        %v542 = vld [vmem:[#allocation6 + $0x3f8] sm:$0xff]
        %v543 = vld [vmem:[#allocation2 + $0x20] sm:$0x11]
        %v544 = vld [vmem:[#allocation2 + $0x28] sm:$0x11]
        %s545 = scalar_lea.vmem [#allocation6], 1024
        %v546 = vld [vmem:[%s545] sm:$0xff]
        %v547 = vld [vmem:[%s545 + $0x8] sm:$0xff]
        %v548 = vld [vmem:[%s545 + $0x10] sm:$0xff]
        %v549 = vld [vmem:[%s545 + $0x18] sm:$0xff]
        %v550 = vld [vmem:[%s545 + $0x20] sm:$0xff]
        %v551 = vld [vmem:[%s545 + $0x28] sm:$0xff]
        %v552 = vld [vmem:[%s545 + $0x30] sm:$0xff]
        %v553 = vld [vmem:[%s545 + $0x38] sm:$0xff]
        %v554 = vld [vmem:[%s545 + $0x40] sm:$0xff]
        %v555 = vld [vmem:[%s545 + $0x48] sm:$0xff]
        %v556 = vld [vmem:[%s545 + $0x50] sm:$0xff]
        %v557 = vld [vmem:[%s545 + $0x58] sm:$0xff]
        %v558 = vld [vmem:[%s545 + $0x60] sm:$0xff]
        %v559 = vld [vmem:[%s545 + $0x68] sm:$0xff]
        %v560 = vld [vmem:[%s545 + $0x70] sm:$0xff]
        %v561 = vld [vmem:[%s545 + $0x78] sm:$0xff]
        %v562 = vld [vmem:[%s545 + $0x80] sm:$0xff]
        %v563 = vld [vmem:[%s545 + $0x88] sm:$0xff]
        %v564 = vld [vmem:[%s545 + $0x90] sm:$0xff]
        %v565 = vld [vmem:[%s545 + $0x98] sm:$0xff]
        %v566 = vld [vmem:[%s545 + $0xa0] sm:$0xff]
        %v567 = vld [vmem:[%s545 + $0xa8] sm:$0xff]
        %v568 = vld [vmem:[%s545 + $0xb0] sm:$0xff]
        %v569 = vld [vmem:[%s545 + $0xb8] sm:$0xff]
        %v570 = vld [vmem:[%s545 + $0xc0] sm:$0xff]
        %v571 = vld [vmem:[%s545 + $0xc8] sm:$0xff]
        %v572 = vld [vmem:[%s545 + $0xd0] sm:$0xff]
        %v573 = vld [vmem:[%s545 + $0xd8] sm:$0xff]
        %v574 = vld [vmem:[%s545 + $0xe0] sm:$0xff]
        %v575 = vld [vmem:[%s545 + $0xe8] sm:$0xff]
        %v576 = vld [vmem:[%s545 + $0xf0] sm:$0xff]
        %v577 = vld [vmem:[%s545 + $0xf8] sm:$0xff]
        %v578 = vld [vmem:[%s545 + $0x100] sm:$0xff]
        %v579 = vld [vmem:[%s545 + $0x108] sm:$0xff]
        %v580 = vld [vmem:[%s545 + $0x110] sm:$0xff]
        %v581 = vld [vmem:[%s545 + $0x118] sm:$0xff]
        %v582 = vld [vmem:[%s545 + $0x120] sm:$0xff]
        %v583 = vld [vmem:[%s545 + $0x128] sm:$0xff]
        %v584 = vld [vmem:[%s545 + $0x130] sm:$0xff]
        %v585 = vld [vmem:[%s545 + $0x138] sm:$0xff]
        %v586 = vld [vmem:[%s545 + $0x140] sm:$0xff]
        %v587 = vld [vmem:[%s545 + $0x148] sm:$0xff]
        %v588 = vld [vmem:[%s545 + $0x150] sm:$0xff]
        %v589 = vld [vmem:[%s545 + $0x158] sm:$0xff]
        %v590 = vld [vmem:[%s545 + $0x160] sm:$0xff]
        %v591 = vld [vmem:[%s545 + $0x168] sm:$0xff]
        %v592 = vld [vmem:[%s545 + $0x170] sm:$0xff]
        %v593 = vld [vmem:[%s545 + $0x178] sm:$0xff]
        %v594 = vld [vmem:[%s545 + $0x180] sm:$0xff]
        %v595 = vld [vmem:[%s545 + $0x188] sm:$0xff]
        %v596 = vld [vmem:[%s545 + $0x190] sm:$0xff]
        %v597 = vld [vmem:[%s545 + $0x198] sm:$0xff]
        %v598 = vld [vmem:[%s545 + $0x1a0] sm:$0xff]
        %v599 = vld [vmem:[%s545 + $0x1a8] sm:$0xff]
        %v600 = vld [vmem:[%s545 + $0x1b0] sm:$0xff]
        %v601 = vld [vmem:[%s545 + $0x1b8] sm:$0xff]
        %v602 = vld [vmem:[%s545 + $0x1c0] sm:$0xff]
        %v603 = vld [vmem:[%s545 + $0x1c8] sm:$0xff]
        %v604 = vld [vmem:[%s545 + $0x1d0] sm:$0xff]
        %v605 = vld [vmem:[%s545 + $0x1d8] sm:$0xff]
        %v606 = vld [vmem:[%s545 + $0x1e0] sm:$0xff]
        %v607 = vld [vmem:[%s545 + $0x1e8] sm:$0xff]
        %v608 = vld [vmem:[%s545 + $0x1f0] sm:$0xff]
        %v609 = vld [vmem:[%s545 + $0x1f8] sm:$0xff]
        %v610 = vld [vmem:[%s545 + $0x200] sm:$0xff]
        %v611 = vld [vmem:[%s545 + $0x208] sm:$0xff]
        %v612 = vld [vmem:[%s545 + $0x210] sm:$0xff]
        %v613 = vld [vmem:[%s545 + $0x218] sm:$0xff]
        %v614 = vld [vmem:[%s545 + $0x220] sm:$0xff]
        %v615 = vld [vmem:[%s545 + $0x228] sm:$0xff]
        %v616 = vld [vmem:[%s545 + $0x230] sm:$0xff]
        %v617 = vld [vmem:[%s545 + $0x238] sm:$0xff]
        %v618 = vld [vmem:[%s545 + $0x240] sm:$0xff]
        %v619 = vld [vmem:[%s545 + $0x248] sm:$0xff]
        %v620 = vld [vmem:[%s545 + $0x250] sm:$0xff]
        %v621 = vld [vmem:[%s545 + $0x258] sm:$0xff]
        %v622 = vld [vmem:[%s545 + $0x260] sm:$0xff]
        %v623 = vld [vmem:[%s545 + $0x268] sm:$0xff]
        %v624 = vld [vmem:[%s545 + $0x270] sm:$0xff]
        %v625 = vld [vmem:[%s545 + $0x278] sm:$0xff]
        %v626 = vld [vmem:[%s545 + $0x280] sm:$0xff]
        %v627 = vld [vmem:[%s545 + $0x288] sm:$0xff]
        %v628 = vld [vmem:[%s545 + $0x290] sm:$0xff]
        %v629 = vld [vmem:[%s545 + $0x298] sm:$0xff]
        %v630 = vld [vmem:[%s545 + $0x2a0] sm:$0xff]
        %v631 = vld [vmem:[%s545 + $0x2a8] sm:$0xff]
        %v632 = vld [vmem:[%s545 + $0x2b0] sm:$0xff]
        %v633 = vld [vmem:[%s545 + $0x2b8] sm:$0xff]
        %v634 = vld [vmem:[%s545 + $0x2c0] sm:$0xff]
        %v635 = vld [vmem:[%s545 + $0x2c8] sm:$0xff]
        %v636 = vld [vmem:[%s545 + $0x2d0] sm:$0xff]
        %v637 = vld [vmem:[%s545 + $0x2d8] sm:$0xff]
        %v638 = vld [vmem:[%s545 + $0x2e0] sm:$0xff]
        %v639 = vld [vmem:[%s545 + $0x2e8] sm:$0xff]
        %v640 = vld [vmem:[%s545 + $0x2f0] sm:$0xff]
        %v641 = vld [vmem:[%s545 + $0x2f8] sm:$0xff]
        %v642 = vld [vmem:[%s545 + $0x300] sm:$0xff]
        %v643 = vld [vmem:[%s545 + $0x308] sm:$0xff]
        %v644 = vld [vmem:[%s545 + $0x310] sm:$0xff]
        %v645 = vld [vmem:[%s545 + $0x318] sm:$0xff]
        %v646 = vld [vmem:[%s545 + $0x320] sm:$0xff]
        %v647 = vld [vmem:[%s545 + $0x328] sm:$0xff]
        %v648 = vld [vmem:[%s545 + $0x330] sm:$0xff]
        %v649 = vld [vmem:[%s545 + $0x338] sm:$0xff]
        %v650 = vld [vmem:[%s545 + $0x340] sm:$0xff]
        %v651 = vld [vmem:[%s545 + $0x348] sm:$0xff]
        %v652 = vld [vmem:[%s545 + $0x350] sm:$0xff]
        %v653 = vld [vmem:[%s545 + $0x358] sm:$0xff]
        %v654 = vld [vmem:[%s545 + $0x360] sm:$0xff]
        %v655 = vld [vmem:[%s545 + $0x368] sm:$0xff]
        %v656 = vld [vmem:[%s545 + $0x370] sm:$0xff]
        %v657 = vld [vmem:[%s545 + $0x378] sm:$0xff]
        %v658 = vld [vmem:[%s545 + $0x380] sm:$0xff]
        %v659 = vld [vmem:[%s545 + $0x388] sm:$0xff]
        %v660 = vld [vmem:[%s545 + $0x390] sm:$0xff]
        %v661 = vld [vmem:[%s545 + $0x398] sm:$0xff]
        %v662 = vld [vmem:[%s545 + $0x3a0] sm:$0xff]
        %v663 = vld [vmem:[%s545 + $0x3a8] sm:$0xff]
        %v664 = vld [vmem:[%s545 + $0x3b0] sm:$0xff]
        %v665 = vld [vmem:[%s545 + $0x3b8] sm:$0xff]
        %v666 = vld [vmem:[%s545 + $0x3c0] sm:$0xff]
        %v667 = vld [vmem:[%s545 + $0x3c8] sm:$0xff]
        %v668 = vld [vmem:[%s545 + $0x3d0] sm:$0xff]
        %v669 = vld [vmem:[%s545 + $0x3d8] sm:$0xff]
        %v670 = vld [vmem:[%s545 + $0x3e0] sm:$0xff]
        %v671 = vld [vmem:[%s545 + $0x3e8] sm:$0xff]
        %v672 = vld [vmem:[%s545 + $0x3f0] sm:$0xff]
        %v673 = vld [vmem:[%s545 + $0x3f8] sm:$0xff]
        %v680 = vunpack.c.l.b16 %v411
        %v681 = vunpack.c.h.b16 %v411
        %v682 = vunpack.c.l.b16 %v412
        %v683 = vunpack.c.h.b16 %v412
        %v684 = vunpack.c.l.b16 %v413
        %v685 = vunpack.c.h.b16 %v413
        %v686 = vunpack.c.l.b16 %v414
        %v687 = vunpack.c.h.b16 %v414
        %v688 = vunpack.c.l.b16 %v543
        %v689 = vunpack.c.h.b16 %v543
        %v690 = vunpack.c.l.b16 %v544
        %v691 = vunpack.c.h.b16 %v544
        %v692 = vpack.c.b16 %v684, %v680
        %v693 = vpack.c.b16 %v685, %v681
        %v694 = vpack.c.b16 %v686, %v682
        %v695 = vpack.c.b16 %v687, %v683
        %v696 = vpack.c.b16 %v688, %v688
        %v697 = vpack.c.b16 %v689, %v689
        %v698 = vpack.c.b16 %v690, %v690
        %v699 = vpack.c.b16 %v691, %v691
        %vm700 = vsmask.f32 7424
        %v702 = vshrl.u32 %v692, 16
        %v704 = vshll.u32 %v692, 16
        %v706 = vrot.slane %v704, 1
        %v707 = vor.u32 %v702, %v706
        %v709 = vshll.u32 %v696, 16
        %v711 = vrot.slane %v709, 1
        %v712 = vsel %vm700, %v707, %v711
        %v714 = vshrl.u32 %v693, 16
        %v716 = vshll.u32 %v693, 16
        %v718 = vrot.slane %v716, 1
        %v719 = vor.u32 %v714, %v718
        %v721 = vshll.u32 %v697, 16
        %v723 = vrot.slane %v721, 1
        %v724 = vsel %vm700, %v719, %v723
        %v726 = vshrl.u32 %v694, 16
        %v728 = vshll.u32 %v694, 16
        %v730 = vrot.slane %v728, 1
        %v731 = vor.u32 %v726, %v730
        %v733 = vshll.u32 %v698, 16
        %v735 = vrot.slane %v733, 1
        %v736 = vsel %vm700, %v731, %v735
        %v738 = vshrl.u32 %v695, 16
        %v740 = vshll.u32 %v695, 16
        %v742 = vrot.slane %v740, 1
        %v743 = vor.u32 %v738, %v742
        %v745 = vshll.u32 %v699, 16
        %v747 = vrot.slane %v745, 1
        %v748 = vsel %vm700, %v743, %v747
        %v881 = vunpack.c.l.b16 %v546
        %v882 = vunpack.c.h.b16 %v546
        %v883 = vunpack.c.l.b16 %v547
        %v884 = vunpack.c.h.b16 %v547
        %v885 = vunpack.c.l.b16 %v548
        %v886 = vunpack.c.h.b16 %v548
        %v887 = vunpack.c.l.b16 %v549
        %v888 = vunpack.c.h.b16 %v549
        %v889 = vunpack.c.l.b16 %v550
        %v890 = vunpack.c.h.b16 %v550
        %v891 = vunpack.c.l.b16 %v551
        %v892 = vunpack.c.h.b16 %v551
        %v893 = vunpack.c.l.b16 %v552
        %v894 = vunpack.c.h.b16 %v552
        %v895 = vunpack.c.l.b16 %v553
        %v896 = vunpack.c.h.b16 %v553
        %v897 = vunpack.c.l.b16 %v554
        %v898 = vunpack.c.h.b16 %v554
        %v899 = vunpack.c.l.b16 %v555
        %v900 = vunpack.c.h.b16 %v555
        %v901 = vunpack.c.l.b16 %v556
        %v902 = vunpack.c.h.b16 %v556
        %v903 = vunpack.c.l.b16 %v557
        %v904 = vunpack.c.h.b16 %v557
        %v905 = vunpack.c.l.b16 %v558
        %v906 = vunpack.c.h.b16 %v558
        %v907 = vunpack.c.l.b16 %v559
        %v908 = vunpack.c.h.b16 %v559
        %v909 = vunpack.c.l.b16 %v560
        %v910 = vunpack.c.h.b16 %v560
        %v911 = vunpack.c.l.b16 %v561
        %v912 = vunpack.c.h.b16 %v561
        %v913 = vunpack.c.l.b16 %v562
        %v914 = vunpack.c.h.b16 %v562
        %v915 = vunpack.c.l.b16 %v563
        %v916 = vunpack.c.h.b16 %v563
        %v917 = vunpack.c.l.b16 %v564
        %v918 = vunpack.c.h.b16 %v564
        %v919 = vunpack.c.l.b16 %v565
        %v920 = vunpack.c.h.b16 %v565
        %v921 = vunpack.c.l.b16 %v566
        %v922 = vunpack.c.h.b16 %v566
        %v923 = vunpack.c.l.b16 %v567
        %v924 = vunpack.c.h.b16 %v567
        %v925 = vunpack.c.l.b16 %v568
        %v926 = vunpack.c.h.b16 %v568
        %v927 = vunpack.c.l.b16 %v569
        %v928 = vunpack.c.h.b16 %v569
        %v929 = vunpack.c.l.b16 %v570
        %v930 = vunpack.c.h.b16 %v570
        %v931 = vunpack.c.l.b16 %v571
        %v932 = vunpack.c.h.b16 %v571
        %v933 = vunpack.c.l.b16 %v572
        %v934 = vunpack.c.h.b16 %v572
        %v935 = vunpack.c.l.b16 %v573
        %v936 = vunpack.c.h.b16 %v573
        %v937 = vunpack.c.l.b16 %v574
        %v938 = vunpack.c.h.b16 %v574
        %v939 = vunpack.c.l.b16 %v575
        %v940 = vunpack.c.h.b16 %v575
        %v941 = vunpack.c.l.b16 %v576
        %v942 = vunpack.c.h.b16 %v576
        %v943 = vunpack.c.l.b16 %v577
        %v944 = vunpack.c.h.b16 %v577
        %v945 = vunpack.c.l.b16 %v578
        %v946 = vunpack.c.h.b16 %v578
        %v947 = vunpack.c.l.b16 %v579
        %v948 = vunpack.c.h.b16 %v579
        %v949 = vunpack.c.l.b16 %v580
        %v950 = vunpack.c.h.b16 %v580
        %v951 = vunpack.c.l.b16 %v581
        %v952 = vunpack.c.h.b16 %v581
        %v953 = vunpack.c.l.b16 %v582
        %v954 = vunpack.c.h.b16 %v582
        %v955 = vunpack.c.l.b16 %v583
        %v956 = vunpack.c.h.b16 %v583
        %v957 = vunpack.c.l.b16 %v584
        %v958 = vunpack.c.h.b16 %v584
        %v959 = vunpack.c.l.b16 %v585
        %v960 = vunpack.c.h.b16 %v585
        %v961 = vunpack.c.l.b16 %v586
        %v962 = vunpack.c.h.b16 %v586
        %v963 = vunpack.c.l.b16 %v587
        %v964 = vunpack.c.h.b16 %v587
        %v965 = vunpack.c.l.b16 %v588
        %v966 = vunpack.c.h.b16 %v588
        %v967 = vunpack.c.l.b16 %v589
        %v968 = vunpack.c.h.b16 %v589
        %v969 = vunpack.c.l.b16 %v590
        %v970 = vunpack.c.h.b16 %v590
        %v971 = vunpack.c.l.b16 %v591
        %v972 = vunpack.c.h.b16 %v591
        %v973 = vunpack.c.l.b16 %v592
        %v974 = vunpack.c.h.b16 %v592
        %v975 = vunpack.c.l.b16 %v593
        %v976 = vunpack.c.h.b16 %v593
        %v977 = vunpack.c.l.b16 %v594
        %v978 = vunpack.c.h.b16 %v594
        %v979 = vunpack.c.l.b16 %v595
        %v980 = vunpack.c.h.b16 %v595
        %v981 = vunpack.c.l.b16 %v596
        %v982 = vunpack.c.h.b16 %v596
        %v983 = vunpack.c.l.b16 %v597
        %v984 = vunpack.c.h.b16 %v597
        %v985 = vunpack.c.l.b16 %v598
        %v986 = vunpack.c.h.b16 %v598
        %v987 = vunpack.c.l.b16 %v599
        %v988 = vunpack.c.h.b16 %v599
        %v989 = vunpack.c.l.b16 %v600
        %v990 = vunpack.c.h.b16 %v600
        %v991 = vunpack.c.l.b16 %v601
        %v992 = vunpack.c.h.b16 %v601
        %v993 = vunpack.c.l.b16 %v602
        %v994 = vunpack.c.h.b16 %v602
        %v995 = vunpack.c.l.b16 %v603
        %v996 = vunpack.c.h.b16 %v603
        %v997 = vunpack.c.l.b16 %v604
        %v998 = vunpack.c.h.b16 %v604
        %v999 = vunpack.c.l.b16 %v605
        %v1000 = vunpack.c.h.b16 %v605
        %v1001 = vunpack.c.l.b16 %v606
        %v1002 = vunpack.c.h.b16 %v606
        %v1003 = vunpack.c.l.b16 %v607
        %v1004 = vunpack.c.h.b16 %v607
        %v1005 = vunpack.c.l.b16 %v608
        %v1006 = vunpack.c.h.b16 %v608
        %v1007 = vunpack.c.l.b16 %v609
        %v1008 = vunpack.c.h.b16 %v609
        %v1009 = vunpack.c.l.b16 %v610
        %v1010 = vunpack.c.h.b16 %v610
        %v1011 = vunpack.c.l.b16 %v611
        %v1012 = vunpack.c.h.b16 %v611
        %v1013 = vunpack.c.l.b16 %v612
        %v1014 = vunpack.c.h.b16 %v612
        %v1015 = vunpack.c.l.b16 %v613
        %v1016 = vunpack.c.h.b16 %v613
        %v1017 = vunpack.c.l.b16 %v614
        %v1018 = vunpack.c.h.b16 %v614
        %v1019 = vunpack.c.l.b16 %v615
        %v1020 = vunpack.c.h.b16 %v615
        %v1021 = vunpack.c.l.b16 %v616
        %v1022 = vunpack.c.h.b16 %v616
        %v1023 = vunpack.c.l.b16 %v617
        %v1024 = vunpack.c.h.b16 %v617
        %v1025 = vunpack.c.l.b16 %v618
        %v1026 = vunpack.c.h.b16 %v618
        %v1027 = vunpack.c.l.b16 %v619
        %v1028 = vunpack.c.h.b16 %v619
        %v1029 = vunpack.c.l.b16 %v620
        %v1030 = vunpack.c.h.b16 %v620
        %v1031 = vunpack.c.l.b16 %v621
        %v1032 = vunpack.c.h.b16 %v621
        %v1033 = vunpack.c.l.b16 %v622
        %v1034 = vunpack.c.h.b16 %v622
        %v1035 = vunpack.c.l.b16 %v623
        %v1036 = vunpack.c.h.b16 %v623
        %v1037 = vunpack.c.l.b16 %v624
        %v1038 = vunpack.c.h.b16 %v624
        %v1039 = vunpack.c.l.b16 %v625
        %v1040 = vunpack.c.h.b16 %v625
        %v1041 = vunpack.c.l.b16 %v626
        %v1042 = vunpack.c.h.b16 %v626
        %v1043 = vunpack.c.l.b16 %v627
        %v1044 = vunpack.c.h.b16 %v627
        %v1045 = vunpack.c.l.b16 %v628
        %v1046 = vunpack.c.h.b16 %v628
        %v1047 = vunpack.c.l.b16 %v629
        %v1048 = vunpack.c.h.b16 %v629
        %v1049 = vunpack.c.l.b16 %v630
        %v1050 = vunpack.c.h.b16 %v630
        %v1051 = vunpack.c.l.b16 %v631
        %v1052 = vunpack.c.h.b16 %v631
        %v1053 = vunpack.c.l.b16 %v632
        %v1054 = vunpack.c.h.b16 %v632
        %v1055 = vunpack.c.l.b16 %v633
        %v1056 = vunpack.c.h.b16 %v633
        %v1057 = vunpack.c.l.b16 %v634
        %v1058 = vunpack.c.h.b16 %v634
        %v1059 = vunpack.c.l.b16 %v635
        %v1060 = vunpack.c.h.b16 %v635
        %v1061 = vunpack.c.l.b16 %v636
        %v1062 = vunpack.c.h.b16 %v636
        %v1063 = vunpack.c.l.b16 %v637
        %v1064 = vunpack.c.h.b16 %v637
        %v1065 = vunpack.c.l.b16 %v638
        %v1066 = vunpack.c.h.b16 %v638
        %v1067 = vunpack.c.l.b16 %v639
        %v1068 = vunpack.c.h.b16 %v639
        %v1069 = vunpack.c.l.b16 %v640
        %v1070 = vunpack.c.h.b16 %v640
        %v1071 = vunpack.c.l.b16 %v641
        %v1072 = vunpack.c.h.b16 %v641
        %v1073 = vunpack.c.l.b16 %v642
        %v1074 = vunpack.c.h.b16 %v642
        %v1075 = vunpack.c.l.b16 %v643
        %v1076 = vunpack.c.h.b16 %v643
        %v1077 = vunpack.c.l.b16 %v644
        %v1078 = vunpack.c.h.b16 %v644
        %v1079 = vunpack.c.l.b16 %v645
        %v1080 = vunpack.c.h.b16 %v645
        %v1081 = vunpack.c.l.b16 %v646
        %v1082 = vunpack.c.h.b16 %v646
        %v1083 = vunpack.c.l.b16 %v647
        %v1084 = vunpack.c.h.b16 %v647
        %v1085 = vunpack.c.l.b16 %v648
        %v1086 = vunpack.c.h.b16 %v648
        %v1087 = vunpack.c.l.b16 %v649
        %v1088 = vunpack.c.h.b16 %v649
        %v1089 = vunpack.c.l.b16 %v650
        %v1090 = vunpack.c.h.b16 %v650
        %v1091 = vunpack.c.l.b16 %v651
        %v1092 = vunpack.c.h.b16 %v651
        %v1093 = vunpack.c.l.b16 %v652
        %v1094 = vunpack.c.h.b16 %v652
        %v1095 = vunpack.c.l.b16 %v653
        %v1096 = vunpack.c.h.b16 %v653
        %v1097 = vunpack.c.l.b16 %v654
        %v1098 = vunpack.c.h.b16 %v654
        %v1099 = vunpack.c.l.b16 %v655
        %v1100 = vunpack.c.h.b16 %v655
        %v1101 = vunpack.c.l.b16 %v656
        %v1102 = vunpack.c.h.b16 %v656
        %v1103 = vunpack.c.l.b16 %v657
        %v1104 = vunpack.c.h.b16 %v657
        %v1105 = vunpack.c.l.b16 %v658
        %v1106 = vunpack.c.h.b16 %v658
        %v1107 = vunpack.c.l.b16 %v659
        %v1108 = vunpack.c.h.b16 %v659
        %v1109 = vunpack.c.l.b16 %v660
        %v1110 = vunpack.c.h.b16 %v660
        %v1111 = vunpack.c.l.b16 %v661
        %v1112 = vunpack.c.h.b16 %v661
        %v1113 = vunpack.c.l.b16 %v662
        %v1114 = vunpack.c.h.b16 %v662
        %v1115 = vunpack.c.l.b16 %v663
        %v1116 = vunpack.c.h.b16 %v663
        %v1117 = vunpack.c.l.b16 %v664
        %v1118 = vunpack.c.h.b16 %v664
        %v1119 = vunpack.c.l.b16 %v665
        %v1120 = vunpack.c.h.b16 %v665
        %v1121 = vunpack.c.l.b16 %v666
        %v1122 = vunpack.c.h.b16 %v666
        %v1123 = vunpack.c.l.b16 %v667
        %v1124 = vunpack.c.h.b16 %v667
        %v1125 = vunpack.c.l.b16 %v668
        %v1126 = vunpack.c.h.b16 %v668
        %v1127 = vunpack.c.l.b16 %v669
        %v1128 = vunpack.c.h.b16 %v669
        %v1129 = vunpack.c.l.b16 %v670
        %v1130 = vunpack.c.h.b16 %v670
        %v1131 = vunpack.c.l.b16 %v671
        %v1132 = vunpack.c.h.b16 %v671
        %v1133 = vunpack.c.l.b16 %v672
        %v1134 = vunpack.c.h.b16 %v672
        %v1135 = vunpack.c.l.b16 %v673
        %v1136 = vunpack.c.h.b16 %v673
        %v1137 = vpack.c.b16 %v885, %v881
        %v1138 = vpack.c.b16 %v886, %v882
        %v1139 = vpack.c.b16 %v887, %v883
        %v1140 = vpack.c.b16 %v888, %v884
        %v1141 = vpack.c.b16 %v893, %v889
        %v1142 = vpack.c.b16 %v894, %v890
        %v1143 = vpack.c.b16 %v895, %v891
        %v1144 = vpack.c.b16 %v896, %v892
        %v1145 = vpack.c.b16 %v901, %v897
        %v1146 = vpack.c.b16 %v902, %v898
        %v1147 = vpack.c.b16 %v903, %v899
        %v1148 = vpack.c.b16 %v904, %v900
        %v1149 = vpack.c.b16 %v909, %v905
        %v1150 = vpack.c.b16 %v910, %v906
        %v1151 = vpack.c.b16 %v911, %v907
        %v1152 = vpack.c.b16 %v912, %v908
        %v1153 = vpack.c.b16 %v917, %v913
        %v1154 = vpack.c.b16 %v918, %v914
        %v1155 = vpack.c.b16 %v919, %v915
        %v1156 = vpack.c.b16 %v920, %v916
        %v1157 = vpack.c.b16 %v925, %v921
        %v1158 = vpack.c.b16 %v926, %v922
        %v1159 = vpack.c.b16 %v927, %v923
        %v1160 = vpack.c.b16 %v928, %v924
        %v1161 = vpack.c.b16 %v933, %v929
        %v1162 = vpack.c.b16 %v934, %v930
        %v1163 = vpack.c.b16 %v935, %v931
        %v1164 = vpack.c.b16 %v936, %v932
        %v1165 = vpack.c.b16 %v941, %v937
        %v1166 = vpack.c.b16 %v942, %v938
        %v1167 = vpack.c.b16 %v943, %v939
        %v1168 = vpack.c.b16 %v944, %v940
        %v1169 = vpack.c.b16 %v949, %v945
        %v1170 = vpack.c.b16 %v950, %v946
        %v1171 = vpack.c.b16 %v951, %v947
        %v1172 = vpack.c.b16 %v952, %v948
        %v1173 = vpack.c.b16 %v957, %v953
        %v1174 = vpack.c.b16 %v958, %v954
        %v1175 = vpack.c.b16 %v959, %v955
        %v1176 = vpack.c.b16 %v960, %v956
        %v1177 = vpack.c.b16 %v965, %v961
        %v1178 = vpack.c.b16 %v966, %v962
        %v1179 = vpack.c.b16 %v967, %v963
        %v1180 = vpack.c.b16 %v968, %v964
        %v1181 = vpack.c.b16 %v973, %v969
        %v1182 = vpack.c.b16 %v974, %v970
        %v1183 = vpack.c.b16 %v975, %v971
        %v1184 = vpack.c.b16 %v976, %v972
        %v1185 = vpack.c.b16 %v981, %v977
        %v1186 = vpack.c.b16 %v982, %v978
        %v1187 = vpack.c.b16 %v983, %v979
        %v1188 = vpack.c.b16 %v984, %v980
        %v1189 = vpack.c.b16 %v989, %v985
        %v1190 = vpack.c.b16 %v990, %v986
        %v1191 = vpack.c.b16 %v991, %v987
        %v1192 = vpack.c.b16 %v992, %v988
        %v1193 = vpack.c.b16 %v997, %v993
        %v1194 = vpack.c.b16 %v998, %v994
        %v1195 = vpack.c.b16 %v999, %v995
        %v1196 = vpack.c.b16 %v1000, %v996
        %v1197 = vpack.c.b16 %v1005, %v1001
        %v1198 = vpack.c.b16 %v1006, %v1002
        %v1199 = vpack.c.b16 %v1007, %v1003
        %v1200 = vpack.c.b16 %v1008, %v1004
        %v1201 = vpack.c.b16 %v1013, %v1009
        %v1202 = vpack.c.b16 %v1014, %v1010
        %v1203 = vpack.c.b16 %v1015, %v1011
        %v1204 = vpack.c.b16 %v1016, %v1012
        %v1205 = vpack.c.b16 %v1021, %v1017
        %v1206 = vpack.c.b16 %v1022, %v1018
        %v1207 = vpack.c.b16 %v1023, %v1019
        %v1208 = vpack.c.b16 %v1024, %v1020
        %v1209 = vpack.c.b16 %v1029, %v1025
        %v1210 = vpack.c.b16 %v1030, %v1026
        %v1211 = vpack.c.b16 %v1031, %v1027
        %v1212 = vpack.c.b16 %v1032, %v1028
        %v1213 = vpack.c.b16 %v1037, %v1033
        %v1214 = vpack.c.b16 %v1038, %v1034
        %v1215 = vpack.c.b16 %v1039, %v1035
        %v1216 = vpack.c.b16 %v1040, %v1036
        %v1217 = vpack.c.b16 %v1045, %v1041
        %v1218 = vpack.c.b16 %v1046, %v1042
        %v1219 = vpack.c.b16 %v1047, %v1043
        %v1220 = vpack.c.b16 %v1048, %v1044
        %v1221 = vpack.c.b16 %v1053, %v1049
        %v1222 = vpack.c.b16 %v1054, %v1050
        %v1223 = vpack.c.b16 %v1055, %v1051
        %v1224 = vpack.c.b16 %v1056, %v1052
        %v1225 = vpack.c.b16 %v1061, %v1057
        %v1226 = vpack.c.b16 %v1062, %v1058
        %v1227 = vpack.c.b16 %v1063, %v1059
        %v1228 = vpack.c.b16 %v1064, %v1060
        %v1229 = vpack.c.b16 %v1069, %v1065
        %v1230 = vpack.c.b16 %v1070, %v1066
        %v1231 = vpack.c.b16 %v1071, %v1067
        %v1232 = vpack.c.b16 %v1072, %v1068
        %v1233 = vpack.c.b16 %v1077, %v1073
        %v1234 = vpack.c.b16 %v1078, %v1074
        %v1235 = vpack.c.b16 %v1079, %v1075
        %v1236 = vpack.c.b16 %v1080, %v1076
        %v1237 = vpack.c.b16 %v1085, %v1081
        %v1238 = vpack.c.b16 %v1086, %v1082
        %v1239 = vpack.c.b16 %v1087, %v1083
        %v1240 = vpack.c.b16 %v1088, %v1084
        %v1241 = vpack.c.b16 %v1093, %v1089
        %v1242 = vpack.c.b16 %v1094, %v1090
        %v1243 = vpack.c.b16 %v1095, %v1091
        %v1244 = vpack.c.b16 %v1096, %v1092
        %v1245 = vpack.c.b16 %v1101, %v1097
        %v1246 = vpack.c.b16 %v1102, %v1098
        %v1247 = vpack.c.b16 %v1103, %v1099
        %v1248 = vpack.c.b16 %v1104, %v1100
        %v1249 = vpack.c.b16 %v1109, %v1105
        %v1250 = vpack.c.b16 %v1110, %v1106
        %v1251 = vpack.c.b16 %v1111, %v1107
        %v1252 = vpack.c.b16 %v1112, %v1108
        %v1253 = vpack.c.b16 %v1117, %v1113
        %v1254 = vpack.c.b16 %v1118, %v1114
        %v1255 = vpack.c.b16 %v1119, %v1115
        %v1256 = vpack.c.b16 %v1120, %v1116
        %v1257 = vpack.c.b16 %v1125, %v1121
        %v1258 = vpack.c.b16 %v1126, %v1122
        %v1259 = vpack.c.b16 %v1127, %v1123
        %v1260 = vpack.c.b16 %v1128, %v1124
        %v1261 = vpack.c.b16 %v1133, %v1129
        %v1262 = vpack.c.b16 %v1134, %v1130
        %v1263 = vpack.c.b16 %v1135, %v1131
        %v1264 = vpack.c.b16 %v1136, %v1132
        %1393 = vmatprep.subr.bf16.mxu0 %v1138
        %1394 = vmatpush1.bf16.msra.mxu0 %v1137
        %1395 = vmatprep.subr.bf16.mxu0 %v1142
        %1396 = vmatpush1.bf16.msra.mxu0 %v1141
        %1397 = vmatprep.subr.bf16.mxu0 %v1146
        %1398 = vmatpush1.bf16.msra.mxu0 %v1145
        %1399 = vmatprep.subr.bf16.mxu0 %v1150
        %1400 = vmatpush1.bf16.msra.mxu0 %v1149
        %1401 = vmatprep.subr.bf16.mxu0 %v1154
        %1402 = vmatpush1.bf16.msra.mxu0 %v1153
        %1403 = vmatprep.subr.bf16.mxu0 %v1158
        %1404 = vmatpush1.bf16.msra.mxu0 %v1157
        %1405 = vmatprep.subr.bf16.mxu0 %v1162
        %1406 = vmatpush1.bf16.msra.mxu0 %v1161
        %1407 = vmatprep.subr.bf16.mxu0 %v1166
        %1408 = vmatpush1.bf16.msra.mxu0 %v1165
        %1409 = vmatprep.subr.bf16.mxu0 %v1170
        %1410 = vmatpush1.bf16.msra.mxu0 %v1169
        %1411 = vmatprep.subr.bf16.mxu0 %v1174
        %1412 = vmatpush1.bf16.msra.mxu0 %v1173
        %1413 = vmatprep.subr.bf16.mxu0 %v1178
        %1414 = vmatpush1.bf16.msra.mxu0 %v1177
        %1415 = vmatprep.subr.bf16.mxu0 %v1182
        %1416 = vmatpush1.bf16.msra.mxu0 %v1181
        %1417 = vmatprep.subr.bf16.mxu0 %v1186
        %1418 = vmatpush1.bf16.msra.mxu0 %v1185
        %1419 = vmatprep.subr.bf16.mxu0 %v1190
        %1420 = vmatpush1.bf16.msra.mxu0 %v1189
        %1421 = vmatprep.subr.bf16.mxu0 %v1194
        %1422 = vmatpush1.bf16.msra.mxu0 %v1193
        %1423 = vmatprep.subr.bf16.mxu0 %v1198
        %1424 = vmatpush1.bf16.msra.mxu0 %v1197
        %1425 = vmatprep.mubr.bf16.mxu0 %v724
        %1426 = vmatmul.mubr.bf16.gmra.mrb[0].mxu0 %v712
        %v1427 = vpop.f32.mrb[0].mxu0
        %v1428 = vadd.f32 0.0, %v1427
        %v1429 = vpop.f32.mrb[0].mxu0
        %v1430 = vadd.f32 0.0, %v1429
        %v1431 = vpop.f32.mrb[0].mxu0
        %v1432 = vadd.f32 0.0, %v1431
        %v1433 = vpop.f32.mrb[0].mxu0
        %v1434 = vadd.f32 0.0, %v1433
        %1435 = vdwg.mxu0
        %1436 = vmatprep.subr.bf16.mxu0 %v1202
        %1437 = vmatpush1.bf16.msra.mxu0 %v1201
        %1438 = vmatprep.subr.bf16.mxu0 %v1206
        %1439 = vmatpush1.bf16.msra.mxu0 %v1205
        %1440 = vmatprep.subr.bf16.mxu0 %v1210
        %1441 = vmatpush1.bf16.msra.mxu0 %v1209
        %1442 = vmatprep.subr.bf16.mxu0 %v1214
        %1443 = vmatpush1.bf16.msra.mxu0 %v1213
        %1444 = vmatprep.subr.bf16.mxu0 %v1218
        %1445 = vmatpush1.bf16.msra.mxu0 %v1217
        %1446 = vmatprep.subr.bf16.mxu0 %v1222
        %1447 = vmatpush1.bf16.msra.mxu0 %v1221
        %1448 = vmatprep.subr.bf16.mxu0 %v1226
        %1449 = vmatpush1.bf16.msra.mxu0 %v1225
        %1450 = vmatprep.subr.bf16.mxu0 %v1230
        %1451 = vmatpush1.bf16.msra.mxu0 %v1229
        %1452 = vmatprep.subr.bf16.mxu0 %v1234
        %1453 = vmatpush1.bf16.msra.mxu0 %v1233
        %1454 = vmatprep.subr.bf16.mxu0 %v1238
        %1455 = vmatpush1.bf16.msra.mxu0 %v1237
        %1456 = vmatprep.subr.bf16.mxu0 %v1242
        %1457 = vmatpush1.bf16.msra.mxu0 %v1241
        %1458 = vmatprep.subr.bf16.mxu0 %v1246
        %1459 = vmatpush1.bf16.msra.mxu0 %v1245
        %1460 = vmatprep.subr.bf16.mxu0 %v1250
        %1461 = vmatpush1.bf16.msra.mxu0 %v1249
        %1462 = vmatprep.subr.bf16.mxu0 %v1254
        %1463 = vmatpush1.bf16.msra.mxu0 %v1253
        %1464 = vmatprep.subr.bf16.mxu0 %v1258
        %1465 = vmatpush1.bf16.msra.mxu0 %v1257
        %1466 = vmatprep.subr.bf16.mxu0 %v1262
        %1467 = vmatpush1.bf16.msra.mxu0 %v1261
        %1468 = vmatprep.mubr.bf16.mxu0 %v748
        %1469 = vmatmul.mubr.bf16.gmra.mrb[0].mxu0 %v736
        %v1470 = vpop.f32.mrb[0].mxu0
        %v1471 = vadd.f32 %v1428, %v1470
        %v1472 = vpop.f32.mrb[0].mxu0
        %v1473 = vadd.f32 %v1430, %v1472
        %v1474 = vpop.f32.mrb[0].mxu0
        %v1475 = vadd.f32 %v1432, %v1474
        %v1476 = vpop.f32.mrb[0].mxu0
        %v1477 = vadd.f32 %v1434, %v1476
        %1478 = vdwg.mxu0
        %1479 = vmatprep.subr.bf16.mxu0 %v1140
        %1480 = vmatpush1.bf16.msra.mxu0 %v1139
        %1481 = vmatprep.subr.bf16.mxu0 %v1144
        %1482 = vmatpush1.bf16.msra.mxu0 %v1143
        %1483 = vmatprep.subr.bf16.mxu0 %v1148
        %1484 = vmatpush1.bf16.msra.mxu0 %v1147
        %1485 = vmatprep.subr.bf16.mxu0 %v1152
        %1486 = vmatpush1.bf16.msra.mxu0 %v1151
        %1487 = vmatprep.subr.bf16.mxu0 %v1156
        %1488 = vmatpush1.bf16.msra.mxu0 %v1155
        %1489 = vmatprep.subr.bf16.mxu0 %v1160
        %1490 = vmatpush1.bf16.msra.mxu0 %v1159
        %1491 = vmatprep.subr.bf16.mxu0 %v1164
        %1492 = vmatpush1.bf16.msra.mxu0 %v1163
        %1493 = vmatprep.subr.bf16.mxu0 %v1168
        %1494 = vmatpush1.bf16.msra.mxu0 %v1167
        %1495 = vmatprep.subr.bf16.mxu0 %v1172
        %1496 = vmatpush1.bf16.msra.mxu0 %v1171
        %1497 = vmatprep.subr.bf16.mxu0 %v1176
        %1498 = vmatpush1.bf16.msra.mxu0 %v1175
        %1499 = vmatprep.subr.bf16.mxu0 %v1180
        %1500 = vmatpush1.bf16.msra.mxu0 %v1179
        %1501 = vmatprep.subr.bf16.mxu0 %v1184
        %1502 = vmatpush1.bf16.msra.mxu0 %v1183
        %1503 = vmatprep.subr.bf16.mxu0 %v1188
        %1504 = vmatpush1.bf16.msra.mxu0 %v1187
        %1505 = vmatprep.subr.bf16.mxu0 %v1192
        %1506 = vmatpush1.bf16.msra.mxu0 %v1191
        %1507 = vmatprep.subr.bf16.mxu0 %v1196
        %1508 = vmatpush1.bf16.msra.mxu0 %v1195
        %1509 = vmatprep.subr.bf16.mxu0 %v1200
        %1510 = vmatpush1.bf16.msra.mxu0 %v1199
        %1511 = vmatprep.mubr.bf16.mxu0 %v724
        %1512 = vmatmul.mubr.bf16.gmra.mrb[0].mxu0 %v712
        %v1513 = vpop.f32.mrb[0].mxu0
        %v1514 = vadd.f32 0.0, %v1513
        %v1515 = vpop.f32.mrb[0].mxu0
        %v1516 = vadd.f32 0.0, %v1515
        %v1517 = vpop.f32.mrb[0].mxu0
        %v1518 = vadd.f32 0.0, %v1517
        %v1519 = vpop.f32.mrb[0].mxu0
        %v1520 = vadd.f32 0.0, %v1519
        %1521 = vdwg.mxu0
        %1522 = vmatprep.subr.bf16.mxu0 %v1204
        %1523 = vmatpush1.bf16.msra.mxu0 %v1203
        %1524 = vmatprep.subr.bf16.mxu0 %v1208
        %1525 = vmatpush1.bf16.msra.mxu0 %v1207
        %1526 = vmatprep.subr.bf16.mxu0 %v1212
        %1527 = vmatpush1.bf16.msra.mxu0 %v1211
        %1528 = vmatprep.subr.bf16.mxu0 %v1216
        %1529 = vmatpush1.bf16.msra.mxu0 %v1215
        %1530 = vmatprep.subr.bf16.mxu0 %v1220
        %1531 = vmatpush1.bf16.msra.mxu0 %v1219
        %1532 = vmatprep.subr.bf16.mxu0 %v1224
        %1533 = vmatpush1.bf16.msra.mxu0 %v1223
        %1534 = vmatprep.subr.bf16.mxu0 %v1228
        %1535 = vmatpush1.bf16.msra.mxu0 %v1227
        %1536 = vmatprep.subr.bf16.mxu0 %v1232
        %1537 = vmatpush1.bf16.msra.mxu0 %v1231
        %1538 = vmatprep.subr.bf16.mxu0 %v1236
        %1539 = vmatpush1.bf16.msra.mxu0 %v1235
        %1540 = vmatprep.subr.bf16.mxu0 %v1240
        %1541 = vmatpush1.bf16.msra.mxu0 %v1239
        %1542 = vmatprep.subr.bf16.mxu0 %v1244
        %1543 = vmatpush1.bf16.msra.mxu0 %v1243
        %1544 = vmatprep.subr.bf16.mxu0 %v1248
        %1545 = vmatpush1.bf16.msra.mxu0 %v1247
        %1546 = vmatprep.subr.bf16.mxu0 %v1252
        %1547 = vmatpush1.bf16.msra.mxu0 %v1251
        %1548 = vmatprep.subr.bf16.mxu0 %v1256
        %1549 = vmatpush1.bf16.msra.mxu0 %v1255
        %1550 = vmatprep.subr.bf16.mxu0 %v1260
        %1551 = vmatpush1.bf16.msra.mxu0 %v1259
        %1552 = vmatprep.subr.bf16.mxu0 %v1264
        %1553 = vmatpush1.bf16.msra.mxu0 %v1263
        %1554 = vmatprep.mubr.bf16.mxu0 %v748
        %1555 = vmatmul.mubr.bf16.gmra.mrb[0].mxu0 %v736
        %v1556 = vpop.f32.mrb[0].mxu0
        %v1557 = vadd.f32 %v1514, %v1556
        %v1558 = vpop.f32.mrb[0].mxu0
        %v1559 = vadd.f32 %v1516, %v1558
        %v1560 = vpop.f32.mrb[0].mxu0
        %v1561 = vadd.f32 %v1518, %v1560
        %v1562 = vpop.f32.mrb[0].mxu0
        %v1563 = vadd.f32 %v1520, %v1562
        %1564 = vdwg.mxu0
        %v1697 = vunpack.c.l.b16 %v415
        %v1698 = vunpack.c.h.b16 %v415
        %v1699 = vunpack.c.l.b16 %v416
        %v1700 = vunpack.c.h.b16 %v416
        %v1701 = vunpack.c.l.b16 %v417
        %v1702 = vunpack.c.h.b16 %v417
        %v1703 = vunpack.c.l.b16 %v418
        %v1704 = vunpack.c.h.b16 %v418
        %v1705 = vunpack.c.l.b16 %v419
        %v1706 = vunpack.c.h.b16 %v419
        %v1707 = vunpack.c.l.b16 %v420
        %v1708 = vunpack.c.h.b16 %v420
        %v1709 = vunpack.c.l.b16 %v421
        %v1710 = vunpack.c.h.b16 %v421
        %v1711 = vunpack.c.l.b16 %v422
        %v1712 = vunpack.c.h.b16 %v422
        %v1713 = vunpack.c.l.b16 %v423
        %v1714 = vunpack.c.h.b16 %v423
        %v1715 = vunpack.c.l.b16 %v424
        %v1716 = vunpack.c.h.b16 %v424
        %v1717 = vunpack.c.l.b16 %v425
        %v1718 = vunpack.c.h.b16 %v425
        %v1719 = vunpack.c.l.b16 %v426
        %v1720 = vunpack.c.h.b16 %v426
        %v1721 = vunpack.c.l.b16 %v427
        %v1722 = vunpack.c.h.b16 %v427
        %v1723 = vunpack.c.l.b16 %v428
        %v1724 = vunpack.c.h.b16 %v428
        %v1725 = vunpack.c.l.b16 %v429
        %v1726 = vunpack.c.h.b16 %v429
        %v1727 = vunpack.c.l.b16 %v430
        %v1728 = vunpack.c.h.b16 %v430
        %v1729 = vunpack.c.l.b16 %v431
        %v1730 = vunpack.c.h.b16 %v431
        %v1731 = vunpack.c.l.b16 %v432
        %v1732 = vunpack.c.h.b16 %v432
        %v1733 = vunpack.c.l.b16 %v433
        %v1734 = vunpack.c.h.b16 %v433
        %v1735 = vunpack.c.l.b16 %v434
        %v1736 = vunpack.c.h.b16 %v434
        %v1737 = vunpack.c.l.b16 %v435
        %v1738 = vunpack.c.h.b16 %v435
        %v1739 = vunpack.c.l.b16 %v436
        %v1740 = vunpack.c.h.b16 %v436
        %v1741 = vunpack.c.l.b16 %v437
        %v1742 = vunpack.c.h.b16 %v437
        %v1743 = vunpack.c.l.b16 %v438
        %v1744 = vunpack.c.h.b16 %v438
        %v1745 = vunpack.c.l.b16 %v439
        %v1746 = vunpack.c.h.b16 %v439
        %v1747 = vunpack.c.l.b16 %v440
        %v1748 = vunpack.c.h.b16 %v440
        %v1749 = vunpack.c.l.b16 %v441
        %v1750 = vunpack.c.h.b16 %v441
        %v1751 = vunpack.c.l.b16 %v442
        %v1752 = vunpack.c.h.b16 %v442
        %v1753 = vunpack.c.l.b16 %v443
        %v1754 = vunpack.c.h.b16 %v443
        %v1755 = vunpack.c.l.b16 %v444
        %v1756 = vunpack.c.h.b16 %v444
        %v1757 = vunpack.c.l.b16 %v445
        %v1758 = vunpack.c.h.b16 %v445
        %v1759 = vunpack.c.l.b16 %v446
        %v1760 = vunpack.c.h.b16 %v446
        %v1761 = vunpack.c.l.b16 %v447
        %v1762 = vunpack.c.h.b16 %v447
        %v1763 = vunpack.c.l.b16 %v448
        %v1764 = vunpack.c.h.b16 %v448
        %v1765 = vunpack.c.l.b16 %v449
        %v1766 = vunpack.c.h.b16 %v449
        %v1767 = vunpack.c.l.b16 %v450
        %v1768 = vunpack.c.h.b16 %v450
        %v1769 = vunpack.c.l.b16 %v451
        %v1770 = vunpack.c.h.b16 %v451
        %v1771 = vunpack.c.l.b16 %v452
        %v1772 = vunpack.c.h.b16 %v452
        %v1773 = vunpack.c.l.b16 %v453
        %v1774 = vunpack.c.h.b16 %v453
        %v1775 = vunpack.c.l.b16 %v454
        %v1776 = vunpack.c.h.b16 %v454
        %v1777 = vunpack.c.l.b16 %v455
        %v1778 = vunpack.c.h.b16 %v455
        %v1779 = vunpack.c.l.b16 %v456
        %v1780 = vunpack.c.h.b16 %v456
        %v1781 = vunpack.c.l.b16 %v457
        %v1782 = vunpack.c.h.b16 %v457
        %v1783 = vunpack.c.l.b16 %v458
        %v1784 = vunpack.c.h.b16 %v458
        %v1785 = vunpack.c.l.b16 %v459
        %v1786 = vunpack.c.h.b16 %v459
        %v1787 = vunpack.c.l.b16 %v460
        %v1788 = vunpack.c.h.b16 %v460
        %v1789 = vunpack.c.l.b16 %v461
        %v1790 = vunpack.c.h.b16 %v461
        %v1791 = vunpack.c.l.b16 %v462
        %v1792 = vunpack.c.h.b16 %v462
        %v1793 = vunpack.c.l.b16 %v463
        %v1794 = vunpack.c.h.b16 %v463
        %v1795 = vunpack.c.l.b16 %v464
        %v1796 = vunpack.c.h.b16 %v464
        %v1797 = vunpack.c.l.b16 %v465
        %v1798 = vunpack.c.h.b16 %v465
        %v1799 = vunpack.c.l.b16 %v466
        %v1800 = vunpack.c.h.b16 %v466
        %v1801 = vunpack.c.l.b16 %v467
        %v1802 = vunpack.c.h.b16 %v467
        %v1803 = vunpack.c.l.b16 %v468
        %v1804 = vunpack.c.h.b16 %v468
        %v1805 = vunpack.c.l.b16 %v469
        %v1806 = vunpack.c.h.b16 %v469
        %v1807 = vunpack.c.l.b16 %v470
        %v1808 = vunpack.c.h.b16 %v470
        %v1809 = vunpack.c.l.b16 %v471
        %v1810 = vunpack.c.h.b16 %v471
        %v1811 = vunpack.c.l.b16 %v472
        %v1812 = vunpack.c.h.b16 %v472
        %v1813 = vunpack.c.l.b16 %v473
        %v1814 = vunpack.c.h.b16 %v473
        %v1815 = vunpack.c.l.b16 %v474
        %v1816 = vunpack.c.h.b16 %v474
        %v1817 = vunpack.c.l.b16 %v475
        %v1818 = vunpack.c.h.b16 %v475
        %v1819 = vunpack.c.l.b16 %v476
        %v1820 = vunpack.c.h.b16 %v476
        %v1821 = vunpack.c.l.b16 %v477
        %v1822 = vunpack.c.h.b16 %v477
        %v1823 = vunpack.c.l.b16 %v478
        %v1824 = vunpack.c.h.b16 %v478
        %v1825 = vunpack.c.l.b16 %v479
        %v1826 = vunpack.c.h.b16 %v479
        %v1827 = vunpack.c.l.b16 %v480
        %v1828 = vunpack.c.h.b16 %v480
        %v1829 = vunpack.c.l.b16 %v481
        %v1830 = vunpack.c.h.b16 %v481
        %v1831 = vunpack.c.l.b16 %v482
        %v1832 = vunpack.c.h.b16 %v482
        %v1833 = vunpack.c.l.b16 %v483
        %v1834 = vunpack.c.h.b16 %v483
        %v1835 = vunpack.c.l.b16 %v484
        %v1836 = vunpack.c.h.b16 %v484
        %v1837 = vunpack.c.l.b16 %v485
        %v1838 = vunpack.c.h.b16 %v485
        %v1839 = vunpack.c.l.b16 %v486
        %v1840 = vunpack.c.h.b16 %v486
        %v1841 = vunpack.c.l.b16 %v487
        %v1842 = vunpack.c.h.b16 %v487
        %v1843 = vunpack.c.l.b16 %v488
        %v1844 = vunpack.c.h.b16 %v488
        %v1845 = vunpack.c.l.b16 %v489
        %v1846 = vunpack.c.h.b16 %v489
        %v1847 = vunpack.c.l.b16 %v490
        %v1848 = vunpack.c.h.b16 %v490
        %v1849 = vunpack.c.l.b16 %v491
        %v1850 = vunpack.c.h.b16 %v491
        %v1851 = vunpack.c.l.b16 %v492
        %v1852 = vunpack.c.h.b16 %v492
        %v1853 = vunpack.c.l.b16 %v493
        %v1854 = vunpack.c.h.b16 %v493
        %v1855 = vunpack.c.l.b16 %v494
        %v1856 = vunpack.c.h.b16 %v494
        %v1857 = vunpack.c.l.b16 %v495
        %v1858 = vunpack.c.h.b16 %v495
        %v1859 = vunpack.c.l.b16 %v496
        %v1860 = vunpack.c.h.b16 %v496
        %v1861 = vunpack.c.l.b16 %v497
        %v1862 = vunpack.c.h.b16 %v497
        %v1863 = vunpack.c.l.b16 %v498
        %v1864 = vunpack.c.h.b16 %v498
        %v1865 = vunpack.c.l.b16 %v499
        %v1866 = vunpack.c.h.b16 %v499
        %v1867 = vunpack.c.l.b16 %v500
        %v1868 = vunpack.c.h.b16 %v500
        %v1869 = vunpack.c.l.b16 %v501
        %v1870 = vunpack.c.h.b16 %v501
        %v1871 = vunpack.c.l.b16 %v502
        %v1872 = vunpack.c.h.b16 %v502
        %v1873 = vunpack.c.l.b16 %v503
        %v1874 = vunpack.c.h.b16 %v503
        %v1875 = vunpack.c.l.b16 %v504
        %v1876 = vunpack.c.h.b16 %v504
        %v1877 = vunpack.c.l.b16 %v505
        %v1878 = vunpack.c.h.b16 %v505
        %v1879 = vunpack.c.l.b16 %v506
        %v1880 = vunpack.c.h.b16 %v506
        %v1881 = vunpack.c.l.b16 %v507
        %v1882 = vunpack.c.h.b16 %v507
        %v1883 = vunpack.c.l.b16 %v508
        %v1884 = vunpack.c.h.b16 %v508
        %v1885 = vunpack.c.l.b16 %v509
        %v1886 = vunpack.c.h.b16 %v509
        %v1887 = vunpack.c.l.b16 %v510
        %v1888 = vunpack.c.h.b16 %v510
        %v1889 = vunpack.c.l.b16 %v511
        %v1890 = vunpack.c.h.b16 %v511
        %v1891 = vunpack.c.l.b16 %v512
        %v1892 = vunpack.c.h.b16 %v512
        %v1893 = vunpack.c.l.b16 %v513
        %v1894 = vunpack.c.h.b16 %v513
        %v1895 = vunpack.c.l.b16 %v514
        %v1896 = vunpack.c.h.b16 %v514
        %v1897 = vunpack.c.l.b16 %v515
        %v1898 = vunpack.c.h.b16 %v515
        %v1899 = vunpack.c.l.b16 %v516
        %v1900 = vunpack.c.h.b16 %v516
        %v1901 = vunpack.c.l.b16 %v517
        %v1902 = vunpack.c.h.b16 %v517
        %v1903 = vunpack.c.l.b16 %v518
        %v1904 = vunpack.c.h.b16 %v518
        %v1905 = vunpack.c.l.b16 %v519
        %v1906 = vunpack.c.h.b16 %v519
        %v1907 = vunpack.c.l.b16 %v520
        %v1908 = vunpack.c.h.b16 %v520
        %v1909 = vunpack.c.l.b16 %v521
        %v1910 = vunpack.c.h.b16 %v521
        %v1911 = vunpack.c.l.b16 %v522
        %v1912 = vunpack.c.h.b16 %v522
        %v1913 = vunpack.c.l.b16 %v523
        %v1914 = vunpack.c.h.b16 %v523
        %v1915 = vunpack.c.l.b16 %v524
        %v1916 = vunpack.c.h.b16 %v524
        %v1917 = vunpack.c.l.b16 %v525
        %v1918 = vunpack.c.h.b16 %v525
        %v1919 = vunpack.c.l.b16 %v526
        %v1920 = vunpack.c.h.b16 %v526
        %v1921 = vunpack.c.l.b16 %v527
        %v1922 = vunpack.c.h.b16 %v527
        %v1923 = vunpack.c.l.b16 %v528
        %v1924 = vunpack.c.h.b16 %v528
        %v1925 = vunpack.c.l.b16 %v529
        %v1926 = vunpack.c.h.b16 %v529
        %v1927 = vunpack.c.l.b16 %v530
        %v1928 = vunpack.c.h.b16 %v530
        %v1929 = vunpack.c.l.b16 %v531
        %v1930 = vunpack.c.h.b16 %v531
        %v1931 = vunpack.c.l.b16 %v532
        %v1932 = vunpack.c.h.b16 %v532
        %v1933 = vunpack.c.l.b16 %v533
        %v1934 = vunpack.c.h.b16 %v533
        %v1935 = vunpack.c.l.b16 %v534
        %v1936 = vunpack.c.h.b16 %v534
        %v1937 = vunpack.c.l.b16 %v535
        %v1938 = vunpack.c.h.b16 %v535
        %v1939 = vunpack.c.l.b16 %v536
        %v1940 = vunpack.c.h.b16 %v536
        %v1941 = vunpack.c.l.b16 %v537
        %v1942 = vunpack.c.h.b16 %v537
        %v1943 = vunpack.c.l.b16 %v538
        %v1944 = vunpack.c.h.b16 %v538
        %v1945 = vunpack.c.l.b16 %v539
        %v1946 = vunpack.c.h.b16 %v539
        %v1947 = vunpack.c.l.b16 %v540
        %v1948 = vunpack.c.h.b16 %v540
        %v1949 = vunpack.c.l.b16 %v541
        %v1950 = vunpack.c.h.b16 %v541
        %v1951 = vunpack.c.l.b16 %v542
        %v1952 = vunpack.c.h.b16 %v542
        %v1953 = vpack.c.b16 %v1701, %v1697
        %v1954 = vpack.c.b16 %v1702, %v1698
        %v1955 = vpack.c.b16 %v1703, %v1699
        %v1956 = vpack.c.b16 %v1704, %v1700
        %v1957 = vpack.c.b16 %v1709, %v1705
        %v1958 = vpack.c.b16 %v1710, %v1706
        %v1959 = vpack.c.b16 %v1711, %v1707
        %v1960 = vpack.c.b16 %v1712, %v1708
        %v1961 = vpack.c.b16 %v1717, %v1713
        %v1962 = vpack.c.b16 %v1718, %v1714
        %v1963 = vpack.c.b16 %v1719, %v1715
        %v1964 = vpack.c.b16 %v1720, %v1716
        %v1965 = vpack.c.b16 %v1725, %v1721
        %v1966 = vpack.c.b16 %v1726, %v1722
        %v1967 = vpack.c.b16 %v1727, %v1723
        %v1968 = vpack.c.b16 %v1728, %v1724
        %v1969 = vpack.c.b16 %v1733, %v1729
        %v1970 = vpack.c.b16 %v1734, %v1730
        %v1971 = vpack.c.b16 %v1735, %v1731
        %v1972 = vpack.c.b16 %v1736, %v1732
        %v1973 = vpack.c.b16 %v1741, %v1737
        %v1974 = vpack.c.b16 %v1742, %v1738
        %v1975 = vpack.c.b16 %v1743, %v1739
        %v1976 = vpack.c.b16 %v1744, %v1740
        %v1977 = vpack.c.b16 %v1749, %v1745
        %v1978 = vpack.c.b16 %v1750, %v1746
        %v1979 = vpack.c.b16 %v1751, %v1747
        %v1980 = vpack.c.b16 %v1752, %v1748
        %v1981 = vpack.c.b16 %v1757, %v1753
        %v1982 = vpack.c.b16 %v1758, %v1754
        %v1983 = vpack.c.b16 %v1759, %v1755
        %v1984 = vpack.c.b16 %v1760, %v1756
        %v1985 = vpack.c.b16 %v1765, %v1761
        %v1986 = vpack.c.b16 %v1766, %v1762
        %v1987 = vpack.c.b16 %v1767, %v1763
        %v1988 = vpack.c.b16 %v1768, %v1764
        %v1989 = vpack.c.b16 %v1773, %v1769
        %v1990 = vpack.c.b16 %v1774, %v1770
        %v1991 = vpack.c.b16 %v1775, %v1771
        %v1992 = vpack.c.b16 %v1776, %v1772
        %v1993 = vpack.c.b16 %v1781, %v1777
        %v1994 = vpack.c.b16 %v1782, %v1778
        %v1995 = vpack.c.b16 %v1783, %v1779
        %v1996 = vpack.c.b16 %v1784, %v1780
        %v1997 = vpack.c.b16 %v1789, %v1785
        %v1998 = vpack.c.b16 %v1790, %v1786
        %v1999 = vpack.c.b16 %v1791, %v1787
        %v2000 = vpack.c.b16 %v1792, %v1788
        %v2001 = vpack.c.b16 %v1797, %v1793
        %v2002 = vpack.c.b16 %v1798, %v1794
        %v2003 = vpack.c.b16 %v1799, %v1795
        %v2004 = vpack.c.b16 %v1800, %v1796
        %v2005 = vpack.c.b16 %v1805, %v1801
        %v2006 = vpack.c.b16 %v1806, %v1802
        %v2007 = vpack.c.b16 %v1807, %v1803
        %v2008 = vpack.c.b16 %v1808, %v1804
        %v2009 = vpack.c.b16 %v1813, %v1809
        %v2010 = vpack.c.b16 %v1814, %v1810
        %v2011 = vpack.c.b16 %v1815, %v1811
        %v2012 = vpack.c.b16 %v1816, %v1812
        %v2013 = vpack.c.b16 %v1821, %v1817
        %v2014 = vpack.c.b16 %v1822, %v1818
        %v2015 = vpack.c.b16 %v1823, %v1819
        %v2016 = vpack.c.b16 %v1824, %v1820
        %v2017 = vpack.c.b16 %v1829, %v1825
        %v2018 = vpack.c.b16 %v1830, %v1826
        %v2019 = vpack.c.b16 %v1831, %v1827
        %v2020 = vpack.c.b16 %v1832, %v1828
        %v2021 = vpack.c.b16 %v1837, %v1833
        %v2022 = vpack.c.b16 %v1838, %v1834
        %v2023 = vpack.c.b16 %v1839, %v1835
        %v2024 = vpack.c.b16 %v1840, %v1836
        %v2025 = vpack.c.b16 %v1845, %v1841
        %v2026 = vpack.c.b16 %v1846, %v1842
        %v2027 = vpack.c.b16 %v1847, %v1843
        %v2028 = vpack.c.b16 %v1848, %v1844
        %v2029 = vpack.c.b16 %v1853, %v1849
        %v2030 = vpack.c.b16 %v1854, %v1850
        %v2031 = vpack.c.b16 %v1855, %v1851
        %v2032 = vpack.c.b16 %v1856, %v1852
        %v2033 = vpack.c.b16 %v1861, %v1857
        %v2034 = vpack.c.b16 %v1862, %v1858
        %v2035 = vpack.c.b16 %v1863, %v1859
        %v2036 = vpack.c.b16 %v1864, %v1860
        %v2037 = vpack.c.b16 %v1869, %v1865
        %v2038 = vpack.c.b16 %v1870, %v1866
        %v2039 = vpack.c.b16 %v1871, %v1867
        %v2040 = vpack.c.b16 %v1872, %v1868
        %v2041 = vpack.c.b16 %v1877, %v1873
        %v2042 = vpack.c.b16 %v1878, %v1874
        %v2043 = vpack.c.b16 %v1879, %v1875
        %v2044 = vpack.c.b16 %v1880, %v1876
        %v2045 = vpack.c.b16 %v1885, %v1881
        %v2046 = vpack.c.b16 %v1886, %v1882
        %v2047 = vpack.c.b16 %v1887, %v1883
        %v2048 = vpack.c.b16 %v1888, %v1884
        %v2049 = vpack.c.b16 %v1893, %v1889
        %v2050 = vpack.c.b16 %v1894, %v1890
        %v2051 = vpack.c.b16 %v1895, %v1891
        %v2052 = vpack.c.b16 %v1896, %v1892
        %v2053 = vpack.c.b16 %v1901, %v1897
        %v2054 = vpack.c.b16 %v1902, %v1898
        %v2055 = vpack.c.b16 %v1903, %v1899
        %v2056 = vpack.c.b16 %v1904, %v1900
        %v2057 = vpack.c.b16 %v1909, %v1905
        %v2058 = vpack.c.b16 %v1910, %v1906
        %v2059 = vpack.c.b16 %v1911, %v1907
        %v2060 = vpack.c.b16 %v1912, %v1908
        %v2061 = vpack.c.b16 %v1917, %v1913
        %v2062 = vpack.c.b16 %v1918, %v1914
        %v2063 = vpack.c.b16 %v1919, %v1915
        %v2064 = vpack.c.b16 %v1920, %v1916
        %v2065 = vpack.c.b16 %v1925, %v1921
        %v2066 = vpack.c.b16 %v1926, %v1922
        %v2067 = vpack.c.b16 %v1927, %v1923
        %v2068 = vpack.c.b16 %v1928, %v1924
        %v2069 = vpack.c.b16 %v1933, %v1929
        %v2070 = vpack.c.b16 %v1934, %v1930
        %v2071 = vpack.c.b16 %v1935, %v1931
        %v2072 = vpack.c.b16 %v1936, %v1932
        %v2073 = vpack.c.b16 %v1941, %v1937
        %v2074 = vpack.c.b16 %v1942, %v1938
        %v2075 = vpack.c.b16 %v1943, %v1939
        %v2076 = vpack.c.b16 %v1944, %v1940
        %v2077 = vpack.c.b16 %v1949, %v1945
        %v2078 = vpack.c.b16 %v1950, %v1946
        %v2079 = vpack.c.b16 %v1951, %v1947
        %v2080 = vpack.c.b16 %v1952, %v1948
        %2209 = vmatprep.subr.bf16.mxu0 %v1954
        %2210 = vmatpush1.bf16.msra.mxu0 %v1953
        %2211 = vmatprep.subr.bf16.mxu0 %v1958
        %2212 = vmatpush1.bf16.msra.mxu0 %v1957
        %2213 = vmatprep.subr.bf16.mxu0 %v1962
        %2214 = vmatpush1.bf16.msra.mxu0 %v1961
        %2215 = vmatprep.subr.bf16.mxu0 %v1966
        %2216 = vmatpush1.bf16.msra.mxu0 %v1965
        %2217 = vmatprep.subr.bf16.mxu0 %v1970
        %2218 = vmatpush1.bf16.msra.mxu0 %v1969
        %2219 = vmatprep.subr.bf16.mxu0 %v1974
        %2220 = vmatpush1.bf16.msra.mxu0 %v1973
        %2221 = vmatprep.subr.bf16.mxu0 %v1978
        %2222 = vmatpush1.bf16.msra.mxu0 %v1977
        %2223 = vmatprep.subr.bf16.mxu0 %v1982
        %2224 = vmatpush1.bf16.msra.mxu0 %v1981
        %2225 = vmatprep.subr.bf16.mxu0 %v1986
        %2226 = vmatpush1.bf16.msra.mxu0 %v1985
        %2227 = vmatprep.subr.bf16.mxu0 %v1990
        %2228 = vmatpush1.bf16.msra.mxu0 %v1989
        %2229 = vmatprep.subr.bf16.mxu0 %v1994
        %2230 = vmatpush1.bf16.msra.mxu0 %v1993
        %2231 = vmatprep.subr.bf16.mxu0 %v1998
        %2232 = vmatpush1.bf16.msra.mxu0 %v1997
        %2233 = vmatprep.subr.bf16.mxu0 %v2002
        %2234 = vmatpush1.bf16.msra.mxu0 %v2001
        %2235 = vmatprep.subr.bf16.mxu0 %v2006
        %2236 = vmatpush1.bf16.msra.mxu0 %v2005
        %2237 = vmatprep.subr.bf16.mxu0 %v2010
        %2238 = vmatpush1.bf16.msra.mxu0 %v2009
        %2239 = vmatprep.subr.bf16.mxu0 %v2014
        %2240 = vmatpush1.bf16.msra.mxu0 %v2013
        %2241 = vmatprep.mubr.bf16.mxu0 %v693
        %2242 = vmatmul.mubr.bf16.gmra.mrb[0].mxu0 %v692
        %v2243 = vpop.f32.mrb[0].mxu0
        %v2244 = vadd.f32 %v1471, %v2243
        %v2245 = vpop.f32.mrb[0].mxu0
        %v2246 = vadd.f32 %v1473, %v2245
        %v2247 = vpop.f32.mrb[0].mxu0
        %v2248 = vadd.f32 %v1475, %v2247
        %v2249 = vpop.f32.mrb[0].mxu0
        %v2250 = vadd.f32 %v1477, %v2249
        %2251 = vdwg.mxu0
        %2252 = vmatprep.subr.bf16.mxu0 %v2018
        %2253 = vmatpush1.bf16.msra.mxu0 %v2017
        %2254 = vmatprep.subr.bf16.mxu0 %v2022
        %2255 = vmatpush1.bf16.msra.mxu0 %v2021
        %2256 = vmatprep.subr.bf16.mxu0 %v2026
        %2257 = vmatpush1.bf16.msra.mxu0 %v2025
        %2258 = vmatprep.subr.bf16.mxu0 %v2030
        %2259 = vmatpush1.bf16.msra.mxu0 %v2029
        %2260 = vmatprep.subr.bf16.mxu0 %v2034
        %2261 = vmatpush1.bf16.msra.mxu0 %v2033
        %2262 = vmatprep.subr.bf16.mxu0 %v2038
        %2263 = vmatpush1.bf16.msra.mxu0 %v2037
        %2264 = vmatprep.subr.bf16.mxu0 %v2042
        %2265 = vmatpush1.bf16.msra.mxu0 %v2041
        %2266 = vmatprep.subr.bf16.mxu0 %v2046
        %2267 = vmatpush1.bf16.msra.mxu0 %v2045
        %2268 = vmatprep.subr.bf16.mxu0 %v2050
        %2269 = vmatpush1.bf16.msra.mxu0 %v2049
        %2270 = vmatprep.subr.bf16.mxu0 %v2054
        %2271 = vmatpush1.bf16.msra.mxu0 %v2053
        %2272 = vmatprep.subr.bf16.mxu0 %v2058
        %2273 = vmatpush1.bf16.msra.mxu0 %v2057
        %2274 = vmatprep.subr.bf16.mxu0 %v2062
        %2275 = vmatpush1.bf16.msra.mxu0 %v2061
        %2276 = vmatprep.subr.bf16.mxu0 %v2066
        %2277 = vmatpush1.bf16.msra.mxu0 %v2065
        %2278 = vmatprep.subr.bf16.mxu0 %v2070
        %2279 = vmatpush1.bf16.msra.mxu0 %v2069
        %2280 = vmatprep.subr.bf16.mxu0 %v2074
        %2281 = vmatpush1.bf16.msra.mxu0 %v2073
        %2282 = vmatprep.subr.bf16.mxu0 %v2078
        %2283 = vmatpush1.bf16.msra.mxu0 %v2077
        %2284 = vmatprep.mubr.bf16.mxu0 %v695
        %2285 = vmatmul.mubr.bf16.gmra.mrb[0].mxu0 %v694
        %v2286 = vpop.f32.mrb[0].mxu0
        %v2287 = vadd.f32 %v2244, %v2286
        %v2288 = vpop.f32.mrb[0].mxu0
        %v2289 = vadd.f32 %v2246, %v2288
        %v2290 = vpop.f32.mrb[0].mxu0
        %v2291 = vadd.f32 %v2248, %v2290
        %v2292 = vpop.f32.mrb[0].mxu0
        %v2293 = vadd.f32 %v2250, %v2292
        %2294 = vdwg.mxu0
        %2295 = vmatprep.subr.bf16.mxu0 %v1956
        %2296 = vmatpush1.bf16.msra.mxu0 %v1955
        %2297 = vmatprep.subr.bf16.mxu0 %v1960
        %2298 = vmatpush1.bf16.msra.mxu0 %v1959
        %2299 = vmatprep.subr.bf16.mxu0 %v1964
        %2300 = vmatpush1.bf16.msra.mxu0 %v1963
        %2301 = vmatprep.subr.bf16.mxu0 %v1968
        %2302 = vmatpush1.bf16.msra.mxu0 %v1967
        %2303 = vmatprep.subr.bf16.mxu0 %v1972
        %2304 = vmatpush1.bf16.msra.mxu0 %v1971
        %2305 = vmatprep.subr.bf16.mxu0 %v1976
        %2306 = vmatpush1.bf16.msra.mxu0 %v1975
        %2307 = vmatprep.subr.bf16.mxu0 %v1980
        %2308 = vmatpush1.bf16.msra.mxu0 %v1979
        %2309 = vmatprep.subr.bf16.mxu0 %v1984
        %2310 = vmatpush1.bf16.msra.mxu0 %v1983
        %2311 = vmatprep.subr.bf16.mxu0 %v1988
        %2312 = vmatpush1.bf16.msra.mxu0 %v1987
        %2313 = vmatprep.subr.bf16.mxu0 %v1992
        %2314 = vmatpush1.bf16.msra.mxu0 %v1991
        %2315 = vmatprep.subr.bf16.mxu0 %v1996
        %2316 = vmatpush1.bf16.msra.mxu0 %v1995
        %2317 = vmatprep.subr.bf16.mxu0 %v2000
        %2318 = vmatpush1.bf16.msra.mxu0 %v1999
        %2319 = vmatprep.subr.bf16.mxu0 %v2004
        %2320 = vmatpush1.bf16.msra.mxu0 %v2003
        %2321 = vmatprep.subr.bf16.mxu0 %v2008
        %2322 = vmatpush1.bf16.msra.mxu0 %v2007
        %2323 = vmatprep.subr.bf16.mxu0 %v2012
        %2324 = vmatpush1.bf16.msra.mxu0 %v2011
        %2325 = vmatprep.subr.bf16.mxu0 %v2016
        %2326 = vmatpush1.bf16.msra.mxu0 %v2015
        %2327 = vmatprep.mubr.bf16.mxu0 %v693
        %2328 = vmatmul.mubr.bf16.gmra.mrb[0].mxu0 %v692
        %v2329 = vpop.f32.mrb[0].mxu0
        %v2330 = vadd.f32 %v1557, %v2329
        %v2331 = vpop.f32.mrb[0].mxu0
        %v2332 = vadd.f32 %v1559, %v2331
        %v2333 = vpop.f32.mrb[0].mxu0
        %v2334 = vadd.f32 %v1561, %v2333
        %v2335 = vpop.f32.mrb[0].mxu0
        %v2336 = vadd.f32 %v1563, %v2335
        %2337 = vdwg.mxu0
        %2338 = vmatprep.subr.bf16.mxu0 %v2020
        %2339 = vmatpush1.bf16.msra.mxu0 %v2019
        %2340 = vmatprep.subr.bf16.mxu0 %v2024
        %2341 = vmatpush1.bf16.msra.mxu0 %v2023
        %2342 = vmatprep.subr.bf16.mxu0 %v2028
        %2343 = vmatpush1.bf16.msra.mxu0 %v2027
        %2344 = vmatprep.subr.bf16.mxu0 %v2032
        %2345 = vmatpush1.bf16.msra.mxu0 %v2031
        %2346 = vmatprep.subr.bf16.mxu0 %v2036
        %2347 = vmatpush1.bf16.msra.mxu0 %v2035
        %2348 = vmatprep.subr.bf16.mxu0 %v2040
        %2349 = vmatpush1.bf16.msra.mxu0 %v2039
        %2350 = vmatprep.subr.bf16.mxu0 %v2044
        %2351 = vmatpush1.bf16.msra.mxu0 %v2043
        %2352 = vmatprep.subr.bf16.mxu0 %v2048
        %2353 = vmatpush1.bf16.msra.mxu0 %v2047
        %2354 = vmatprep.subr.bf16.mxu0 %v2052
        %2355 = vmatpush1.bf16.msra.mxu0 %v2051
        %2356 = vmatprep.subr.bf16.mxu0 %v2056
        %2357 = vmatpush1.bf16.msra.mxu0 %v2055
        %2358 = vmatprep.subr.bf16.mxu0 %v2060
        %2359 = vmatpush1.bf16.msra.mxu0 %v2059
        %2360 = vmatprep.subr.bf16.mxu0 %v2064
        %2361 = vmatpush1.bf16.msra.mxu0 %v2063
        %2362 = vmatprep.subr.bf16.mxu0 %v2068
        %2363 = vmatpush1.bf16.msra.mxu0 %v2067
        %2364 = vmatprep.subr.bf16.mxu0 %v2072
        %2365 = vmatpush1.bf16.msra.mxu0 %v2071
        %2366 = vmatprep.subr.bf16.mxu0 %v2076
        %2367 = vmatpush1.bf16.msra.mxu0 %v2075
        %2368 = vmatprep.subr.bf16.mxu0 %v2080
        %2369 = vmatpush1.bf16.msra.mxu0 %v2079
        %2370 = vmatprep.mubr.bf16.mxu0 %v695
        %2371 = vmatmul.mubr.bf16.gmra.mrb[0].mxu0 %v694
        %v2372 = vpop.f32.mrb[0].mxu0
        %v2373 = vadd.f32 %v2330, %v2372
        %v2374 = vpop.f32.mrb[0].mxu0
        %v2375 = vadd.f32 %v2332, %v2374
        %v2376 = vpop.f32.mrb[0].mxu0
        %v2377 = vadd.f32 %v2334, %v2376
        %v2378 = vpop.f32.mrb[0].mxu0
        %v2379 = vadd.f32 %v2336, %v2378
        %2380 = vdwg.mxu0
        %v2381 = vld [vmem:[#allocation2] sm:$0xee]
        %v2382 = vld [vmem:[#allocation2 + $0x8] sm:$0xee]
        %s2383 = scalar_lea.vmem [#allocation6], 2048
        %v2384 = vld [vmem:[%s2383] sm:$0xff]
        %v2385 = vld [vmem:[%s2383 + $0x8] sm:$0xff]
        %v2386 = vld [vmem:[%s2383 + $0x10] sm:$0xff]
        %v2387 = vld [vmem:[%s2383 + $0x18] sm:$0xff]
        %v2388 = vld [vmem:[%s2383 + $0x20] sm:$0xff]
        %v2389 = vld [vmem:[%s2383 + $0x28] sm:$0xff]
        %v2390 = vld [vmem:[%s2383 + $0x30] sm:$0xff]
        %v2391 = vld [vmem:[%s2383 + $0x38] sm:$0xff]
        %v2392 = vld [vmem:[%s2383 + $0x40] sm:$0xff]
        %v2393 = vld [vmem:[%s2383 + $0x48] sm:$0xff]
        %v2394 = vld [vmem:[%s2383 + $0x50] sm:$0xff]
        %v2395 = vld [vmem:[%s2383 + $0x58] sm:$0xff]
        %v2396 = vld [vmem:[%s2383 + $0x60] sm:$0xff]
        %v2397 = vld [vmem:[%s2383 + $0x68] sm:$0xff]
        %v2398 = vld [vmem:[%s2383 + $0x70] sm:$0xff]
        %v2399 = vld [vmem:[%s2383 + $0x78] sm:$0xff]
        %v2400 = vld [vmem:[%s2383 + $0x80] sm:$0xff]
        %v2401 = vld [vmem:[%s2383 + $0x88] sm:$0xff]
        %v2402 = vld [vmem:[%s2383 + $0x90] sm:$0xff]
        %v2403 = vld [vmem:[%s2383 + $0x98] sm:$0xff]
        %v2404 = vld [vmem:[%s2383 + $0xa0] sm:$0xff]
        %v2405 = vld [vmem:[%s2383 + $0xa8] sm:$0xff]
        %v2406 = vld [vmem:[%s2383 + $0xb0] sm:$0xff]
        %v2407 = vld [vmem:[%s2383 + $0xb8] sm:$0xff]
        %v2408 = vld [vmem:[%s2383 + $0xc0] sm:$0xff]
        %v2409 = vld [vmem:[%s2383 + $0xc8] sm:$0xff]
        %v2410 = vld [vmem:[%s2383 + $0xd0] sm:$0xff]
        %v2411 = vld [vmem:[%s2383 + $0xd8] sm:$0xff]
        %v2412 = vld [vmem:[%s2383 + $0xe0] sm:$0xff]
        %v2413 = vld [vmem:[%s2383 + $0xe8] sm:$0xff]
        %v2414 = vld [vmem:[%s2383 + $0xf0] sm:$0xff]
        %v2415 = vld [vmem:[%s2383 + $0xf8] sm:$0xff]
        %v2416 = vld [vmem:[%s2383 + $0x100] sm:$0xff]
        %v2417 = vld [vmem:[%s2383 + $0x108] sm:$0xff]
        %v2418 = vld [vmem:[%s2383 + $0x110] sm:$0xff]
        %v2419 = vld [vmem:[%s2383 + $0x118] sm:$0xff]
        %v2420 = vld [vmem:[%s2383 + $0x120] sm:$0xff]
        %v2421 = vld [vmem:[%s2383 + $0x128] sm:$0xff]
        %v2422 = vld [vmem:[%s2383 + $0x130] sm:$0xff]
        %v2423 = vld [vmem:[%s2383 + $0x138] sm:$0xff]
        %v2424 = vld [vmem:[%s2383 + $0x140] sm:$0xff]
        %v2425 = vld [vmem:[%s2383 + $0x148] sm:$0xff]
        %v2426 = vld [vmem:[%s2383 + $0x150] sm:$0xff]
        %v2427 = vld [vmem:[%s2383 + $0x158] sm:$0xff]
        %v2428 = vld [vmem:[%s2383 + $0x160] sm:$0xff]
        %v2429 = vld [vmem:[%s2383 + $0x168] sm:$0xff]
        %v2430 = vld [vmem:[%s2383 + $0x170] sm:$0xff]
        %v2431 = vld [vmem:[%s2383 + $0x178] sm:$0xff]
        %v2432 = vld [vmem:[%s2383 + $0x180] sm:$0xff]
        %v2433 = vld [vmem:[%s2383 + $0x188] sm:$0xff]
        %v2434 = vld [vmem:[%s2383 + $0x190] sm:$0xff]
        %v2435 = vld [vmem:[%s2383 + $0x198] sm:$0xff]
        %v2436 = vld [vmem:[%s2383 + $0x1a0] sm:$0xff]
        %v2437 = vld [vmem:[%s2383 + $0x1a8] sm:$0xff]
        %v2438 = vld [vmem:[%s2383 + $0x1b0] sm:$0xff]
        %v2439 = vld [vmem:[%s2383 + $0x1b8] sm:$0xff]
        %v2440 = vld [vmem:[%s2383 + $0x1c0] sm:$0xff]
        %v2441 = vld [vmem:[%s2383 + $0x1c8] sm:$0xff]
        %v2442 = vld [vmem:[%s2383 + $0x1d0] sm:$0xff]
        %v2443 = vld [vmem:[%s2383 + $0x1d8] sm:$0xff]
        %v2444 = vld [vmem:[%s2383 + $0x1e0] sm:$0xff]
        %v2445 = vld [vmem:[%s2383 + $0x1e8] sm:$0xff]
        %v2446 = vld [vmem:[%s2383 + $0x1f0] sm:$0xff]
        %v2447 = vld [vmem:[%s2383 + $0x1f8] sm:$0xff]
        %v2448 = vld [vmem:[%s2383 + $0x200] sm:$0xff]
        %v2449 = vld [vmem:[%s2383 + $0x208] sm:$0xff]
        %v2450 = vld [vmem:[%s2383 + $0x210] sm:$0xff]
        %v2451 = vld [vmem:[%s2383 + $0x218] sm:$0xff]
        %v2452 = vld [vmem:[%s2383 + $0x220] sm:$0xff]
        %v2453 = vld [vmem:[%s2383 + $0x228] sm:$0xff]
        %v2454 = vld [vmem:[%s2383 + $0x230] sm:$0xff]
        %v2455 = vld [vmem:[%s2383 + $0x238] sm:$0xff]
        %v2456 = vld [vmem:[%s2383 + $0x240] sm:$0xff]
        %v2457 = vld [vmem:[%s2383 + $0x248] sm:$0xff]
        %v2458 = vld [vmem:[%s2383 + $0x250] sm:$0xff]
        %v2459 = vld [vmem:[%s2383 + $0x258] sm:$0xff]
        %v2460 = vld [vmem:[%s2383 + $0x260] sm:$0xff]
        %v2461 = vld [vmem:[%s2383 + $0x268] sm:$0xff]
        %v2462 = vld [vmem:[%s2383 + $0x270] sm:$0xff]
        %v2463 = vld [vmem:[%s2383 + $0x278] sm:$0xff]
        %v2464 = vld [vmem:[%s2383 + $0x280] sm:$0xff]
        %v2465 = vld [vmem:[%s2383 + $0x288] sm:$0xff]
        %v2466 = vld [vmem:[%s2383 + $0x290] sm:$0xff]
        %v2467 = vld [vmem:[%s2383 + $0x298] sm:$0xff]
        %v2468 = vld [vmem:[%s2383 + $0x2a0] sm:$0xff]
        %v2469 = vld [vmem:[%s2383 + $0x2a8] sm:$0xff]
        %v2470 = vld [vmem:[%s2383 + $0x2b0] sm:$0xff]
        %v2471 = vld [vmem:[%s2383 + $0x2b8] sm:$0xff]
        %v2472 = vld [vmem:[%s2383 + $0x2c0] sm:$0xff]
        %v2473 = vld [vmem:[%s2383 + $0x2c8] sm:$0xff]
        %v2474 = vld [vmem:[%s2383 + $0x2d0] sm:$0xff]
        %v2475 = vld [vmem:[%s2383 + $0x2d8] sm:$0xff]
        %v2476 = vld [vmem:[%s2383 + $0x2e0] sm:$0xff]
        %v2477 = vld [vmem:[%s2383 + $0x2e8] sm:$0xff]
        %v2478 = vld [vmem:[%s2383 + $0x2f0] sm:$0xff]
        %v2479 = vld [vmem:[%s2383 + $0x2f8] sm:$0xff]
        %v2480 = vld [vmem:[%s2383 + $0x300] sm:$0xff]
        %v2481 = vld [vmem:[%s2383 + $0x308] sm:$0xff]
        %v2482 = vld [vmem:[%s2383 + $0x310] sm:$0xff]
        %v2483 = vld [vmem:[%s2383 + $0x318] sm:$0xff]
        %v2484 = vld [vmem:[%s2383 + $0x320] sm:$0xff]
        %v2485 = vld [vmem:[%s2383 + $0x328] sm:$0xff]
        %v2486 = vld [vmem:[%s2383 + $0x330] sm:$0xff]
        %v2487 = vld [vmem:[%s2383 + $0x338] sm:$0xff]
        %v2488 = vld [vmem:[%s2383 + $0x340] sm:$0xff]
        %v2489 = vld [vmem:[%s2383 + $0x348] sm:$0xff]
        %v2490 = vld [vmem:[%s2383 + $0x350] sm:$0xff]
        %v2491 = vld [vmem:[%s2383 + $0x358] sm:$0xff]
        %v2492 = vld [vmem:[%s2383 + $0x360] sm:$0xff]
        %v2493 = vld [vmem:[%s2383 + $0x368] sm:$0xff]
        %v2494 = vld [vmem:[%s2383 + $0x370] sm:$0xff]
        %v2495 = vld [vmem:[%s2383 + $0x378] sm:$0xff]
        %v2496 = vld [vmem:[%s2383 + $0x380] sm:$0xff]
        %v2497 = vld [vmem:[%s2383 + $0x388] sm:$0xff]
        %v2498 = vld [vmem:[%s2383 + $0x390] sm:$0xff]
        %v2499 = vld [vmem:[%s2383 + $0x398] sm:$0xff]
        %v2500 = vld [vmem:[%s2383 + $0x3a0] sm:$0xff]
        %v2501 = vld [vmem:[%s2383 + $0x3a8] sm:$0xff]
        %v2502 = vld [vmem:[%s2383 + $0x3b0] sm:$0xff]
        %v2503 = vld [vmem:[%s2383 + $0x3b8] sm:$0xff]
        %v2504 = vld [vmem:[%s2383 + $0x3c0] sm:$0xff]
        %v2505 = vld [vmem:[%s2383 + $0x3c8] sm:$0xff]
        %v2506 = vld [vmem:[%s2383 + $0x3d0] sm:$0xff]
        %v2507 = vld [vmem:[%s2383 + $0x3d8] sm:$0xff]
        %v2508 = vld [vmem:[%s2383 + $0x3e0] sm:$0xff]
        %v2509 = vld [vmem:[%s2383 + $0x3e8] sm:$0xff]
        %v2510 = vld [vmem:[%s2383 + $0x3f0] sm:$0xff]
        %v2511 = vld [vmem:[%s2383 + $0x3f8] sm:$0xff]
        %v2514 = vunpack.c.l.b16 %v2381
        %v2515 = vunpack.c.h.b16 %v2381
        %v2516 = vunpack.c.l.b16 %v2382
        %v2517 = vunpack.c.h.b16 %v2382
        %v2518 = vpack.c.b16 %v684, %v2514
        %v2519 = vpack.c.b16 %v685, %v2515
        %v2520 = vpack.c.b16 %v686, %v2516
        %v2521 = vpack.c.b16 %v687, %v2517
        %vm2522 = vcmask 1046528
        %v2523 = vrot.slane %v2518, 1
        %v2524 = vrot.slane %v696, 1
        %v2525 = vsel %vm2522, %v2523, %v2524
        %v2526 = vrot.slane %v2519, 1
        %v2527 = vrot.slane %v697, 1
        %v2528 = vsel %vm2522, %v2526, %v2527
        %v2529 = vrot.slane %v2520, 1
        %v2530 = vrot.slane %v698, 1
        %v2531 = vsel %vm2522, %v2529, %v2530
        %v2532 = vrot.slane %v2521, 1
        %v2533 = vrot.slane %v699, 1
        %v2534 = vsel %vm2522, %v2532, %v2533
        %v2667 = vunpack.c.l.b16 %v2384
        %v2668 = vunpack.c.h.b16 %v2384
        %v2669 = vunpack.c.l.b16 %v2385
        %v2670 = vunpack.c.h.b16 %v2385
        %v2671 = vunpack.c.l.b16 %v2386
        %v2672 = vunpack.c.h.b16 %v2386
        %v2673 = vunpack.c.l.b16 %v2387
        %v2674 = vunpack.c.h.b16 %v2387
        %v2675 = vunpack.c.l.b16 %v2388
        %v2676 = vunpack.c.h.b16 %v2388
        %v2677 = vunpack.c.l.b16 %v2389
        %v2678 = vunpack.c.h.b16 %v2389
        %v2679 = vunpack.c.l.b16 %v2390
        %v2680 = vunpack.c.h.b16 %v2390
        %v2681 = vunpack.c.l.b16 %v2391
        %v2682 = vunpack.c.h.b16 %v2391
        %v2683 = vunpack.c.l.b16 %v2392
        %v2684 = vunpack.c.h.b16 %v2392
        %v2685 = vunpack.c.l.b16 %v2393
        %v2686 = vunpack.c.h.b16 %v2393
        %v2687 = vunpack.c.l.b16 %v2394
        %v2688 = vunpack.c.h.b16 %v2394
        %v2689 = vunpack.c.l.b16 %v2395
        %v2690 = vunpack.c.h.b16 %v2395
        %v2691 = vunpack.c.l.b16 %v2396
        %v2692 = vunpack.c.h.b16 %v2396
        %v2693 = vunpack.c.l.b16 %v2397
        %v2694 = vunpack.c.h.b16 %v2397
        %v2695 = vunpack.c.l.b16 %v2398
        %v2696 = vunpack.c.h.b16 %v2398
        %v2697 = vunpack.c.l.b16 %v2399
        %v2698 = vunpack.c.h.b16 %v2399
        %v2699 = vunpack.c.l.b16 %v2400
        %v2700 = vunpack.c.h.b16 %v2400
        %v2701 = vunpack.c.l.b16 %v2401
        %v2702 = vunpack.c.h.b16 %v2401
        %v2703 = vunpack.c.l.b16 %v2402
        %v2704 = vunpack.c.h.b16 %v2402
        %v2705 = vunpack.c.l.b16 %v2403
        %v2706 = vunpack.c.h.b16 %v2403
        %v2707 = vunpack.c.l.b16 %v2404
        %v2708 = vunpack.c.h.b16 %v2404
        %v2709 = vunpack.c.l.b16 %v2405
        %v2710 = vunpack.c.h.b16 %v2405
        %v2711 = vunpack.c.l.b16 %v2406
        %v2712 = vunpack.c.h.b16 %v2406
        %v2713 = vunpack.c.l.b16 %v2407
        %v2714 = vunpack.c.h.b16 %v2407
        %v2715 = vunpack.c.l.b16 %v2408
        %v2716 = vunpack.c.h.b16 %v2408
        %v2717 = vunpack.c.l.b16 %v2409
        %v2718 = vunpack.c.h.b16 %v2409
        %v2719 = vunpack.c.l.b16 %v2410
        %v2720 = vunpack.c.h.b16 %v2410
        %v2721 = vunpack.c.l.b16 %v2411
        %v2722 = vunpack.c.h.b16 %v2411
        %v2723 = vunpack.c.l.b16 %v2412
        %v2724 = vunpack.c.h.b16 %v2412
        %v2725 = vunpack.c.l.b16 %v2413
        %v2726 = vunpack.c.h.b16 %v2413
        %v2727 = vunpack.c.l.b16 %v2414
        %v2728 = vunpack.c.h.b16 %v2414
        %v2729 = vunpack.c.l.b16 %v2415
        %v2730 = vunpack.c.h.b16 %v2415
        %v2731 = vunpack.c.l.b16 %v2416
        %v2732 = vunpack.c.h.b16 %v2416
        %v2733 = vunpack.c.l.b16 %v2417
        %v2734 = vunpack.c.h.b16 %v2417
        %v2735 = vunpack.c.l.b16 %v2418
        %v2736 = vunpack.c.h.b16 %v2418
        %v2737 = vunpack.c.l.b16 %v2419
        %v2738 = vunpack.c.h.b16 %v2419
        %v2739 = vunpack.c.l.b16 %v2420
        %v2740 = vunpack.c.h.b16 %v2420
        %v2741 = vunpack.c.l.b16 %v2421
        %v2742 = vunpack.c.h.b16 %v2421
        %v2743 = vunpack.c.l.b16 %v2422
        %v2744 = vunpack.c.h.b16 %v2422
        %v2745 = vunpack.c.l.b16 %v2423
        %v2746 = vunpack.c.h.b16 %v2423
        %v2747 = vunpack.c.l.b16 %v2424
        %v2748 = vunpack.c.h.b16 %v2424
        %v2749 = vunpack.c.l.b16 %v2425
        %v2750 = vunpack.c.h.b16 %v2425
        %v2751 = vunpack.c.l.b16 %v2426
        %v2752 = vunpack.c.h.b16 %v2426
        %v2753 = vunpack.c.l.b16 %v2427
        %v2754 = vunpack.c.h.b16 %v2427
        %v2755 = vunpack.c.l.b16 %v2428
        %v2756 = vunpack.c.h.b16 %v2428
        %v2757 = vunpack.c.l.b16 %v2429
        %v2758 = vunpack.c.h.b16 %v2429
        %v2759 = vunpack.c.l.b16 %v2430
        %v2760 = vunpack.c.h.b16 %v2430
        %v2761 = vunpack.c.l.b16 %v2431
        %v2762 = vunpack.c.h.b16 %v2431
        %v2763 = vunpack.c.l.b16 %v2432
        %v2764 = vunpack.c.h.b16 %v2432
        %v2765 = vunpack.c.l.b16 %v2433
        %v2766 = vunpack.c.h.b16 %v2433
        %v2767 = vunpack.c.l.b16 %v2434
        %v2768 = vunpack.c.h.b16 %v2434
        %v2769 = vunpack.c.l.b16 %v2435
        %v2770 = vunpack.c.h.b16 %v2435
        %v2771 = vunpack.c.l.b16 %v2436
        %v2772 = vunpack.c.h.b16 %v2436
        %v2773 = vunpack.c.l.b16 %v2437
        %v2774 = vunpack.c.h.b16 %v2437
        %v2775 = vunpack.c.l.b16 %v2438
        %v2776 = vunpack.c.h.b16 %v2438
        %v2777 = vunpack.c.l.b16 %v2439
        %v2778 = vunpack.c.h.b16 %v2439
        %v2779 = vunpack.c.l.b16 %v2440
        %v2780 = vunpack.c.h.b16 %v2440
        %v2781 = vunpack.c.l.b16 %v2441
        %v2782 = vunpack.c.h.b16 %v2441
        %v2783 = vunpack.c.l.b16 %v2442
        %v2784 = vunpack.c.h.b16 %v2442
        %v2785 = vunpack.c.l.b16 %v2443
        %v2786 = vunpack.c.h.b16 %v2443
        %v2787 = vunpack.c.l.b16 %v2444
        %v2788 = vunpack.c.h.b16 %v2444
        %v2789 = vunpack.c.l.b16 %v2445
        %v2790 = vunpack.c.h.b16 %v2445
        %v2791 = vunpack.c.l.b16 %v2446
        %v2792 = vunpack.c.h.b16 %v2446
        %v2793 = vunpack.c.l.b16 %v2447
        %v2794 = vunpack.c.h.b16 %v2447
        %v2795 = vunpack.c.l.b16 %v2448
        %v2796 = vunpack.c.h.b16 %v2448
        %v2797 = vunpack.c.l.b16 %v2449
        %v2798 = vunpack.c.h.b16 %v2449
        %v2799 = vunpack.c.l.b16 %v2450
        %v2800 = vunpack.c.h.b16 %v2450
        %v2801 = vunpack.c.l.b16 %v2451
        %v2802 = vunpack.c.h.b16 %v2451
        %v2803 = vunpack.c.l.b16 %v2452
        %v2804 = vunpack.c.h.b16 %v2452
        %v2805 = vunpack.c.l.b16 %v2453
        %v2806 = vunpack.c.h.b16 %v2453
        %v2807 = vunpack.c.l.b16 %v2454
        %v2808 = vunpack.c.h.b16 %v2454
        %v2809 = vunpack.c.l.b16 %v2455
        %v2810 = vunpack.c.h.b16 %v2455
        %v2811 = vunpack.c.l.b16 %v2456
        %v2812 = vunpack.c.h.b16 %v2456
        %v2813 = vunpack.c.l.b16 %v2457
        %v2814 = vunpack.c.h.b16 %v2457
        %v2815 = vunpack.c.l.b16 %v2458
        %v2816 = vunpack.c.h.b16 %v2458
        %v2817 = vunpack.c.l.b16 %v2459
        %v2818 = vunpack.c.h.b16 %v2459
        %v2819 = vunpack.c.l.b16 %v2460
        %v2820 = vunpack.c.h.b16 %v2460
        %v2821 = vunpack.c.l.b16 %v2461
        %v2822 = vunpack.c.h.b16 %v2461
        %v2823 = vunpack.c.l.b16 %v2462
        %v2824 = vunpack.c.h.b16 %v2462
        %v2825 = vunpack.c.l.b16 %v2463
        %v2826 = vunpack.c.h.b16 %v2463
        %v2827 = vunpack.c.l.b16 %v2464
        %v2828 = vunpack.c.h.b16 %v2464
        %v2829 = vunpack.c.l.b16 %v2465
        %v2830 = vunpack.c.h.b16 %v2465
        %v2831 = vunpack.c.l.b16 %v2466
        %v2832 = vunpack.c.h.b16 %v2466
        %v2833 = vunpack.c.l.b16 %v2467
        %v2834 = vunpack.c.h.b16 %v2467
        %v2835 = vunpack.c.l.b16 %v2468
        %v2836 = vunpack.c.h.b16 %v2468
        %v2837 = vunpack.c.l.b16 %v2469
        %v2838 = vunpack.c.h.b16 %v2469
        %v2839 = vunpack.c.l.b16 %v2470
        %v2840 = vunpack.c.h.b16 %v2470
        %v2841 = vunpack.c.l.b16 %v2471
        %v2842 = vunpack.c.h.b16 %v2471
        %v2843 = vunpack.c.l.b16 %v2472
        %v2844 = vunpack.c.h.b16 %v2472
        %v2845 = vunpack.c.l.b16 %v2473
        %v2846 = vunpack.c.h.b16 %v2473
        %v2847 = vunpack.c.l.b16 %v2474
        %v2848 = vunpack.c.h.b16 %v2474
        %v2849 = vunpack.c.l.b16 %v2475
        %v2850 = vunpack.c.h.b16 %v2475
        %v2851 = vunpack.c.l.b16 %v2476
        %v2852 = vunpack.c.h.b16 %v2476
        %v2853 = vunpack.c.l.b16 %v2477
        %v2854 = vunpack.c.h.b16 %v2477
        %v2855 = vunpack.c.l.b16 %v2478
        %v2856 = vunpack.c.h.b16 %v2478
        %v2857 = vunpack.c.l.b16 %v2479
        %v2858 = vunpack.c.h.b16 %v2479
        %v2859 = vunpack.c.l.b16 %v2480
        %v2860 = vunpack.c.h.b16 %v2480
        %v2861 = vunpack.c.l.b16 %v2481
        %v2862 = vunpack.c.h.b16 %v2481
        %v2863 = vunpack.c.l.b16 %v2482
        %v2864 = vunpack.c.h.b16 %v2482
        %v2865 = vunpack.c.l.b16 %v2483
        %v2866 = vunpack.c.h.b16 %v2483
        %v2867 = vunpack.c.l.b16 %v2484
        %v2868 = vunpack.c.h.b16 %v2484
        %v2869 = vunpack.c.l.b16 %v2485
        %v2870 = vunpack.c.h.b16 %v2485
        %v2871 = vunpack.c.l.b16 %v2486
        %v2872 = vunpack.c.h.b16 %v2486
        %v2873 = vunpack.c.l.b16 %v2487
        %v2874 = vunpack.c.h.b16 %v2487
        %v2875 = vunpack.c.l.b16 %v2488
        %v2876 = vunpack.c.h.b16 %v2488
        %v2877 = vunpack.c.l.b16 %v2489
        %v2878 = vunpack.c.h.b16 %v2489
        %v2879 = vunpack.c.l.b16 %v2490
        %v2880 = vunpack.c.h.b16 %v2490
        %v2881 = vunpack.c.l.b16 %v2491
        %v2882 = vunpack.c.h.b16 %v2491
        %v2883 = vunpack.c.l.b16 %v2492
        %v2884 = vunpack.c.h.b16 %v2492
        %v2885 = vunpack.c.l.b16 %v2493
        %v2886 = vunpack.c.h.b16 %v2493
        %v2887 = vunpack.c.l.b16 %v2494
        %v2888 = vunpack.c.h.b16 %v2494
        %v2889 = vunpack.c.l.b16 %v2495
        %v2890 = vunpack.c.h.b16 %v2495
        %v2891 = vunpack.c.l.b16 %v2496
        %v2892 = vunpack.c.h.b16 %v2496
        %v2893 = vunpack.c.l.b16 %v2497
        %v2894 = vunpack.c.h.b16 %v2497
        %v2895 = vunpack.c.l.b16 %v2498
        %v2896 = vunpack.c.h.b16 %v2498
        %v2897 = vunpack.c.l.b16 %v2499
        %v2898 = vunpack.c.h.b16 %v2499
        %v2899 = vunpack.c.l.b16 %v2500
        %v2900 = vunpack.c.h.b16 %v2500
        %v2901 = vunpack.c.l.b16 %v2501
        %v2902 = vunpack.c.h.b16 %v2501
        %v2903 = vunpack.c.l.b16 %v2502
        %v2904 = vunpack.c.h.b16 %v2502
        %v2905 = vunpack.c.l.b16 %v2503
        %v2906 = vunpack.c.h.b16 %v2503
        %v2907 = vunpack.c.l.b16 %v2504
        %v2908 = vunpack.c.h.b16 %v2504
        %v2909 = vunpack.c.l.b16 %v2505
        %v2910 = vunpack.c.h.b16 %v2505
        %v2911 = vunpack.c.l.b16 %v2506
        %v2912 = vunpack.c.h.b16 %v2506
        %v2913 = vunpack.c.l.b16 %v2507
        %v2914 = vunpack.c.h.b16 %v2507
        %v2915 = vunpack.c.l.b16 %v2508
        %v2916 = vunpack.c.h.b16 %v2508
        %v2917 = vunpack.c.l.b16 %v2509
        %v2918 = vunpack.c.h.b16 %v2509
        %v2919 = vunpack.c.l.b16 %v2510
        %v2920 = vunpack.c.h.b16 %v2510
        %v2921 = vunpack.c.l.b16 %v2511
        %v2922 = vunpack.c.h.b16 %v2511
        %v2923 = vpack.c.b16 %v2671, %v2667
        %v2924 = vpack.c.b16 %v2672, %v2668
        %v2925 = vpack.c.b16 %v2673, %v2669
        %v2926 = vpack.c.b16 %v2674, %v2670
        %v2927 = vpack.c.b16 %v2679, %v2675
        %v2928 = vpack.c.b16 %v2680, %v2676
        %v2929 = vpack.c.b16 %v2681, %v2677
        %v2930 = vpack.c.b16 %v2682, %v2678
        %v2931 = vpack.c.b16 %v2687, %v2683
        %v2932 = vpack.c.b16 %v2688, %v2684
        %v2933 = vpack.c.b16 %v2689, %v2685
        %v2934 = vpack.c.b16 %v2690, %v2686
        %v2935 = vpack.c.b16 %v2695, %v2691
        %v2936 = vpack.c.b16 %v2696, %v2692
        %v2937 = vpack.c.b16 %v2697, %v2693
        %v2938 = vpack.c.b16 %v2698, %v2694
        %v2939 = vpack.c.b16 %v2703, %v2699
        %v2940 = vpack.c.b16 %v2704, %v2700
        %v2941 = vpack.c.b16 %v2705, %v2701
        %v2942 = vpack.c.b16 %v2706, %v2702
        %v2943 = vpack.c.b16 %v2711, %v2707
        %v2944 = vpack.c.b16 %v2712, %v2708
        %v2945 = vpack.c.b16 %v2713, %v2709
        %v2946 = vpack.c.b16 %v2714, %v2710
        %v2947 = vpack.c.b16 %v2719, %v2715
        %v2948 = vpack.c.b16 %v2720, %v2716
        %v2949 = vpack.c.b16 %v2721, %v2717
        %v2950 = vpack.c.b16 %v2722, %v2718
        %v2951 = vpack.c.b16 %v2727, %v2723
        %v2952 = vpack.c.b16 %v2728, %v2724
        %v2953 = vpack.c.b16 %v2729, %v2725
        %v2954 = vpack.c.b16 %v2730, %v2726
        %v2955 = vpack.c.b16 %v2735, %v2731
        %v2956 = vpack.c.b16 %v2736, %v2732
        %v2957 = vpack.c.b16 %v2737, %v2733
        %v2958 = vpack.c.b16 %v2738, %v2734
        %v2959 = vpack.c.b16 %v2743, %v2739
        %v2960 = vpack.c.b16 %v2744, %v2740
        %v2961 = vpack.c.b16 %v2745, %v2741
        %v2962 = vpack.c.b16 %v2746, %v2742
        %v2963 = vpack.c.b16 %v2751, %v2747
        %v2964 = vpack.c.b16 %v2752, %v2748
        %v2965 = vpack.c.b16 %v2753, %v2749
        %v2966 = vpack.c.b16 %v2754, %v2750
        %v2967 = vpack.c.b16 %v2759, %v2755
        %v2968 = vpack.c.b16 %v2760, %v2756
        %v2969 = vpack.c.b16 %v2761, %v2757
        %v2970 = vpack.c.b16 %v2762, %v2758
        %v2971 = vpack.c.b16 %v2767, %v2763
        %v2972 = vpack.c.b16 %v2768, %v2764
        %v2973 = vpack.c.b16 %v2769, %v2765
        %v2974 = vpack.c.b16 %v2770, %v2766
        %v2975 = vpack.c.b16 %v2775, %v2771
        %v2976 = vpack.c.b16 %v2776, %v2772
        %v2977 = vpack.c.b16 %v2777, %v2773
        %v2978 = vpack.c.b16 %v2778, %v2774
        %v2979 = vpack.c.b16 %v2783, %v2779
        %v2980 = vpack.c.b16 %v2784, %v2780
        %v2981 = vpack.c.b16 %v2785, %v2781
        %v2982 = vpack.c.b16 %v2786, %v2782
        %v2983 = vpack.c.b16 %v2791, %v2787
        %v2984 = vpack.c.b16 %v2792, %v2788
        %v2985 = vpack.c.b16 %v2793, %v2789
        %v2986 = vpack.c.b16 %v2794, %v2790
        %v2987 = vpack.c.b16 %v2799, %v2795
        %v2988 = vpack.c.b16 %v2800, %v2796
        %v2989 = vpack.c.b16 %v2801, %v2797
        %v2990 = vpack.c.b16 %v2802, %v2798
        %v2991 = vpack.c.b16 %v2807, %v2803
        %v2992 = vpack.c.b16 %v2808, %v2804
        %v2993 = vpack.c.b16 %v2809, %v2805
        %v2994 = vpack.c.b16 %v2810, %v2806
        %v2995 = vpack.c.b16 %v2815, %v2811
        %v2996 = vpack.c.b16 %v2816, %v2812
        %v2997 = vpack.c.b16 %v2817, %v2813
        %v2998 = vpack.c.b16 %v2818, %v2814
        %v2999 = vpack.c.b16 %v2823, %v2819
        %v3000 = vpack.c.b16 %v2824, %v2820
        %v3001 = vpack.c.b16 %v2825, %v2821
        %v3002 = vpack.c.b16 %v2826, %v2822
        %v3003 = vpack.c.b16 %v2831, %v2827
        %v3004 = vpack.c.b16 %v2832, %v2828
        %v3005 = vpack.c.b16 %v2833, %v2829
        %v3006 = vpack.c.b16 %v2834, %v2830
        %v3007 = vpack.c.b16 %v2839, %v2835
        %v3008 = vpack.c.b16 %v2840, %v2836
        %v3009 = vpack.c.b16 %v2841, %v2837
        %v3010 = vpack.c.b16 %v2842, %v2838
        %v3011 = vpack.c.b16 %v2847, %v2843
        %v3012 = vpack.c.b16 %v2848, %v2844
        %v3013 = vpack.c.b16 %v2849, %v2845
        %v3014 = vpack.c.b16 %v2850, %v2846
        %v3015 = vpack.c.b16 %v2855, %v2851
        %v3016 = vpack.c.b16 %v2856, %v2852
        %v3017 = vpack.c.b16 %v2857, %v2853
        %v3018 = vpack.c.b16 %v2858, %v2854
        %v3019 = vpack.c.b16 %v2863, %v2859
        %v3020 = vpack.c.b16 %v2864, %v2860
        %v3021 = vpack.c.b16 %v2865, %v2861
        %v3022 = vpack.c.b16 %v2866, %v2862
        %v3023 = vpack.c.b16 %v2871, %v2867
        %v3024 = vpack.c.b16 %v2872, %v2868
        %v3025 = vpack.c.b16 %v2873, %v2869
        %v3026 = vpack.c.b16 %v2874, %v2870
        %v3027 = vpack.c.b16 %v2879, %v2875
        %v3028 = vpack.c.b16 %v2880, %v2876
        %v3029 = vpack.c.b16 %v2881, %v2877
        %v3030 = vpack.c.b16 %v2882, %v2878
        %v3031 = vpack.c.b16 %v2887, %v2883
        %v3032 = vpack.c.b16 %v2888, %v2884
        %v3033 = vpack.c.b16 %v2889, %v2885
        %v3034 = vpack.c.b16 %v2890, %v2886
        %v3035 = vpack.c.b16 %v2895, %v2891
        %v3036 = vpack.c.b16 %v2896, %v2892
        %v3037 = vpack.c.b16 %v2897, %v2893
        %v3038 = vpack.c.b16 %v2898, %v2894
        %v3039 = vpack.c.b16 %v2903, %v2899
        %v3040 = vpack.c.b16 %v2904, %v2900
        %v3041 = vpack.c.b16 %v2905, %v2901
        %v3042 = vpack.c.b16 %v2906, %v2902
        %v3043 = vpack.c.b16 %v2911, %v2907
        %v3044 = vpack.c.b16 %v2912, %v2908
        %v3045 = vpack.c.b16 %v2913, %v2909
        %v3046 = vpack.c.b16 %v2914, %v2910
        %v3047 = vpack.c.b16 %v2919, %v2915
        %v3048 = vpack.c.b16 %v2920, %v2916
        %v3049 = vpack.c.b16 %v2921, %v2917
        %v3050 = vpack.c.b16 %v2922, %v2918
        %3179 = vmatprep.subr.bf16.mxu0 %v2924
        %3180 = vmatpush1.bf16.msra.mxu0 %v2923
        %3181 = vmatprep.subr.bf16.mxu0 %v2928
        %3182 = vmatpush1.bf16.msra.mxu0 %v2927
        %3183 = vmatprep.subr.bf16.mxu0 %v2932
        %3184 = vmatpush1.bf16.msra.mxu0 %v2931
        %3185 = vmatprep.subr.bf16.mxu0 %v2936
        %3186 = vmatpush1.bf16.msra.mxu0 %v2935
        %3187 = vmatprep.subr.bf16.mxu0 %v2940
        %3188 = vmatpush1.bf16.msra.mxu0 %v2939
        %3189 = vmatprep.subr.bf16.mxu0 %v2944
        %3190 = vmatpush1.bf16.msra.mxu0 %v2943
        %3191 = vmatprep.subr.bf16.mxu0 %v2948
        %3192 = vmatpush1.bf16.msra.mxu0 %v2947
        %3193 = vmatprep.subr.bf16.mxu0 %v2952
        %3194 = vmatpush1.bf16.msra.mxu0 %v2951
        %3195 = vmatprep.subr.bf16.mxu0 %v2956
        %3196 = vmatpush1.bf16.msra.mxu0 %v2955
        %3197 = vmatprep.subr.bf16.mxu0 %v2960
        %3198 = vmatpush1.bf16.msra.mxu0 %v2959
        %3199 = vmatprep.subr.bf16.mxu0 %v2964
        %3200 = vmatpush1.bf16.msra.mxu0 %v2963
        %3201 = vmatprep.subr.bf16.mxu0 %v2968
        %3202 = vmatpush1.bf16.msra.mxu0 %v2967
        %3203 = vmatprep.subr.bf16.mxu0 %v2972
        %3204 = vmatpush1.bf16.msra.mxu0 %v2971
        %3205 = vmatprep.subr.bf16.mxu0 %v2976
        %3206 = vmatpush1.bf16.msra.mxu0 %v2975
        %3207 = vmatprep.subr.bf16.mxu0 %v2980
        %3208 = vmatpush1.bf16.msra.mxu0 %v2979
        %3209 = vmatprep.subr.bf16.mxu0 %v2984
        %3210 = vmatpush1.bf16.msra.mxu0 %v2983
        %3211 = vmatprep.mubr.bf16.mxu0 %v2528
        %3212 = vmatmul.mubr.bf16.gmra.mrb[0].mxu0 %v2525
        %v3213 = vpop.f32.mrb[0].mxu0
        %v3214 = vadd.f32 0.0, %v3213
        %v3215 = vpop.f32.mrb[0].mxu0
        %v3216 = vadd.f32 0.0, %v3215
        %v3217 = vpop.f32.mrb[0].mxu0
        %v3218 = vadd.f32 0.0, %v3217
        %v3219 = vpop.f32.mrb[0].mxu0
        %v3220 = vadd.f32 0.0, %v3219
        %3221 = vdwg.mxu0
        %3222 = vmatprep.subr.bf16.mxu0 %v2988
        %3223 = vmatpush1.bf16.msra.mxu0 %v2987
        %3224 = vmatprep.subr.bf16.mxu0 %v2992
        %3225 = vmatpush1.bf16.msra.mxu0 %v2991
        %3226 = vmatprep.subr.bf16.mxu0 %v2996
        %3227 = vmatpush1.bf16.msra.mxu0 %v2995
        %3228 = vmatprep.subr.bf16.mxu0 %v3000
        %3229 = vmatpush1.bf16.msra.mxu0 %v2999
        %3230 = vmatprep.subr.bf16.mxu0 %v3004
        %3231 = vmatpush1.bf16.msra.mxu0 %v3003
        %3232 = vmatprep.subr.bf16.mxu0 %v3008
        %3233 = vmatpush1.bf16.msra.mxu0 %v3007
        %3234 = vmatprep.subr.bf16.mxu0 %v3012
        %3235 = vmatpush1.bf16.msra.mxu0 %v3011
        %3236 = vmatprep.subr.bf16.mxu0 %v3016
        %3237 = vmatpush1.bf16.msra.mxu0 %v3015
        %3238 = vmatprep.subr.bf16.mxu0 %v3020
        %3239 = vmatpush1.bf16.msra.mxu0 %v3019
        %3240 = vmatprep.subr.bf16.mxu0 %v3024
        %3241 = vmatpush1.bf16.msra.mxu0 %v3023
        %3242 = vmatprep.subr.bf16.mxu0 %v3028
        %3243 = vmatpush1.bf16.msra.mxu0 %v3027
        %3244 = vmatprep.subr.bf16.mxu0 %v3032
        %3245 = vmatpush1.bf16.msra.mxu0 %v3031
        %3246 = vmatprep.subr.bf16.mxu0 %v3036
        %3247 = vmatpush1.bf16.msra.mxu0 %v3035
        %3248 = vmatprep.subr.bf16.mxu0 %v3040
        %3249 = vmatpush1.bf16.msra.mxu0 %v3039
        %3250 = vmatprep.subr.bf16.mxu0 %v3044
        %3251 = vmatpush1.bf16.msra.mxu0 %v3043
        %3252 = vmatprep.subr.bf16.mxu0 %v3048
        %3253 = vmatpush1.bf16.msra.mxu0 %v3047
        %3254 = vmatprep.mubr.bf16.mxu0 %v2534
        %3255 = vmatmul.mubr.bf16.gmra.mrb[0].mxu0 %v2531
        %v3256 = vpop.f32.mrb[0].mxu0
        %v3257 = vadd.f32 %v3214, %v3256
        %v3258 = vpop.f32.mrb[0].mxu0
        %v3259 = vadd.f32 %v3216, %v3258
        %v3260 = vpop.f32.mrb[0].mxu0
        %v3261 = vadd.f32 %v3218, %v3260
        %v3262 = vpop.f32.mrb[0].mxu0
        %v3263 = vadd.f32 %v3220, %v3262
        %3264 = vdwg.mxu0
        %3265 = vmatprep.subr.bf16.mxu0 %v2926
        %3266 = vmatpush1.bf16.msra.mxu0 %v2925
        %3267 = vmatprep.subr.bf16.mxu0 %v2930
        %3268 = vmatpush1.bf16.msra.mxu0 %v2929
        %3269 = vmatprep.subr.bf16.mxu0 %v2934
        %3270 = vmatpush1.bf16.msra.mxu0 %v2933
        %3271 = vmatprep.subr.bf16.mxu0 %v2938
        %3272 = vmatpush1.bf16.msra.mxu0 %v2937
        %3273 = vmatprep.subr.bf16.mxu0 %v2942
        %3274 = vmatpush1.bf16.msra.mxu0 %v2941
        %3275 = vmatprep.subr.bf16.mxu0 %v2946
        %3276 = vmatpush1.bf16.msra.mxu0 %v2945
        %3277 = vmatprep.subr.bf16.mxu0 %v2950
        %3278 = vmatpush1.bf16.msra.mxu0 %v2949
        %3279 = vmatprep.subr.bf16.mxu0 %v2954
        %3280 = vmatpush1.bf16.msra.mxu0 %v2953
        %3281 = vmatprep.subr.bf16.mxu0 %v2958
        %3282 = vmatpush1.bf16.msra.mxu0 %v2957
        %3283 = vmatprep.subr.bf16.mxu0 %v2962
        %3284 = vmatpush1.bf16.msra.mxu0 %v2961
        %3285 = vmatprep.subr.bf16.mxu0 %v2966
        %3286 = vmatpush1.bf16.msra.mxu0 %v2965
        %3287 = vmatprep.subr.bf16.mxu0 %v2970
        %3288 = vmatpush1.bf16.msra.mxu0 %v2969
        %3289 = vmatprep.subr.bf16.mxu0 %v2974
        %3290 = vmatpush1.bf16.msra.mxu0 %v2973
        %3291 = vmatprep.subr.bf16.mxu0 %v2978
        %3292 = vmatpush1.bf16.msra.mxu0 %v2977
        %3293 = vmatprep.subr.bf16.mxu0 %v2982
        %3294 = vmatpush1.bf16.msra.mxu0 %v2981
        %3295 = vmatprep.subr.bf16.mxu0 %v2986
        %3296 = vmatpush1.bf16.msra.mxu0 %v2985
        %3297 = vmatprep.mubr.bf16.mxu0 %v2528
        %3298 = vmatmul.mubr.bf16.gmra.mrb[0].mxu0 %v2525
        %v3299 = vpop.f32.mrb[0].mxu0
        %v3300 = vadd.f32 0.0, %v3299
        %v3301 = vpop.f32.mrb[0].mxu0
        %v3302 = vadd.f32 0.0, %v3301
        %v3303 = vpop.f32.mrb[0].mxu0
        %v3304 = vadd.f32 0.0, %v3303
        %v3305 = vpop.f32.mrb[0].mxu0
        %v3306 = vadd.f32 0.0, %v3305
        %3307 = vdwg.mxu0
        %3308 = vmatprep.subr.bf16.mxu0 %v2990
        %3309 = vmatpush1.bf16.msra.mxu0 %v2989
        %3310 = vmatprep.subr.bf16.mxu0 %v2994
        %3311 = vmatpush1.bf16.msra.mxu0 %v2993
        %3312 = vmatprep.subr.bf16.mxu0 %v2998
        %3313 = vmatpush1.bf16.msra.mxu0 %v2997
        %3314 = vmatprep.subr.bf16.mxu0 %v3002
        %3315 = vmatpush1.bf16.msra.mxu0 %v3001
        %3316 = vmatprep.subr.bf16.mxu0 %v3006
        %3317 = vmatpush1.bf16.msra.mxu0 %v3005
        %3318 = vmatprep.subr.bf16.mxu0 %v3010
        %3319 = vmatpush1.bf16.msra.mxu0 %v3009
        %3320 = vmatprep.subr.bf16.mxu0 %v3014
        %3321 = vmatpush1.bf16.msra.mxu0 %v3013
        %3322 = vmatprep.subr.bf16.mxu0 %v3018
        %3323 = vmatpush1.bf16.msra.mxu0 %v3017
        %3324 = vmatprep.subr.bf16.mxu0 %v3022
        %3325 = vmatpush1.bf16.msra.mxu0 %v3021
        %3326 = vmatprep.subr.bf16.mxu0 %v3026
        %3327 = vmatpush1.bf16.msra.mxu0 %v3025
        %3328 = vmatprep.subr.bf16.mxu0 %v3030
        %3329 = vmatpush1.bf16.msra.mxu0 %v3029
        %3330 = vmatprep.subr.bf16.mxu0 %v3034
        %3331 = vmatpush1.bf16.msra.mxu0 %v3033
        %3332 = vmatprep.subr.bf16.mxu0 %v3038
        %3333 = vmatpush1.bf16.msra.mxu0 %v3037
        %3334 = vmatprep.subr.bf16.mxu0 %v3042
        %3335 = vmatpush1.bf16.msra.mxu0 %v3041
        %3336 = vmatprep.subr.bf16.mxu0 %v3046
        %3337 = vmatpush1.bf16.msra.mxu0 %v3045
        %3338 = vmatprep.subr.bf16.mxu0 %v3050
        %3339 = vmatpush1.bf16.msra.mxu0 %v3049
        %3340 = vmatprep.mubr.bf16.mxu0 %v2534
        %3341 = vmatmul.mubr.bf16.gmra.mrb[0].mxu0 %v2531
        %v3342 = vpop.f32.mrb[0].mxu0
        %v3343 = vadd.f32 %v3300, %v3342
        %v3344 = vpop.f32.mrb[0].mxu0
        %v3345 = vadd.f32 %v3302, %v3344
        %v3346 = vpop.f32.mrb[0].mxu0
        %v3347 = vadd.f32 %v3304, %v3346
        %v3348 = vpop.f32.mrb[0].mxu0
        %v3349 = vadd.f32 %v3306, %v3348
        %3350 = vdwg.mxu0
        %v3351 = vadd.f32 %v2287, %v3257
        %v3352 = vadd.f32 %v2289, %v3259
        %v3353 = vadd.f32 %v2373, %v3343
        %v3354 = vadd.f32 %v2375, %v3345
        %v3355 = vadd.f32 %v2291, %v3261
        %v3356 = vadd.f32 %v2293, %v3263
        %v3357 = vadd.f32 %v2377, %v3347
        %v3358 = vadd.f32 %v2379, %v3349
        %v3359 = vld [vmem:[#allocation8] sm:$0xf]
        %v3361 = vlaneseq
        %v3362 = vshrl.u32 %v3361, 7
        %v3363 = vsub.s32 0, %v3362
        %v3364 = vrot.slane %v3359, %v3363
        %v3365 = vlaneseq
        %v3366 = vshrl.u32 %v3365, 7
        %v3367 = vsub.s32 1, %v3366
        %v3368 = vrot.slane %v3359, %v3367
        %v3369 = vlaneseq
        %v3370 = vshrl.u32 %v3369, 7
        %v3371 = vsub.s32 2, %v3370
        %v3372 = vrot.slane %v3359, %v3371
        %v3373 = vlaneseq
        %v3374 = vshrl.u32 %v3373, 7
        %v3375 = vsub.s32 3, %v3374
        %v3376 = vrot.slane %v3359, %v3375
        %v3381 = vadd.f32 %v3351, %v3364
        %v3382 = vadd.f32 %v3352, %v3368
        %v3383 = vadd.f32 %v3353, %v3372
        %v3384 = vadd.f32 %v3354, %v3376
        %v3385 = vadd.f32 %v3355, %v3364
        %v3386 = vadd.f32 %v3356, %v3368
        %v3387 = vadd.f32 %v3357, %v3372
        %v3388 = vadd.f32 %v3358, %v3376
        %vm3389 = vcmp.gt.f32.partialorder %v3381, 0.0
        %vm3390 = vcmp.gt.f32.partialorder %v3382, 0.0
        %vm3391 = vcmp.gt.f32.partialorder %v3383, 0.0
        %vm3392 = vcmp.gt.f32.partialorder %v3384, 0.0
        %vm3393 = vcmp.gt.f32.partialorder %v3385, 0.0
        %vm3394 = vcmp.gt.f32.partialorder %v3386, 0.0
        %vm3395 = vcmp.gt.f32.partialorder %v3387, 0.0
        %vm3396 = vcmp.gt.f32.partialorder %v3388, 0.0
        %v3397 = vmul.f32 %v3381, 0.2
        %v3398 = vmul.f32 %v3382, 0.2
        %v3399 = vmul.f32 %v3383, 0.2
        %v3400 = vmul.f32 %v3384, 0.2
        %v3401 = vmul.f32 %v3385, 0.2
        %v3402 = vmul.f32 %v3386, 0.2
        %v3403 = vmul.f32 %v3387, 0.2
        %v3404 = vmul.f32 %v3388, 0.2
        %v3405 = vsel %vm3389, %v3381, %v3397
        %v3406 = vsel %vm3390, %v3382, %v3398
        %v3407 = vsel %vm3391, %v3383, %v3399
        %v3408 = vsel %vm3392, %v3384, %v3400
        %v3409 = vsel %vm3393, %v3385, %v3401
        %v3410 = vsel %vm3394, %v3386, %v3402
        %v3411 = vsel %vm3395, %v3387, %v3403
        %v3412 = vsel %vm3396, %v3388, %v3404
        %v3413 = vpack.c.bf16 %v3409, %v3405
        %v3414 = vpack.c.bf16 %v3410, %v3406
        %v3415 = vpack.c.bf16 %v3411, %v3407
        %v3416 = vpack.c.bf16 %v3412, %v3408
        %v3421 = vunpack.c.l.b16 %v3413
        %v3422 = vunpack.c.l.b16 %v3414
        %v3423 = vunpack.c.l.b16 %v3415
        %v3424 = vunpack.c.l.b16 %v3416
        %v3425 = vunpack.c.h.b16 %v3413
        %v3426 = vunpack.c.h.b16 %v3414
        %v3427 = vunpack.c.h.b16 %v3415
        %v3428 = vunpack.c.h.b16 %v3416
        %v3429 = vpack.c.b16 %v3422, %v3421
        %v3430 = vpack.c.b16 %v3424, %v3423
        %v3431 = vpack.c.b16 %v3426, %v3425
        %v3432 = vpack.c.b16 %v3428, %v3427
        %v3434 = vshrl.u32 %v3429, 16
        %v3436 = vrot.slane %v3434, 7
        %v3437 = vshll.u32 %v3429, 16
        %v3439 = vor.u32 %v3436, %v3437
        %v3441 = vshrl.u32 %v3430, 16
        %v3443 = vrot.slane %v3441, 7
        %v3444 = vshll.u32 %v3430, 16
        %v3446 = vor.u32 %v3443, %v3444
        %v3447 = vrot.slane %v3436, 4
        %v3449 = vshrl.u32 %v3431, 16
        %v3451 = vrot.slane %v3449, 7
        %v3452 = vshll.u32 %v3431, 16
        %v3454 = vor.u32 %v3451, %v3452
        %v3455 = vsel %vm351, %v3447, %v3454
        %v3456 = vrot.slane %v3443, 4
        %v3458 = vshrl.u32 %v3432, 16
        %v3460 = vrot.slane %v3458, 7
        %v3461 = vshll.u32 %v3432, 16
        %v3463 = vor.u32 %v3460, %v3461
        %v3464 = vsel %vm351, %v3456, %v3463
        %v3465 = vrot.slane %v3451, 4
        %v3466 = vrot.slane %v3460, 4
        %v3473 = vsel %vm396, %v3439, %v411
        %3474 = vst [vmem:[#allocation2] sm:$0xff] %v3473
        %v3475 = vld [vmem:[#allocation2 + $0x8] sm:$0xff]
        %v3476 = vsel %vm396, %v3446, %v3475
        %3477 = vst [vmem:[#allocation2 + $0x8] sm:$0xff] %v3476
        %3478 = vst [vmem:[#allocation2 + $0x10] sm:$0xff] %v3455
        %3479 = vst [vmem:[#allocation2 + $0x18] sm:$0xff] %v3464
        %v3480 = vld [vmem:[#allocation2 + $0x20] sm:$0x11]
        %v3481 = vsel %vm304, %v3465, %v3480
        %3482 = vst [vmem:[#allocation2 + $0x20] sm:$0x11] %v3481
        %v3483 = vld [vmem:[#allocation2 + $0x28] sm:$0x11]
        %v3484 = vsel %vm304, %v3466, %v3483
        %3485 = vst [vmem:[#allocation2 + $0x28] sm:$0x11] %v3484
        %v3486 = vld [vmem:[#allocation2] sm:$0xff]
        %v3487 = vld [vmem:[#allocation2 + $0x8] sm:$0xff]
        %v3488 = vld [vmem:[#allocation2 + $0x10] sm:$0xff]
        %v3489 = vld [vmem:[#allocation2 + $0x18] sm:$0xff]
        %v3490 = vld [vmem:[#allocation9] sm:$0xff]
        %v3491 = vld [vmem:[#allocation9 + $0x8] sm:$0xff]
        %v3492 = vld [vmem:[#allocation9 + $0x10] sm:$0xff]
        %v3493 = vld [vmem:[#allocation9 + $0x18] sm:$0xff]
        %v3494 = vld [vmem:[#allocation9 + $0x20] sm:$0xff]
        %v3495 = vld [vmem:[#allocation9 + $0x28] sm:$0xff]
        %v3496 = vld [vmem:[#allocation9 + $0x30] sm:$0xff]
        %v3497 = vld [vmem:[#allocation9 + $0x38] sm:$0xff]
        %v3498 = vld [vmem:[#allocation9 + $0x40] sm:$0xff]
        %v3499 = vld [vmem:[#allocation9 + $0x48] sm:$0xff]
        %v3500 = vld [vmem:[#allocation9 + $0x50] sm:$0xff]
        %v3501 = vld [vmem:[#allocation9 + $0x58] sm:$0xff]
        %v3502 = vld [vmem:[#allocation9 + $0x60] sm:$0xff]
        %v3503 = vld [vmem:[#allocation9 + $0x68] sm:$0xff]
        %v3504 = vld [vmem:[#allocation9 + $0x70] sm:$0xff]
        %v3505 = vld [vmem:[#allocation9 + $0x78] sm:$0xff]
        %v3506 = vld [vmem:[#allocation9 + $0x80] sm:$0xff]
        %v3507 = vld [vmem:[#allocation9 + $0x88] sm:$0xff]
        %v3508 = vld [vmem:[#allocation9 + $0x90] sm:$0xff]
        %v3509 = vld [vmem:[#allocation9 + $0x98] sm:$0xff]
        %v3510 = vld [vmem:[#allocation9 + $0xa0] sm:$0xff]
        %v3511 = vld [vmem:[#allocation9 + $0xa8] sm:$0xff]
        %v3512 = vld [vmem:[#allocation9 + $0xb0] sm:$0xff]
        %v3513 = vld [vmem:[#allocation9 + $0xb8] sm:$0xff]
        %v3514 = vld [vmem:[#allocation9 + $0xc0] sm:$0xff]
        %v3515 = vld [vmem:[#allocation9 + $0xc8] sm:$0xff]
        %v3516 = vld [vmem:[#allocation9 + $0xd0] sm:$0xff]
        %v3517 = vld [vmem:[#allocation9 + $0xd8] sm:$0xff]
        %v3518 = vld [vmem:[#allocation9 + $0xe0] sm:$0xff]
        %v3519 = vld [vmem:[#allocation9 + $0xe8] sm:$0xff]
        %v3520 = vld [vmem:[#allocation9 + $0xf0] sm:$0xff]
        %v3521 = vld [vmem:[#allocation9 + $0xf8] sm:$0xff]
        %v3522 = vld [vmem:[#allocation9 + $0x100] sm:$0xff]
        %v3523 = vld [vmem:[#allocation9 + $0x108] sm:$0xff]
        %v3524 = vld [vmem:[#allocation9 + $0x110] sm:$0xff]
        %v3525 = vld [vmem:[#allocation9 + $0x118] sm:$0xff]
        %v3526 = vld [vmem:[#allocation9 + $0x120] sm:$0xff]
        %v3527 = vld [vmem:[#allocation9 + $0x128] sm:$0xff]
        %v3528 = vld [vmem:[#allocation9 + $0x130] sm:$0xff]
        %v3529 = vld [vmem:[#allocation9 + $0x138] sm:$0xff]
        %v3530 = vld [vmem:[#allocation9 + $0x140] sm:$0xff]
        %v3531 = vld [vmem:[#allocation9 + $0x148] sm:$0xff]
        %v3532 = vld [vmem:[#allocation9 + $0x150] sm:$0xff]
        %v3533 = vld [vmem:[#allocation9 + $0x158] sm:$0xff]
        %v3534 = vld [vmem:[#allocation9 + $0x160] sm:$0xff]
        %v3535 = vld [vmem:[#allocation9 + $0x168] sm:$0xff]
        %v3536 = vld [vmem:[#allocation9 + $0x170] sm:$0xff]
        %v3537 = vld [vmem:[#allocation9 + $0x178] sm:$0xff]
        %v3538 = vld [vmem:[#allocation9 + $0x180] sm:$0xff]
        %v3539 = vld [vmem:[#allocation9 + $0x188] sm:$0xff]
        %v3540 = vld [vmem:[#allocation9 + $0x190] sm:$0xff]
        %v3541 = vld [vmem:[#allocation9 + $0x198] sm:$0xff]
        %v3542 = vld [vmem:[#allocation9 + $0x1a0] sm:$0xff]
        %v3543 = vld [vmem:[#allocation9 + $0x1a8] sm:$0xff]
        %v3544 = vld [vmem:[#allocation9 + $0x1b0] sm:$0xff]
        %v3545 = vld [vmem:[#allocation9 + $0x1b8] sm:$0xff]
        %v3546 = vld [vmem:[#allocation9 + $0x1c0] sm:$0xff]
        %v3547 = vld [vmem:[#allocation9 + $0x1c8] sm:$0xff]
        %v3548 = vld [vmem:[#allocation9 + $0x1d0] sm:$0xff]
        %v3549 = vld [vmem:[#allocation9 + $0x1d8] sm:$0xff]
        %v3550 = vld [vmem:[#allocation9 + $0x1e0] sm:$0xff]
        %v3551 = vld [vmem:[#allocation9 + $0x1e8] sm:$0xff]
        %v3552 = vld [vmem:[#allocation9 + $0x1f0] sm:$0xff]
        %v3553 = vld [vmem:[#allocation9 + $0x1f8] sm:$0xff]
        %v3554 = vld [vmem:[#allocation9 + $0x200] sm:$0xff]
        %v3555 = vld [vmem:[#allocation9 + $0x208] sm:$0xff]
        %v3556 = vld [vmem:[#allocation9 + $0x210] sm:$0xff]
        %v3557 = vld [vmem:[#allocation9 + $0x218] sm:$0xff]
        %v3558 = vld [vmem:[#allocation9 + $0x220] sm:$0xff]
        %v3559 = vld [vmem:[#allocation9 + $0x228] sm:$0xff]
        %v3560 = vld [vmem:[#allocation9 + $0x230] sm:$0xff]
        %v3561 = vld [vmem:[#allocation9 + $0x238] sm:$0xff]
        %v3562 = vld [vmem:[#allocation9 + $0x240] sm:$0xff]
        %v3563 = vld [vmem:[#allocation9 + $0x248] sm:$0xff]
        %v3564 = vld [vmem:[#allocation9 + $0x250] sm:$0xff]
        %v3565 = vld [vmem:[#allocation9 + $0x258] sm:$0xff]
        %v3566 = vld [vmem:[#allocation9 + $0x260] sm:$0xff]
        %v3567 = vld [vmem:[#allocation9 + $0x268] sm:$0xff]
        %v3568 = vld [vmem:[#allocation9 + $0x270] sm:$0xff]
        %v3569 = vld [vmem:[#allocation9 + $0x278] sm:$0xff]
        %v3570 = vld [vmem:[#allocation9 + $0x280] sm:$0xff]
        %v3571 = vld [vmem:[#allocation9 + $0x288] sm:$0xff]
        %v3572 = vld [vmem:[#allocation9 + $0x290] sm:$0xff]
        %v3573 = vld [vmem:[#allocation9 + $0x298] sm:$0xff]
        %v3574 = vld [vmem:[#allocation9 + $0x2a0] sm:$0xff]
        %v3575 = vld [vmem:[#allocation9 + $0x2a8] sm:$0xff]
        %v3576 = vld [vmem:[#allocation9 + $0x2b0] sm:$0xff]
        %v3577 = vld [vmem:[#allocation9 + $0x2b8] sm:$0xff]
        %v3578 = vld [vmem:[#allocation9 + $0x2c0] sm:$0xff]
        %v3579 = vld [vmem:[#allocation9 + $0x2c8] sm:$0xff]
        %v3580 = vld [vmem:[#allocation9 + $0x2d0] sm:$0xff]
        %v3581 = vld [vmem:[#allocation9 + $0x2d8] sm:$0xff]
        %v3582 = vld [vmem:[#allocation9 + $0x2e0] sm:$0xff]
        %v3583 = vld [vmem:[#allocation9 + $0x2e8] sm:$0xff]
        %v3584 = vld [vmem:[#allocation9 + $0x2f0] sm:$0xff]
        %v3585 = vld [vmem:[#allocation9 + $0x2f8] sm:$0xff]
        %v3586 = vld [vmem:[#allocation9 + $0x300] sm:$0xff]
        %v3587 = vld [vmem:[#allocation9 + $0x308] sm:$0xff]
        %v3588 = vld [vmem:[#allocation9 + $0x310] sm:$0xff]
        %v3589 = vld [vmem:[#allocation9 + $0x318] sm:$0xff]
        %v3590 = vld [vmem:[#allocation9 + $0x320] sm:$0xff]
        %v3591 = vld [vmem:[#allocation9 + $0x328] sm:$0xff]
        %v3592 = vld [vmem:[#allocation9 + $0x330] sm:$0xff]
        %v3593 = vld [vmem:[#allocation9 + $0x338] sm:$0xff]
        %v3594 = vld [vmem:[#allocation9 + $0x340] sm:$0xff]
        %v3595 = vld [vmem:[#allocation9 + $0x348] sm:$0xff]
        %v3596 = vld [vmem:[#allocation9 + $0x350] sm:$0xff]
        %v3597 = vld [vmem:[#allocation9 + $0x358] sm:$0xff]
        %v3598 = vld [vmem:[#allocation9 + $0x360] sm:$0xff]
        %v3599 = vld [vmem:[#allocation9 + $0x368] sm:$0xff]
        %v3600 = vld [vmem:[#allocation9 + $0x370] sm:$0xff]
        %v3601 = vld [vmem:[#allocation9 + $0x378] sm:$0xff]
        %v3602 = vld [vmem:[#allocation9 + $0x380] sm:$0xff]
        %v3603 = vld [vmem:[#allocation9 + $0x388] sm:$0xff]
        %v3604 = vld [vmem:[#allocation9 + $0x390] sm:$0xff]
        %v3605 = vld [vmem:[#allocation9 + $0x398] sm:$0xff]
        %v3606 = vld [vmem:[#allocation9 + $0x3a0] sm:$0xff]
        %v3607 = vld [vmem:[#allocation9 + $0x3a8] sm:$0xff]
        %v3608 = vld [vmem:[#allocation9 + $0x3b0] sm:$0xff]
        %v3609 = vld [vmem:[#allocation9 + $0x3b8] sm:$0xff]
        %v3610 = vld [vmem:[#allocation9 + $0x3c0] sm:$0xff]
        %v3611 = vld [vmem:[#allocation9 + $0x3c8] sm:$0xff]
        %v3612 = vld [vmem:[#allocation9 + $0x3d0] sm:$0xff]
        %v3613 = vld [vmem:[#allocation9 + $0x3d8] sm:$0xff]
        %v3614 = vld [vmem:[#allocation9 + $0x3e0] sm:$0xff]
        %v3615 = vld [vmem:[#allocation9 + $0x3e8] sm:$0xff]
        %v3616 = vld [vmem:[#allocation9 + $0x3f0] sm:$0xff]
        %v3617 = vld [vmem:[#allocation9 + $0x3f8] sm:$0xff]
        %v3618 = vld [vmem:[#allocation2 + $0x20] sm:$0x11]
        %v3619 = vld [vmem:[#allocation2 + $0x28] sm:$0x11]
        %s3620 = scalar_lea.vmem [#allocation9], 1024
        %v3621 = vld [vmem:[%s3620] sm:$0xff]
        %v3622 = vld [vmem:[%s3620 + $0x8] sm:$0xff]
        %v3623 = vld [vmem:[%s3620 + $0x10] sm:$0xff]
        %v3624 = vld [vmem:[%s3620 + $0x18] sm:$0xff]
        %v3625 = vld [vmem:[%s3620 + $0x20] sm:$0xff]
        %v3626 = vld [vmem:[%s3620 + $0x28] sm:$0xff]
        %v3627 = vld [vmem:[%s3620 + $0x30] sm:$0xff]
        %v3628 = vld [vmem:[%s3620 + $0x38] sm:$0xff]
        %v3629 = vld [vmem:[%s3620 + $0x40] sm:$0xff]
        %v3630 = vld [vmem:[%s3620 + $0x48] sm:$0xff]
        %v3631 = vld [vmem:[%s3620 + $0x50] sm:$0xff]
        %v3632 = vld [vmem:[%s3620 + $0x58] sm:$0xff]
        %v3633 = vld [vmem:[%s3620 + $0x60] sm:$0xff]
        %v3634 = vld [vmem:[%s3620 + $0x68] sm:$0xff]
        %v3635 = vld [vmem:[%s3620 + $0x70] sm:$0xff]
        %v3636 = vld [vmem:[%s3620 + $0x78] sm:$0xff]
        %v3637 = vld [vmem:[%s3620 + $0x80] sm:$0xff]
        %v3638 = vld [vmem:[%s3620 + $0x88] sm:$0xff]
        %v3639 = vld [vmem:[%s3620 + $0x90] sm:$0xff]
        %v3640 = vld [vmem:[%s3620 + $0x98] sm:$0xff]
        %v3641 = vld [vmem:[%s3620 + $0xa0] sm:$0xff]
        %v3642 = vld [vmem:[%s3620 + $0xa8] sm:$0xff]
        %v3643 = vld [vmem:[%s3620 + $0xb0] sm:$0xff]
        %v3644 = vld [vmem:[%s3620 + $0xb8] sm:$0xff]
        %v3645 = vld [vmem:[%s3620 + $0xc0] sm:$0xff]
        %v3646 = vld [vmem:[%s3620 + $0xc8] sm:$0xff]
        %v3647 = vld [vmem:[%s3620 + $0xd0] sm:$0xff]
        %v3648 = vld [vmem:[%s3620 + $0xd8] sm:$0xff]
        %v3649 = vld [vmem:[%s3620 + $0xe0] sm:$0xff]
        %v3650 = vld [vmem:[%s3620 + $0xe8] sm:$0xff]
        %v3651 = vld [vmem:[%s3620 + $0xf0] sm:$0xff]
        %v3652 = vld [vmem:[%s3620 + $0xf8] sm:$0xff]
        %v3653 = vld [vmem:[%s3620 + $0x100] sm:$0xff]
        %v3654 = vld [vmem:[%s3620 + $0x108] sm:$0xff]
        %v3655 = vld [vmem:[%s3620 + $0x110] sm:$0xff]
        %v3656 = vld [vmem:[%s3620 + $0x118] sm:$0xff]
        %v3657 = vld [vmem:[%s3620 + $0x120] sm:$0xff]
        %v3658 = vld [vmem:[%s3620 + $0x128] sm:$0xff]
        %v3659 = vld [vmem:[%s3620 + $0x130] sm:$0xff]
        %v3660 = vld [vmem:[%s3620 + $0x138] sm:$0xff]
        %v3661 = vld [vmem:[%s3620 + $0x140] sm:$0xff]
        %v3662 = vld [vmem:[%s3620 + $0x148] sm:$0xff]
        %v3663 = vld [vmem:[%s3620 + $0x150] sm:$0xff]
        %v3664 = vld [vmem:[%s3620 + $0x158] sm:$0xff]
        %v3665 = vld [vmem:[%s3620 + $0x160] sm:$0xff]
        %v3666 = vld [vmem:[%s3620 + $0x168] sm:$0xff]
        %v3667 = vld [vmem:[%s3620 + $0x170] sm:$0xff]
        %v3668 = vld [vmem:[%s3620 + $0x178] sm:$0xff]
        %v3669 = vld [vmem:[%s3620 + $0x180] sm:$0xff]
        %v3670 = vld [vmem:[%s3620 + $0x188] sm:$0xff]
        %v3671 = vld [vmem:[%s3620 + $0x190] sm:$0xff]
        %v3672 = vld [vmem:[%s3620 + $0x198] sm:$0xff]
        %v3673 = vld [vmem:[%s3620 + $0x1a0] sm:$0xff]
        %v3674 = vld [vmem:[%s3620 + $0x1a8] sm:$0xff]
        %v3675 = vld [vmem:[%s3620 + $0x1b0] sm:$0xff]
        %v3676 = vld [vmem:[%s3620 + $0x1b8] sm:$0xff]
        %v3677 = vld [vmem:[%s3620 + $0x1c0] sm:$0xff]
        %v3678 = vld [vmem:[%s3620 + $0x1c8] sm:$0xff]
        %v3679 = vld [vmem:[%s3620 + $0x1d0] sm:$0xff]
        %v3680 = vld [vmem:[%s3620 + $0x1d8] sm:$0xff]
        %v3681 = vld [vmem:[%s3620 + $0x1e0] sm:$0xff]
        %v3682 = vld [vmem:[%s3620 + $0x1e8] sm:$0xff]
        %v3683 = vld [vmem:[%s3620 + $0x1f0] sm:$0xff]
        %v3684 = vld [vmem:[%s3620 + $0x1f8] sm:$0xff]
        %v3685 = vld [vmem:[%s3620 + $0x200] sm:$0xff]
        %v3686 = vld [vmem:[%s3620 + $0x208] sm:$0xff]
        %v3687 = vld [vmem:[%s3620 + $0x210] sm:$0xff]
        %v3688 = vld [vmem:[%s3620 + $0x218] sm:$0xff]
        %v3689 = vld [vmem:[%s3620 + $0x220] sm:$0xff]
        %v3690 = vld [vmem:[%s3620 + $0x228] sm:$0xff]
        %v3691 = vld [vmem:[%s3620 + $0x230] sm:$0xff]
        %v3692 = vld [vmem:[%s3620 + $0x238] sm:$0xff]
        %v3693 = vld [vmem:[%s3620 + $0x240] sm:$0xff]
        %v3694 = vld [vmem:[%s3620 + $0x248] sm:$0xff]
        %v3695 = vld [vmem:[%s3620 + $0x250] sm:$0xff]
        %v3696 = vld [vmem:[%s3620 + $0x258] sm:$0xff]
        %v3697 = vld [vmem:[%s3620 + $0x260] sm:$0xff]
        %v3698 = vld [vmem:[%s3620 + $0x268] sm:$0xff]
        %v3699 = vld [vmem:[%s3620 + $0x270] sm:$0xff]
        %v3700 = vld [vmem:[%s3620 + $0x278] sm:$0xff]
        %v3701 = vld [vmem:[%s3620 + $0x280] sm:$0xff]
        %v3702 = vld [vmem:[%s3620 + $0x288] sm:$0xff]
        %v3703 = vld [vmem:[%s3620 + $0x290] sm:$0xff]
        %v3704 = vld [vmem:[%s3620 + $0x298] sm:$0xff]
        %v3705 = vld [vmem:[%s3620 + $0x2a0] sm:$0xff]
        %v3706 = vld [vmem:[%s3620 + $0x2a8] sm:$0xff]
        %v3707 = vld [vmem:[%s3620 + $0x2b0] sm:$0xff]
        %v3708 = vld [vmem:[%s3620 + $0x2b8] sm:$0xff]
        %v3709 = vld [vmem:[%s3620 + $0x2c0] sm:$0xff]
        %v3710 = vld [vmem:[%s3620 + $0x2c8] sm:$0xff]
        %v3711 = vld [vmem:[%s3620 + $0x2d0] sm:$0xff]
        %v3712 = vld [vmem:[%s3620 + $0x2d8] sm:$0xff]
        %v3713 = vld [vmem:[%s3620 + $0x2e0] sm:$0xff]
        %v3714 = vld [vmem:[%s3620 + $0x2e8] sm:$0xff]
        %v3715 = vld [vmem:[%s3620 + $0x2f0] sm:$0xff]
        %v3716 = vld [vmem:[%s3620 + $0x2f8] sm:$0xff]
        %v3717 = vld [vmem:[%s3620 + $0x300] sm:$0xff]
        %v3718 = vld [vmem:[%s3620 + $0x308] sm:$0xff]
        %v3719 = vld [vmem:[%s3620 + $0x310] sm:$0xff]
        %v3720 = vld [vmem:[%s3620 + $0x318] sm:$0xff]
        %v3721 = vld [vmem:[%s3620 + $0x320] sm:$0xff]
        %v3722 = vld [vmem:[%s3620 + $0x328] sm:$0xff]
        %v3723 = vld [vmem:[%s3620 + $0x330] sm:$0xff]
        %v3724 = vld [vmem:[%s3620 + $0x338] sm:$0xff]
        %v3725 = vld [vmem:[%s3620 + $0x340] sm:$0xff]
        %v3726 = vld [vmem:[%s3620 + $0x348] sm:$0xff]
        %v3727 = vld [vmem:[%s3620 + $0x350] sm:$0xff]
        %v3728 = vld [vmem:[%s3620 + $0x358] sm:$0xff]
        %v3729 = vld [vmem:[%s3620 + $0x360] sm:$0xff]
        %v3730 = vld [vmem:[%s3620 + $0x368] sm:$0xff]
        %v3731 = vld [vmem:[%s3620 + $0x370] sm:$0xff]
        %v3732 = vld [vmem:[%s3620 + $0x378] sm:$0xff]
        %v3733 = vld [vmem:[%s3620 + $0x380] sm:$0xff]
        %v3734 = vld [vmem:[%s3620 + $0x388] sm:$0xff]
        %v3735 = vld [vmem:[%s3620 + $0x390] sm:$0xff]
        %v3736 = vld [vmem:[%s3620 + $0x398] sm:$0xff]
        %v3737 = vld [vmem:[%s3620 + $0x3a0] sm:$0xff]
        %v3738 = vld [vmem:[%s3620 + $0x3a8] sm:$0xff]
        %v3739 = vld [vmem:[%s3620 + $0x3b0] sm:$0xff]
        %v3740 = vld [vmem:[%s3620 + $0x3b8] sm:$0xff]
        %v3741 = vld [vmem:[%s3620 + $0x3c0] sm:$0xff]
        %v3742 = vld [vmem:[%s3620 + $0x3c8] sm:$0xff]
        %v3743 = vld [vmem:[%s3620 + $0x3d0] sm:$0xff]
        %v3744 = vld [vmem:[%s3620 + $0x3d8] sm:$0xff]
        %v3745 = vld [vmem:[%s3620 + $0x3e0] sm:$0xff]
        %v3746 = vld [vmem:[%s3620 + $0x3e8] sm:$0xff]
        %v3747 = vld [vmem:[%s3620 + $0x3f0] sm:$0xff]
        %v3748 = vld [vmem:[%s3620 + $0x3f8] sm:$0xff]
        %v3755 = vunpack.c.l.b16 %v3486
        %v3756 = vunpack.c.h.b16 %v3486
        %v3757 = vunpack.c.l.b16 %v3487
        %v3758 = vunpack.c.h.b16 %v3487
        %v3759 = vunpack.c.l.b16 %v3488
        %v3760 = vunpack.c.h.b16 %v3488
        %v3761 = vunpack.c.l.b16 %v3489
        %v3762 = vunpack.c.h.b16 %v3489
        %v3763 = vunpack.c.l.b16 %v3618
        %v3764 = vunpack.c.h.b16 %v3618
        %v3765 = vunpack.c.l.b16 %v3619
        %v3766 = vunpack.c.h.b16 %v3619
        %v3767 = vpack.c.b16 %v3759, %v3755
        %v3768 = vpack.c.b16 %v3760, %v3756
        %v3769 = vpack.c.b16 %v3761, %v3757
        %v3770 = vpack.c.b16 %v3762, %v3758
        %v3771 = vpack.c.b16 %v3763, %v3763
        %v3772 = vpack.c.b16 %v3764, %v3764
        %v3773 = vpack.c.b16 %v3765, %v3765
        %v3774 = vpack.c.b16 %v3766, %v3766
        %v3776 = vshrl.u32 %v3767, 16
        %v3778 = vshll.u32 %v3767, 16
        %v3780 = vrot.slane %v3778, 1
        %v3781 = vor.u32 %v3776, %v3780
        %v3783 = vshll.u32 %v3771, 16
        %v3785 = vrot.slane %v3783, 1
        %v3786 = vsel %vm700, %v3781, %v3785
        %v3788 = vshrl.u32 %v3768, 16
        %v3790 = vshll.u32 %v3768, 16
        %v3792 = vrot.slane %v3790, 1
        %v3793 = vor.u32 %v3788, %v3792
        %v3795 = vshll.u32 %v3772, 16
        %v3797 = vrot.slane %v3795, 1
        %v3798 = vsel %vm700, %v3793, %v3797
        %v3800 = vshrl.u32 %v3769, 16
        %v3802 = vshll.u32 %v3769, 16
        %v3804 = vrot.slane %v3802, 1
        %v3805 = vor.u32 %v3800, %v3804
        %v3807 = vshll.u32 %v3773, 16
        %v3809 = vrot.slane %v3807, 1
        %v3810 = vsel %vm700, %v3805, %v3809
        %v3812 = vshrl.u32 %v3770, 16
        %v3814 = vshll.u32 %v3770, 16
        %v3816 = vrot.slane %v3814, 1
        %v3817 = vor.u32 %v3812, %v3816
        %v3819 = vshll.u32 %v3774, 16
        %v3821 = vrot.slane %v3819, 1
        %v3822 = vsel %vm700, %v3817, %v3821
        %v3955 = vunpack.c.l.b16 %v3621
        %v3956 = vunpack.c.h.b16 %v3621
        %v3957 = vunpack.c.l.b16 %v3622
        %v3958 = vunpack.c.h.b16 %v3622
        %v3959 = vunpack.c.l.b16 %v3623
        %v3960 = vunpack.c.h.b16 %v3623
        %v3961 = vunpack.c.l.b16 %v3624
        %v3962 = vunpack.c.h.b16 %v3624
        %v3963 = vunpack.c.l.b16 %v3625
        %v3964 = vunpack.c.h.b16 %v3625
        %v3965 = vunpack.c.l.b16 %v3626
        %v3966 = vunpack.c.h.b16 %v3626
        %v3967 = vunpack.c.l.b16 %v3627
        %v3968 = vunpack.c.h.b16 %v3627
        %v3969 = vunpack.c.l.b16 %v3628
        %v3970 = vunpack.c.h.b16 %v3628
        %v3971 = vunpack.c.l.b16 %v3629
        %v3972 = vunpack.c.h.b16 %v3629
        %v3973 = vunpack.c.l.b16 %v3630
        %v3974 = vunpack.c.h.b16 %v3630
        %v3975 = vunpack.c.l.b16 %v3631
        %v3976 = vunpack.c.h.b16 %v3631
        %v3977 = vunpack.c.l.b16 %v3632
        %v3978 = vunpack.c.h.b16 %v3632
        %v3979 = vunpack.c.l.b16 %v3633
        %v3980 = vunpack.c.h.b16 %v3633
        %v3981 = vunpack.c.l.b16 %v3634
        %v3982 = vunpack.c.h.b16 %v3634
        %v3983 = vunpack.c.l.b16 %v3635
        %v3984 = vunpack.c.h.b16 %v3635
        %v3985 = vunpack.c.l.b16 %v3636
        %v3986 = vunpack.c.h.b16 %v3636
        %v3987 = vunpack.c.l.b16 %v3637
        %v3988 = vunpack.c.h.b16 %v3637
        %v3989 = vunpack.c.l.b16 %v3638
        %v3990 = vunpack.c.h.b16 %v3638
        %v3991 = vunpack.c.l.b16 %v3639
        %v3992 = vunpack.c.h.b16 %v3639
        %v3993 = vunpack.c.l.b16 %v3640
        %v3994 = vunpack.c.h.b16 %v3640
        %v3995 = vunpack.c.l.b16 %v3641
        %v3996 = vunpack.c.h.b16 %v3641
        %v3997 = vunpack.c.l.b16 %v3642
        %v3998 = vunpack.c.h.b16 %v3642
        %v3999 = vunpack.c.l.b16 %v3643
        %v4000 = vunpack.c.h.b16 %v3643
        %v4001 = vunpack.c.l.b16 %v3644
        %v4002 = vunpack.c.h.b16 %v3644
        %v4003 = vunpack.c.l.b16 %v3645
        %v4004 = vunpack.c.h.b16 %v3645
        %v4005 = vunpack.c.l.b16 %v3646
        %v4006 = vunpack.c.h.b16 %v3646
        %v4007 = vunpack.c.l.b16 %v3647
        %v4008 = vunpack.c.h.b16 %v3647
        %v4009 = vunpack.c.l.b16 %v3648
        %v4010 = vunpack.c.h.b16 %v3648
        %v4011 = vunpack.c.l.b16 %v3649
        %v4012 = vunpack.c.h.b16 %v3649
        %v4013 = vunpack.c.l.b16 %v3650
        %v4014 = vunpack.c.h.b16 %v3650
        %v4015 = vunpack.c.l.b16 %v3651
        %v4016 = vunpack.c.h.b16 %v3651
        %v4017 = vunpack.c.l.b16 %v3652
        %v4018 = vunpack.c.h.b16 %v3652
        %v4019 = vunpack.c.l.b16 %v3653
        %v4020 = vunpack.c.h.b16 %v3653
        %v4021 = vunpack.c.l.b16 %v3654
        %v4022 = vunpack.c.h.b16 %v3654
        %v4023 = vunpack.c.l.b16 %v3655
        %v4024 = vunpack.c.h.b16 %v3655
        %v4025 = vunpack.c.l.b16 %v3656
        %v4026 = vunpack.c.h.b16 %v3656
        %v4027 = vunpack.c.l.b16 %v3657
        %v4028 = vunpack.c.h.b16 %v3657
        %v4029 = vunpack.c.l.b16 %v3658
        %v4030 = vunpack.c.h.b16 %v3658
        %v4031 = vunpack.c.l.b16 %v3659
        %v4032 = vunpack.c.h.b16 %v3659
        %v4033 = vunpack.c.l.b16 %v3660
        %v4034 = vunpack.c.h.b16 %v3660
        %v4035 = vunpack.c.l.b16 %v3661
        %v4036 = vunpack.c.h.b16 %v3661
        %v4037 = vunpack.c.l.b16 %v3662
        %v4038 = vunpack.c.h.b16 %v3662
        %v4039 = vunpack.c.l.b16 %v3663
        %v4040 = vunpack.c.h.b16 %v3663
        %v4041 = vunpack.c.l.b16 %v3664
        %v4042 = vunpack.c.h.b16 %v3664
        %v4043 = vunpack.c.l.b16 %v3665
        %v4044 = vunpack.c.h.b16 %v3665
        %v4045 = vunpack.c.l.b16 %v3666
        %v4046 = vunpack.c.h.b16 %v3666
        %v4047 = vunpack.c.l.b16 %v3667
        %v4048 = vunpack.c.h.b16 %v3667
        %v4049 = vunpack.c.l.b16 %v3668
        %v4050 = vunpack.c.h.b16 %v3668
        %v4051 = vunpack.c.l.b16 %v3669
        %v4052 = vunpack.c.h.b16 %v3669
        %v4053 = vunpack.c.l.b16 %v3670
        %v4054 = vunpack.c.h.b16 %v3670
        %v4055 = vunpack.c.l.b16 %v3671
        %v4056 = vunpack.c.h.b16 %v3671
        %v4057 = vunpack.c.l.b16 %v3672
        %v4058 = vunpack.c.h.b16 %v3672
        %v4059 = vunpack.c.l.b16 %v3673
        %v4060 = vunpack.c.h.b16 %v3673
        %v4061 = vunpack.c.l.b16 %v3674
        %v4062 = vunpack.c.h.b16 %v3674
        %v4063 = vunpack.c.l.b16 %v3675
        %v4064 = vunpack.c.h.b16 %v3675
        %v4065 = vunpack.c.l.b16 %v3676
        %v4066 = vunpack.c.h.b16 %v3676
        %v4067 = vunpack.c.l.b16 %v3677
        %v4068 = vunpack.c.h.b16 %v3677
        %v4069 = vunpack.c.l.b16 %v3678
        %v4070 = vunpack.c.h.b16 %v3678
        %v4071 = vunpack.c.l.b16 %v3679
        %v4072 = vunpack.c.h.b16 %v3679
        %v4073 = vunpack.c.l.b16 %v3680
        %v4074 = vunpack.c.h.b16 %v3680
        %v4075 = vunpack.c.l.b16 %v3681
        %v4076 = vunpack.c.h.b16 %v3681
        %v4077 = vunpack.c.l.b16 %v3682
        %v4078 = vunpack.c.h.b16 %v3682
        %v4079 = vunpack.c.l.b16 %v3683
        %v4080 = vunpack.c.h.b16 %v3683
        %v4081 = vunpack.c.l.b16 %v3684
        %v4082 = vunpack.c.h.b16 %v3684
        %v4083 = vunpack.c.l.b16 %v3685
        %v4084 = vunpack.c.h.b16 %v3685
        %v4085 = vunpack.c.l.b16 %v3686
        %v4086 = vunpack.c.h.b16 %v3686
        %v4087 = vunpack.c.l.b16 %v3687
        %v4088 = vunpack.c.h.b16 %v3687
        %v4089 = vunpack.c.l.b16 %v3688
        %v4090 = vunpack.c.h.b16 %v3688
        %v4091 = vunpack.c.l.b16 %v3689
        %v4092 = vunpack.c.h.b16 %v3689
        %v4093 = vunpack.c.l.b16 %v3690
        %v4094 = vunpack.c.h.b16 %v3690
        %v4095 = vunpack.c.l.b16 %v3691
        %v4096 = vunpack.c.h.b16 %v3691
        %v4097 = vunpack.c.l.b16 %v3692
        %v4098 = vunpack.c.h.b16 %v3692
        %v4099 = vunpack.c.l.b16 %v3693
        %v4100 = vunpack.c.h.b16 %v3693
        %v4101 = vunpack.c.l.b16 %v3694
        %v4102 = vunpack.c.h.b16 %v3694
        %v4103 = vunpack.c.l.b16 %v3695
        %v4104 = vunpack.c.h.b16 %v3695
        %v4105 = vunpack.c.l.b16 %v3696
        %v4106 = vunpack.c.h.b16 %v3696
        %v4107 = vunpack.c.l.b16 %v3697
        %v4108 = vunpack.c.h.b16 %v3697
        %v4109 = vunpack.c.l.b16 %v3698
        %v4110 = vunpack.c.h.b16 %v3698
        %v4111 = vunpack.c.l.b16 %v3699
        %v4112 = vunpack.c.h.b16 %v3699
        %v4113 = vunpack.c.l.b16 %v3700
        %v4114 = vunpack.c.h.b16 %v3700
        %v4115 = vunpack.c.l.b16 %v3701
        %v4116 = vunpack.c.h.b16 %v3701
        %v4117 = vunpack.c.l.b16 %v3702
        %v4118 = vunpack.c.h.b16 %v3702
        %v4119 = vunpack.c.l.b16 %v3703
        %v4120 = vunpack.c.h.b16 %v3703
        %v4121 = vunpack.c.l.b16 %v3704
        %v4122 = vunpack.c.h.b16 %v3704
        %v4123 = vunpack.c.l.b16 %v3705
        %v4124 = vunpack.c.h.b16 %v3705
        %v4125 = vunpack.c.l.b16 %v3706
        %v4126 = vunpack.c.h.b16 %v3706
        %v4127 = vunpack.c.l.b16 %v3707
        %v4128 = vunpack.c.h.b16 %v3707
        %v4129 = vunpack.c.l.b16 %v3708
        %v4130 = vunpack.c.h.b16 %v3708
        %v4131 = vunpack.c.l.b16 %v3709
        %v4132 = vunpack.c.h.b16 %v3709
        %v4133 = vunpack.c.l.b16 %v3710
        %v4134 = vunpack.c.h.b16 %v3710
        %v4135 = vunpack.c.l.b16 %v3711
        %v4136 = vunpack.c.h.b16 %v3711
        %v4137 = vunpack.c.l.b16 %v3712
        %v4138 = vunpack.c.h.b16 %v3712
        %v4139 = vunpack.c.l.b16 %v3713
        %v4140 = vunpack.c.h.b16 %v3713
        %v4141 = vunpack.c.l.b16 %v3714
        %v4142 = vunpack.c.h.b16 %v3714
        %v4143 = vunpack.c.l.b16 %v3715
        %v4144 = vunpack.c.h.b16 %v3715
        %v4145 = vunpack.c.l.b16 %v3716
        %v4146 = vunpack.c.h.b16 %v3716
        %v4147 = vunpack.c.l.b16 %v3717
        %v4148 = vunpack.c.h.b16 %v3717
        %v4149 = vunpack.c.l.b16 %v3718
        %v4150 = vunpack.c.h.b16 %v3718
        %v4151 = vunpack.c.l.b16 %v3719
        %v4152 = vunpack.c.h.b16 %v3719
        %v4153 = vunpack.c.l.b16 %v3720
        %v4154 = vunpack.c.h.b16 %v3720
        %v4155 = vunpack.c.l.b16 %v3721
        %v4156 = vunpack.c.h.b16 %v3721
        %v4157 = vunpack.c.l.b16 %v3722
        %v4158 = vunpack.c.h.b16 %v3722
        %v4159 = vunpack.c.l.b16 %v3723
        %v4160 = vunpack.c.h.b16 %v3723
        %v4161 = vunpack.c.l.b16 %v3724
        %v4162 = vunpack.c.h.b16 %v3724
        %v4163 = vunpack.c.l.b16 %v3725
        %v4164 = vunpack.c.h.b16 %v3725
        %v4165 = vunpack.c.l.b16 %v3726
        %v4166 = vunpack.c.h.b16 %v3726
        %v4167 = vunpack.c.l.b16 %v3727
        %v4168 = vunpack.c.h.b16 %v3727
        %v4169 = vunpack.c.l.b16 %v3728
        %v4170 = vunpack.c.h.b16 %v3728
        %v4171 = vunpack.c.l.b16 %v3729
        %v4172 = vunpack.c.h.b16 %v3729
        %v4173 = vunpack.c.l.b16 %v3730
        %v4174 = vunpack.c.h.b16 %v3730
        %v4175 = vunpack.c.l.b16 %v3731
        %v4176 = vunpack.c.h.b16 %v3731
        %v4177 = vunpack.c.l.b16 %v3732
        %v4178 = vunpack.c.h.b16 %v3732
        %v4179 = vunpack.c.l.b16 %v3733
        %v4180 = vunpack.c.h.b16 %v3733
        %v4181 = vunpack.c.l.b16 %v3734
        %v4182 = vunpack.c.h.b16 %v3734
        %v4183 = vunpack.c.l.b16 %v3735
        %v4184 = vunpack.c.h.b16 %v3735
        %v4185 = vunpack.c.l.b16 %v3736
        %v4186 = vunpack.c.h.b16 %v3736
        %v4187 = vunpack.c.l.b16 %v3737
        %v4188 = vunpack.c.h.b16 %v3737
        %v4189 = vunpack.c.l.b16 %v3738
        %v4190 = vunpack.c.h.b16 %v3738
        %v4191 = vunpack.c.l.b16 %v3739
        %v4192 = vunpack.c.h.b16 %v3739
        %v4193 = vunpack.c.l.b16 %v3740
        %v4194 = vunpack.c.h.b16 %v3740
        %v4195 = vunpack.c.l.b16 %v3741
        %v4196 = vunpack.c.h.b16 %v3741
        %v4197 = vunpack.c.l.b16 %v3742
        %v4198 = vunpack.c.h.b16 %v3742
        %v4199 = vunpack.c.l.b16 %v3743
        %v4200 = vunpack.c.h.b16 %v3743
        %v4201 = vunpack.c.l.b16 %v3744
        %v4202 = vunpack.c.h.b16 %v3744
        %v4203 = vunpack.c.l.b16 %v3745
        %v4204 = vunpack.c.h.b16 %v3745
        %v4205 = vunpack.c.l.b16 %v3746
        %v4206 = vunpack.c.h.b16 %v3746
        %v4207 = vunpack.c.l.b16 %v3747
        %v4208 = vunpack.c.h.b16 %v3747
        %v4209 = vunpack.c.l.b16 %v3748
        %v4210 = vunpack.c.h.b16 %v3748
        %v4211 = vpack.c.b16 %v3959, %v3955
        %v4212 = vpack.c.b16 %v3960, %v3956
        %v4213 = vpack.c.b16 %v3961, %v3957
        %v4214 = vpack.c.b16 %v3962, %v3958
        %v4215 = vpack.c.b16 %v3967, %v3963
        %v4216 = vpack.c.b16 %v3968, %v3964
        %v4217 = vpack.c.b16 %v3969, %v3965
        %v4218 = vpack.c.b16 %v3970, %v3966
        %v4219 = vpack.c.b16 %v3975, %v3971
        %v4220 = vpack.c.b16 %v3976, %v3972
        %v4221 = vpack.c.b16 %v3977, %v3973
        %v4222 = vpack.c.b16 %v3978, %v3974
        %v4223 = vpack.c.b16 %v3983, %v3979
        %v4224 = vpack.c.b16 %v3984, %v3980
        %v4225 = vpack.c.b16 %v3985, %v3981
        %v4226 = vpack.c.b16 %v3986, %v3982
        %v4227 = vpack.c.b16 %v3991, %v3987
        %v4228 = vpack.c.b16 %v3992, %v3988
        %v4229 = vpack.c.b16 %v3993, %v3989
        %v4230 = vpack.c.b16 %v3994, %v3990
        %v4231 = vpack.c.b16 %v3999, %v3995
        %v4232 = vpack.c.b16 %v4000, %v3996
        %v4233 = vpack.c.b16 %v4001, %v3997
        %v4234 = vpack.c.b16 %v4002, %v3998
        %v4235 = vpack.c.b16 %v4007, %v4003
        %v4236 = vpack.c.b16 %v4008, %v4004
        %v4237 = vpack.c.b16 %v4009, %v4005
        %v4238 = vpack.c.b16 %v4010, %v4006
        %v4239 = vpack.c.b16 %v4015, %v4011
        %v4240 = vpack.c.b16 %v4016, %v4012
        %v4241 = vpack.c.b16 %v4017, %v4013
        %v4242 = vpack.c.b16 %v4018, %v4014
        %v4243 = vpack.c.b16 %v4023, %v4019
        %v4244 = vpack.c.b16 %v4024, %v4020
        %v4245 = vpack.c.b16 %v4025, %v4021
        %v4246 = vpack.c.b16 %v4026, %v4022
        %v4247 = vpack.c.b16 %v4031, %v4027
        %v4248 = vpack.c.b16 %v4032, %v4028
        %v4249 = vpack.c.b16 %v4033, %v4029
        %v4250 = vpack.c.b16 %v4034, %v4030
        %v4251 = vpack.c.b16 %v4039, %v4035
        %v4252 = vpack.c.b16 %v4040, %v4036
        %v4253 = vpack.c.b16 %v4041, %v4037
        %v4254 = vpack.c.b16 %v4042, %v4038
        %v4255 = vpack.c.b16 %v4047, %v4043
        %v4256 = vpack.c.b16 %v4048, %v4044
        %v4257 = vpack.c.b16 %v4049, %v4045
        %v4258 = vpack.c.b16 %v4050, %v4046
        %v4259 = vpack.c.b16 %v4055, %v4051
        %v4260 = vpack.c.b16 %v4056, %v4052
        %v4261 = vpack.c.b16 %v4057, %v4053
        %v4262 = vpack.c.b16 %v4058, %v4054
        %v4263 = vpack.c.b16 %v4063, %v4059
        %v4264 = vpack.c.b16 %v4064, %v4060
        %v4265 = vpack.c.b16 %v4065, %v4061
        %v4266 = vpack.c.b16 %v4066, %v4062
        %v4267 = vpack.c.b16 %v4071, %v4067
        %v4268 = vpack.c.b16 %v4072, %v4068
        %v4269 = vpack.c.b16 %v4073, %v4069
        %v4270 = vpack.c.b16 %v4074, %v4070
        %v4271 = vpack.c.b16 %v4079, %v4075
        %v4272 = vpack.c.b16 %v4080, %v4076
        %v4273 = vpack.c.b16 %v4081, %v4077
        %v4274 = vpack.c.b16 %v4082, %v4078
        %v4275 = vpack.c.b16 %v4087, %v4083
        %v4276 = vpack.c.b16 %v4088, %v4084
        %v4277 = vpack.c.b16 %v4089, %v4085
        %v4278 = vpack.c.b16 %v4090, %v4086
        %v4279 = vpack.c.b16 %v4095, %v4091
        %v4280 = vpack.c.b16 %v4096, %v4092
        %v4281 = vpack.c.b16 %v4097, %v4093
        %v4282 = vpack.c.b16 %v4098, %v4094
        %v4283 = vpack.c.b16 %v4103, %v4099
        %v4284 = vpack.c.b16 %v4104, %v4100
        %v4285 = vpack.c.b16 %v4105, %v4101
        %v4286 = vpack.c.b16 %v4106, %v4102
        %v4287 = vpack.c.b16 %v4111, %v4107
        %v4288 = vpack.c.b16 %v4112, %v4108
        %v4289 = vpack.c.b16 %v4113, %v4109
        %v4290 = vpack.c.b16 %v4114, %v4110
        %v4291 = vpack.c.b16 %v4119, %v4115
        %v4292 = vpack.c.b16 %v4120, %v4116
        %v4293 = vpack.c.b16 %v4121, %v4117
        %v4294 = vpack.c.b16 %v4122, %v4118
        %v4295 = vpack.c.b16 %v4127, %v4123
        %v4296 = vpack.c.b16 %v4128, %v4124
        %v4297 = vpack.c.b16 %v4129, %v4125
        %v4298 = vpack.c.b16 %v4130, %v4126
        %v4299 = vpack.c.b16 %v4135, %v4131
        %v4300 = vpack.c.b16 %v4136, %v4132
        %v4301 = vpack.c.b16 %v4137, %v4133
        %v4302 = vpack.c.b16 %v4138, %v4134
        %v4303 = vpack.c.b16 %v4143, %v4139
        %v4304 = vpack.c.b16 %v4144, %v4140
        %v4305 = vpack.c.b16 %v4145, %v4141
        %v4306 = vpack.c.b16 %v4146, %v4142
        %v4307 = vpack.c.b16 %v4151, %v4147
        %v4308 = vpack.c.b16 %v4152, %v4148
        %v4309 = vpack.c.b16 %v4153, %v4149
        %v4310 = vpack.c.b16 %v4154, %v4150
        %v4311 = vpack.c.b16 %v4159, %v4155
        %v4312 = vpack.c.b16 %v4160, %v4156
        %v4313 = vpack.c.b16 %v4161, %v4157
        %v4314 = vpack.c.b16 %v4162, %v4158
        %v4315 = vpack.c.b16 %v4167, %v4163
        %v4316 = vpack.c.b16 %v4168, %v4164
        %v4317 = vpack.c.b16 %v4169, %v4165
        %v4318 = vpack.c.b16 %v4170, %v4166
        %v4319 = vpack.c.b16 %v4175, %v4171
        %v4320 = vpack.c.b16 %v4176, %v4172
        %v4321 = vpack.c.b16 %v4177, %v4173
        %v4322 = vpack.c.b16 %v4178, %v4174
        %v4323 = vpack.c.b16 %v4183, %v4179
        %v4324 = vpack.c.b16 %v4184, %v4180
        %v4325 = vpack.c.b16 %v4185, %v4181
        %v4326 = vpack.c.b16 %v4186, %v4182
        %v4327 = vpack.c.b16 %v4191, %v4187
        %v4328 = vpack.c.b16 %v4192, %v4188
        %v4329 = vpack.c.b16 %v4193, %v4189
        %v4330 = vpack.c.b16 %v4194, %v4190
        %v4331 = vpack.c.b16 %v4199, %v4195
        %v4332 = vpack.c.b16 %v4200, %v4196
        %v4333 = vpack.c.b16 %v4201, %v4197
        %v4334 = vpack.c.b16 %v4202, %v4198
        %v4335 = vpack.c.b16 %v4207, %v4203
        %v4336 = vpack.c.b16 %v4208, %v4204
        %v4337 = vpack.c.b16 %v4209, %v4205
        %v4338 = vpack.c.b16 %v4210, %v4206
        %4467 = vmatprep.subr.bf16.mxu0 %v4212
        %4468 = vmatpush1.bf16.msra.mxu0 %v4211
        %4469 = vmatprep.subr.bf16.mxu0 %v4216
        %4470 = vmatpush1.bf16.msra.mxu0 %v4215
        %4471 = vmatprep.subr.bf16.mxu0 %v4220
        %4472 = vmatpush1.bf16.msra.mxu0 %v4219
        %4473 = vmatprep.subr.bf16.mxu0 %v4224
        %4474 = vmatpush1.bf16.msra.mxu0 %v4223
        %4475 = vmatprep.subr.bf16.mxu0 %v4228
        %4476 = vmatpush1.bf16.msra.mxu0 %v4227
        %4477 = vmatprep.subr.bf16.mxu0 %v4232
        %4478 = vmatpush1.bf16.msra.mxu0 %v4231
        %4479 = vmatprep.subr.bf16.mxu0 %v4236
        %4480 = vmatpush1.bf16.msra.mxu0 %v4235
        %4481 = vmatprep.subr.bf16.mxu0 %v4240
        %4482 = vmatpush1.bf16.msra.mxu0 %v4239
        %4483 = vmatprep.subr.bf16.mxu0 %v4244
        %4484 = vmatpush1.bf16.msra.mxu0 %v4243
        %4485 = vmatprep.subr.bf16.mxu0 %v4248
        %4486 = vmatpush1.bf16.msra.mxu0 %v4247
        %4487 = vmatprep.subr.bf16.mxu0 %v4252
        %4488 = vmatpush1.bf16.msra.mxu0 %v4251
        %4489 = vmatprep.subr.bf16.mxu0 %v4256
        %4490 = vmatpush1.bf16.msra.mxu0 %v4255
        %4491 = vmatprep.subr.bf16.mxu0 %v4260
        %4492 = vmatpush1.bf16.msra.mxu0 %v4259
        %4493 = vmatprep.subr.bf16.mxu0 %v4264
        %4494 = vmatpush1.bf16.msra.mxu0 %v4263
        %4495 = vmatprep.subr.bf16.mxu0 %v4268
        %4496 = vmatpush1.bf16.msra.mxu0 %v4267
        %4497 = vmatprep.subr.bf16.mxu0 %v4272
        %4498 = vmatpush1.bf16.msra.mxu0 %v4271
        %4499 = vmatprep.mubr.bf16.mxu0 %v3798
        %4500 = vmatmul.mubr.bf16.gmra.mrb[0].mxu0 %v3786
        %v4501 = vpop.f32.mrb[0].mxu0
        %v4502 = vadd.f32 0.0, %v4501
        %v4503 = vpop.f32.mrb[0].mxu0
        %v4504 = vadd.f32 0.0, %v4503
        %v4505 = vpop.f32.mrb[0].mxu0
        %v4506 = vadd.f32 0.0, %v4505
        %v4507 = vpop.f32.mrb[0].mxu0
        %v4508 = vadd.f32 0.0, %v4507
        %4509 = vdwg.mxu0
        %4510 = vmatprep.subr.bf16.mxu0 %v4276
        %4511 = vmatpush1.bf16.msra.mxu0 %v4275
        %4512 = vmatprep.subr.bf16.mxu0 %v4280
        %4513 = vmatpush1.bf16.msra.mxu0 %v4279
        %4514 = vmatprep.subr.bf16.mxu0 %v4284
        %4515 = vmatpush1.bf16.msra.mxu0 %v4283
        %4516 = vmatprep.subr.bf16.mxu0 %v4288
        %4517 = vmatpush1.bf16.msra.mxu0 %v4287
        %4518 = vmatprep.subr.bf16.mxu0 %v4292
        %4519 = vmatpush1.bf16.msra.mxu0 %v4291
        %4520 = vmatprep.subr.bf16.mxu0 %v4296
        %4521 = vmatpush1.bf16.msra.mxu0 %v4295
        %4522 = vmatprep.subr.bf16.mxu0 %v4300
        %4523 = vmatpush1.bf16.msra.mxu0 %v4299
        %4524 = vmatprep.subr.bf16.mxu0 %v4304
        %4525 = vmatpush1.bf16.msra.mxu0 %v4303
        %4526 = vmatprep.subr.bf16.mxu0 %v4308
        %4527 = vmatpush1.bf16.msra.mxu0 %v4307
        %4528 = vmatprep.subr.bf16.mxu0 %v4312
        %4529 = vmatpush1.bf16.msra.mxu0 %v4311
        %4530 = vmatprep.subr.bf16.mxu0 %v4316
        %4531 = vmatpush1.bf16.msra.mxu0 %v4315
        %4532 = vmatprep.subr.bf16.mxu0 %v4320
        %4533 = vmatpush1.bf16.msra.mxu0 %v4319
        %4534 = vmatprep.subr.bf16.mxu0 %v4324
        %4535 = vmatpush1.bf16.msra.mxu0 %v4323
        %4536 = vmatprep.subr.bf16.mxu0 %v4328
        %4537 = vmatpush1.bf16.msra.mxu0 %v4327
        %4538 = vmatprep.subr.bf16.mxu0 %v4332
        %4539 = vmatpush1.bf16.msra.mxu0 %v4331
        %4540 = vmatprep.subr.bf16.mxu0 %v4336
        %4541 = vmatpush1.bf16.msra.mxu0 %v4335
        %4542 = vmatprep.mubr.bf16.mxu0 %v3822
        %4543 = vmatmul.mubr.bf16.gmra.mrb[0].mxu0 %v3810
        %v4544 = vpop.f32.mrb[0].mxu0
        %v4545 = vadd.f32 %v4502, %v4544
        %v4546 = vpop.f32.mrb[0].mxu0
        %v4547 = vadd.f32 %v4504, %v4546
        %v4548 = vpop.f32.mrb[0].mxu0
        %v4549 = vadd.f32 %v4506, %v4548
        %v4550 = vpop.f32.mrb[0].mxu0
        %v4551 = vadd.f32 %v4508, %v4550
        %4552 = vdwg.mxu0
        %4553 = vmatprep.subr.bf16.mxu0 %v4214
        %4554 = vmatpush1.bf16.msra.mxu0 %v4213
        %4555 = vmatprep.subr.bf16.mxu0 %v4218
        %4556 = vmatpush1.bf16.msra.mxu0 %v4217
        %4557 = vmatprep.subr.bf16.mxu0 %v4222
        %4558 = vmatpush1.bf16.msra.mxu0 %v4221
        %4559 = vmatprep.subr.bf16.mxu0 %v4226
        %4560 = vmatpush1.bf16.msra.mxu0 %v4225
        %4561 = vmatprep.subr.bf16.mxu0 %v4230
        %4562 = vmatpush1.bf16.msra.mxu0 %v4229
        %4563 = vmatprep.subr.bf16.mxu0 %v4234
        %4564 = vmatpush1.bf16.msra.mxu0 %v4233
        %4565 = vmatprep.subr.bf16.mxu0 %v4238
        %4566 = vmatpush1.bf16.msra.mxu0 %v4237
        %4567 = vmatprep.subr.bf16.mxu0 %v4242
        %4568 = vmatpush1.bf16.msra.mxu0 %v4241
        %4569 = vmatprep.subr.bf16.mxu0 %v4246
        %4570 = vmatpush1.bf16.msra.mxu0 %v4245
        %4571 = vmatprep.subr.bf16.mxu0 %v4250
        %4572 = vmatpush1.bf16.msra.mxu0 %v4249
        %4573 = vmatprep.subr.bf16.mxu0 %v4254
        %4574 = vmatpush1.bf16.msra.mxu0 %v4253
        %4575 = vmatprep.subr.bf16.mxu0 %v4258
        %4576 = vmatpush1.bf16.msra.mxu0 %v4257
        %4577 = vmatprep.subr.bf16.mxu0 %v4262
        %4578 = vmatpush1.bf16.msra.mxu0 %v4261
        %4579 = vmatprep.subr.bf16.mxu0 %v4266
        %4580 = vmatpush1.bf16.msra.mxu0 %v4265
        %4581 = vmatprep.subr.bf16.mxu0 %v4270
        %4582 = vmatpush1.bf16.msra.mxu0 %v4269
        %4583 = vmatprep.subr.bf16.mxu0 %v4274
        %4584 = vmatpush1.bf16.msra.mxu0 %v4273
        %4585 = vmatprep.mubr.bf16.mxu0 %v3798
        %4586 = vmatmul.mubr.bf16.gmra.mrb[0].mxu0 %v3786
        %v4587 = vpop.f32.mrb[0].mxu0
        %v4588 = vadd.f32 0.0, %v4587
        %v4589 = vpop.f32.mrb[0].mxu0
        %v4590 = vadd.f32 0.0, %v4589
        %v4591 = vpop.f32.mrb[0].mxu0
        %v4592 = vadd.f32 0.0, %v4591
        %v4593 = vpop.f32.mrb[0].mxu0
        %v4594 = vadd.f32 0.0, %v4593
        %4595 = vdwg.mxu0
        %4596 = vmatprep.subr.bf16.mxu0 %v4278
        %4597 = vmatpush1.bf16.msra.mxu0 %v4277
        %4598 = vmatprep.subr.bf16.mxu0 %v4282
        %4599 = vmatpush1.bf16.msra.mxu0 %v4281
        %4600 = vmatprep.subr.bf16.mxu0 %v4286
        %4601 = vmatpush1.bf16.msra.mxu0 %v4285
        %4602 = vmatprep.subr.bf16.mxu0 %v4290
        %4603 = vmatpush1.bf16.msra.mxu0 %v4289
        %4604 = vmatprep.subr.bf16.mxu0 %v4294
        %4605 = vmatpush1.bf16.msra.mxu0 %v4293
        %4606 = vmatprep.subr.bf16.mxu0 %v4298
        %4607 = vmatpush1.bf16.msra.mxu0 %v4297
        %4608 = vmatprep.subr.bf16.mxu0 %v4302
        %4609 = vmatpush1.bf16.msra.mxu0 %v4301
        %4610 = vmatprep.subr.bf16.mxu0 %v4306
        %4611 = vmatpush1.bf16.msra.mxu0 %v4305
        %4612 = vmatprep.subr.bf16.mxu0 %v4310
        %4613 = vmatpush1.bf16.msra.mxu0 %v4309
        %4614 = vmatprep.subr.bf16.mxu0 %v4314
        %4615 = vmatpush1.bf16.msra.mxu0 %v4313
        %4616 = vmatprep.subr.bf16.mxu0 %v4318
        %4617 = vmatpush1.bf16.msra.mxu0 %v4317
        %4618 = vmatprep.subr.bf16.mxu0 %v4322
        %4619 = vmatpush1.bf16.msra.mxu0 %v4321
        %4620 = vmatprep.subr.bf16.mxu0 %v4326
        %4621 = vmatpush1.bf16.msra.mxu0 %v4325
        %4622 = vmatprep.subr.bf16.mxu0 %v4330
        %4623 = vmatpush1.bf16.msra.mxu0 %v4329
        %4624 = vmatprep.subr.bf16.mxu0 %v4334
        %4625 = vmatpush1.bf16.msra.mxu0 %v4333
        %4626 = vmatprep.subr.bf16.mxu0 %v4338
        %4627 = vmatpush1.bf16.msra.mxu0 %v4337
        %4628 = vmatprep.mubr.bf16.mxu0 %v3822
        %4629 = vmatmul.mubr.bf16.gmra.mrb[0].mxu0 %v3810
        %v4630 = vpop.f32.mrb[0].mxu0
        %v4631 = vadd.f32 %v4588, %v4630
        %v4632 = vpop.f32.mrb[0].mxu0
        %v4633 = vadd.f32 %v4590, %v4632
        %v4634 = vpop.f32.mrb[0].mxu0
        %v4635 = vadd.f32 %v4592, %v4634
        %v4636 = vpop.f32.mrb[0].mxu0
        %v4637 = vadd.f32 %v4594, %v4636
        %4638 = vdwg.mxu0
        %v4771 = vunpack.c.l.b16 %v3490
        %v4772 = vunpack.c.h.b16 %v3490
        %v4773 = vunpack.c.l.b16 %v3491
        %v4774 = vunpack.c.h.b16 %v3491
        %v4775 = vunpack.c.l.b16 %v3492
        %v4776 = vunpack.c.h.b16 %v3492
        %v4777 = vunpack.c.l.b16 %v3493
        %v4778 = vunpack.c.h.b16 %v3493
        %v4779 = vunpack.c.l.b16 %v3494
        %v4780 = vunpack.c.h.b16 %v3494
        %v4781 = vunpack.c.l.b16 %v3495
        %v4782 = vunpack.c.h.b16 %v3495
        %v4783 = vunpack.c.l.b16 %v3496
        %v4784 = vunpack.c.h.b16 %v3496
        %v4785 = vunpack.c.l.b16 %v3497
        %v4786 = vunpack.c.h.b16 %v3497
        %v4787 = vunpack.c.l.b16 %v3498
        %v4788 = vunpack.c.h.b16 %v3498
        %v4789 = vunpack.c.l.b16 %v3499
        %v4790 = vunpack.c.h.b16 %v3499
        %v4791 = vunpack.c.l.b16 %v3500
        %v4792 = vunpack.c.h.b16 %v3500
        %v4793 = vunpack.c.l.b16 %v3501
        %v4794 = vunpack.c.h.b16 %v3501
        %v4795 = vunpack.c.l.b16 %v3502
        %v4796 = vunpack.c.h.b16 %v3502
        %v4797 = vunpack.c.l.b16 %v3503
        %v4798 = vunpack.c.h.b16 %v3503
        %v4799 = vunpack.c.l.b16 %v3504
        %v4800 = vunpack.c.h.b16 %v3504
        %v4801 = vunpack.c.l.b16 %v3505
        %v4802 = vunpack.c.h.b16 %v3505
        %v4803 = vunpack.c.l.b16 %v3506
        %v4804 = vunpack.c.h.b16 %v3506
        %v4805 = vunpack.c.l.b16 %v3507
        %v4806 = vunpack.c.h.b16 %v3507
        %v4807 = vunpack.c.l.b16 %v3508
        %v4808 = vunpack.c.h.b16 %v3508
        %v4809 = vunpack.c.l.b16 %v3509
        %v4810 = vunpack.c.h.b16 %v3509
        %v4811 = vunpack.c.l.b16 %v3510
        %v4812 = vunpack.c.h.b16 %v3510
        %v4813 = vunpack.c.l.b16 %v3511
        %v4814 = vunpack.c.h.b16 %v3511
        %v4815 = vunpack.c.l.b16 %v3512
        %v4816 = vunpack.c.h.b16 %v3512
        %v4817 = vunpack.c.l.b16 %v3513
        %v4818 = vunpack.c.h.b16 %v3513
        %v4819 = vunpack.c.l.b16 %v3514
        %v4820 = vunpack.c.h.b16 %v3514
        %v4821 = vunpack.c.l.b16 %v3515
        %v4822 = vunpack.c.h.b16 %v3515
        %v4823 = vunpack.c.l.b16 %v3516
        %v4824 = vunpack.c.h.b16 %v3516
        %v4825 = vunpack.c.l.b16 %v3517
        %v4826 = vunpack.c.h.b16 %v3517
        %v4827 = vunpack.c.l.b16 %v3518
        %v4828 = vunpack.c.h.b16 %v3518
        %v4829 = vunpack.c.l.b16 %v3519
        %v4830 = vunpack.c.h.b16 %v3519
        %v4831 = vunpack.c.l.b16 %v3520
        %v4832 = vunpack.c.h.b16 %v3520
        %v4833 = vunpack.c.l.b16 %v3521
        %v4834 = vunpack.c.h.b16 %v3521
        %v4835 = vunpack.c.l.b16 %v3522
        %v4836 = vunpack.c.h.b16 %v3522
        %v4837 = vunpack.c.l.b16 %v3523
        %v4838 = vunpack.c.h.b16 %v3523
        %v4839 = vunpack.c.l.b16 %v3524
        %v4840 = vunpack.c.h.b16 %v3524
        %v4841 = vunpack.c.l.b16 %v3525
        %v4842 = vunpack.c.h.b16 %v3525
        %v4843 = vunpack.c.l.b16 %v3526
        %v4844 = vunpack.c.h.b16 %v3526
        %v4845 = vunpack.c.l.b16 %v3527
        %v4846 = vunpack.c.h.b16 %v3527
        %v4847 = vunpack.c.l.b16 %v3528
        %v4848 = vunpack.c.h.b16 %v3528
        %v4849 = vunpack.c.l.b16 %v3529
        %v4850 = vunpack.c.h.b16 %v3529
        %v4851 = vunpack.c.l.b16 %v3530
        %v4852 = vunpack.c.h.b16 %v3530
        %v4853 = vunpack.c.l.b16 %v3531
        %v4854 = vunpack.c.h.b16 %v3531
        %v4855 = vunpack.c.l.b16 %v3532
        %v4856 = vunpack.c.h.b16 %v3532
        %v4857 = vunpack.c.l.b16 %v3533
        %v4858 = vunpack.c.h.b16 %v3533
        %v4859 = vunpack.c.l.b16 %v3534
        %v4860 = vunpack.c.h.b16 %v3534
        %v4861 = vunpack.c.l.b16 %v3535
        %v4862 = vunpack.c.h.b16 %v3535
        %v4863 = vunpack.c.l.b16 %v3536
        %v4864 = vunpack.c.h.b16 %v3536
        %v4865 = vunpack.c.l.b16 %v3537
        %v4866 = vunpack.c.h.b16 %v3537
        %v4867 = vunpack.c.l.b16 %v3538
        %v4868 = vunpack.c.h.b16 %v3538
        %v4869 = vunpack.c.l.b16 %v3539
        %v4870 = vunpack.c.h.b16 %v3539
        %v4871 = vunpack.c.l.b16 %v3540
        %v4872 = vunpack.c.h.b16 %v3540
        %v4873 = vunpack.c.l.b16 %v3541
        %v4874 = vunpack.c.h.b16 %v3541
        %v4875 = vunpack.c.l.b16 %v3542
        %v4876 = vunpack.c.h.b16 %v3542
        %v4877 = vunpack.c.l.b16 %v3543
        %v4878 = vunpack.c.h.b16 %v3543
        %v4879 = vunpack.c.l.b16 %v3544
        %v4880 = vunpack.c.h.b16 %v3544
        %v4881 = vunpack.c.l.b16 %v3545
        %v4882 = vunpack.c.h.b16 %v3545
        %v4883 = vunpack.c.l.b16 %v3546
        %v4884 = vunpack.c.h.b16 %v3546
        %v4885 = vunpack.c.l.b16 %v3547
        %v4886 = vunpack.c.h.b16 %v3547
        %v4887 = vunpack.c.l.b16 %v3548
        %v4888 = vunpack.c.h.b16 %v3548
        %v4889 = vunpack.c.l.b16 %v3549
        %v4890 = vunpack.c.h.b16 %v3549
        %v4891 = vunpack.c.l.b16 %v3550
        %v4892 = vunpack.c.h.b16 %v3550
        %v4893 = vunpack.c.l.b16 %v3551
        %v4894 = vunpack.c.h.b16 %v3551
        %v4895 = vunpack.c.l.b16 %v3552
        %v4896 = vunpack.c.h.b16 %v3552
        %v4897 = vunpack.c.l.b16 %v3553
        %v4898 = vunpack.c.h.b16 %v3553
        %v4899 = vunpack.c.l.b16 %v3554
        %v4900 = vunpack.c.h.b16 %v3554
        %v4901 = vunpack.c.l.b16 %v3555
        %v4902 = vunpack.c.h.b16 %v3555
        %v4903 = vunpack.c.l.b16 %v3556
        %v4904 = vunpack.c.h.b16 %v3556
        %v4905 = vunpack.c.l.b16 %v3557
        %v4906 = vunpack.c.h.b16 %v3557
        %v4907 = vunpack.c.l.b16 %v3558
        %v4908 = vunpack.c.h.b16 %v3558
        %v4909 = vunpack.c.l.b16 %v3559
        %v4910 = vunpack.c.h.b16 %v3559
        %v4911 = vunpack.c.l.b16 %v3560
        %v4912 = vunpack.c.h.b16 %v3560
        %v4913 = vunpack.c.l.b16 %v3561
        %v4914 = vunpack.c.h.b16 %v3561
        %v4915 = vunpack.c.l.b16 %v3562
        %v4916 = vunpack.c.h.b16 %v3562
        %v4917 = vunpack.c.l.b16 %v3563
        %v4918 = vunpack.c.h.b16 %v3563
        %v4919 = vunpack.c.l.b16 %v3564
        %v4920 = vunpack.c.h.b16 %v3564
        %v4921 = vunpack.c.l.b16 %v3565
        %v4922 = vunpack.c.h.b16 %v3565
        %v4923 = vunpack.c.l.b16 %v3566
        %v4924 = vunpack.c.h.b16 %v3566
        %v4925 = vunpack.c.l.b16 %v3567
        %v4926 = vunpack.c.h.b16 %v3567
        %v4927 = vunpack.c.l.b16 %v3568
        %v4928 = vunpack.c.h.b16 %v3568
        %v4929 = vunpack.c.l.b16 %v3569
        %v4930 = vunpack.c.h.b16 %v3569
        %v4931 = vunpack.c.l.b16 %v3570
        %v4932 = vunpack.c.h.b16 %v3570
        %v4933 = vunpack.c.l.b16 %v3571
        %v4934 = vunpack.c.h.b16 %v3571
        %v4935 = vunpack.c.l.b16 %v3572
        %v4936 = vunpack.c.h.b16 %v3572
        %v4937 = vunpack.c.l.b16 %v3573
        %v4938 = vunpack.c.h.b16 %v3573
        %v4939 = vunpack.c.l.b16 %v3574
        %v4940 = vunpack.c.h.b16 %v3574
        %v4941 = vunpack.c.l.b16 %v3575
        %v4942 = vunpack.c.h.b16 %v3575
        %v4943 = vunpack.c.l.b16 %v3576
        %v4944 = vunpack.c.h.b16 %v3576
        %v4945 = vunpack.c.l.b16 %v3577
        %v4946 = vunpack.c.h.b16 %v3577
        %v4947 = vunpack.c.l.b16 %v3578
        %v4948 = vunpack.c.h.b16 %v3578
        %v4949 = vunpack.c.l.b16 %v3579
        %v4950 = vunpack.c.h.b16 %v3579
        %v4951 = vunpack.c.l.b16 %v3580
        %v4952 = vunpack.c.h.b16 %v3580
        %v4953 = vunpack.c.l.b16 %v3581
        %v4954 = vunpack.c.h.b16 %v3581
        %v4955 = vunpack.c.l.b16 %v3582
        %v4956 = vunpack.c.h.b16 %v3582
        %v4957 = vunpack.c.l.b16 %v3583
        %v4958 = vunpack.c.h.b16 %v3583
        %v4959 = vunpack.c.l.b16 %v3584
        %v4960 = vunpack.c.h.b16 %v3584
        %v4961 = vunpack.c.l.b16 %v3585
        %v4962 = vunpack.c.h.b16 %v3585
        %v4963 = vunpack.c.l.b16 %v3586
        %v4964 = vunpack.c.h.b16 %v3586
        %v4965 = vunpack.c.l.b16 %v3587
        %v4966 = vunpack.c.h.b16 %v3587
        %v4967 = vunpack.c.l.b16 %v3588
        %v4968 = vunpack.c.h.b16 %v3588
        %v4969 = vunpack.c.l.b16 %v3589
        %v4970 = vunpack.c.h.b16 %v3589
        %v4971 = vunpack.c.l.b16 %v3590
        %v4972 = vunpack.c.h.b16 %v3590
        %v4973 = vunpack.c.l.b16 %v3591
        %v4974 = vunpack.c.h.b16 %v3591
        %v4975 = vunpack.c.l.b16 %v3592
        %v4976 = vunpack.c.h.b16 %v3592
        %v4977 = vunpack.c.l.b16 %v3593
        %v4978 = vunpack.c.h.b16 %v3593
        %v4979 = vunpack.c.l.b16 %v3594
        %v4980 = vunpack.c.h.b16 %v3594
        %v4981 = vunpack.c.l.b16 %v3595
        %v4982 = vunpack.c.h.b16 %v3595
        %v4983 = vunpack.c.l.b16 %v3596
        %v4984 = vunpack.c.h.b16 %v3596
        %v4985 = vunpack.c.l.b16 %v3597
        %v4986 = vunpack.c.h.b16 %v3597
        %v4987 = vunpack.c.l.b16 %v3598
        %v4988 = vunpack.c.h.b16 %v3598
        %v4989 = vunpack.c.l.b16 %v3599
        %v4990 = vunpack.c.h.b16 %v3599
        %v4991 = vunpack.c.l.b16 %v3600
        %v4992 = vunpack.c.h.b16 %v3600
        %v4993 = vunpack.c.l.b16 %v3601
        %v4994 = vunpack.c.h.b16 %v3601
        %v4995 = vunpack.c.l.b16 %v3602
        %v4996 = vunpack.c.h.b16 %v3602
        %v4997 = vunpack.c.l.b16 %v3603
        %v4998 = vunpack.c.h.b16 %v3603
        %v4999 = vunpack.c.l.b16 %v3604
        %v5000 = vunpack.c.h.b16 %v3604
        %v5001 = vunpack.c.l.b16 %v3605
        %v5002 = vunpack.c.h.b16 %v3605
        %v5003 = vunpack.c.l.b16 %v3606
        %v5004 = vunpack.c.h.b16 %v3606
        %v5005 = vunpack.c.l.b16 %v3607
        %v5006 = vunpack.c.h.b16 %v3607
        %v5007 = vunpack.c.l.b16 %v3608
        %v5008 = vunpack.c.h.b16 %v3608
        %v5009 = vunpack.c.l.b16 %v3609
        %v5010 = vunpack.c.h.b16 %v3609
        %v5011 = vunpack.c.l.b16 %v3610
        %v5012 = vunpack.c.h.b16 %v3610
        %v5013 = vunpack.c.l.b16 %v3611
        %v5014 = vunpack.c.h.b16 %v3611
        %v5015 = vunpack.c.l.b16 %v3612
        %v5016 = vunpack.c.h.b16 %v3612
        %v5017 = vunpack.c.l.b16 %v3613
        %v5018 = vunpack.c.h.b16 %v3613
        %v5019 = vunpack.c.l.b16 %v3614
        %v5020 = vunpack.c.h.b16 %v3614
        %v5021 = vunpack.c.l.b16 %v3615
        %v5022 = vunpack.c.h.b16 %v3615
        %v5023 = vunpack.c.l.b16 %v3616
        %v5024 = vunpack.c.h.b16 %v3616
        %v5025 = vunpack.c.l.b16 %v3617
        %v5026 = vunpack.c.h.b16 %v3617
        %v5027 = vpack.c.b16 %v4775, %v4771
        %v5028 = vpack.c.b16 %v4776, %v4772
        %v5029 = vpack.c.b16 %v4777, %v4773
        %v5030 = vpack.c.b16 %v4778, %v4774
        %v5031 = vpack.c.b16 %v4783, %v4779
        %v5032 = vpack.c.b16 %v4784, %v4780
        %v5033 = vpack.c.b16 %v4785, %v4781
        %v5034 = vpack.c.b16 %v4786, %v4782
        %v5035 = vpack.c.b16 %v4791, %v4787
        %v5036 = vpack.c.b16 %v4792, %v4788
        %v5037 = vpack.c.b16 %v4793, %v4789
        %v5038 = vpack.c.b16 %v4794, %v4790
        %v5039 = vpack.c.b16 %v4799, %v4795
        %v5040 = vpack.c.b16 %v4800, %v4796
        %v5041 = vpack.c.b16 %v4801, %v4797
        %v5042 = vpack.c.b16 %v4802, %v4798
        %v5043 = vpack.c.b16 %v4807, %v4803
        %v5044 = vpack.c.b16 %v4808, %v4804
        %v5045 = vpack.c.b16 %v4809, %v4805
        %v5046 = vpack.c.b16 %v4810, %v4806
        %v5047 = vpack.c.b16 %v4815, %v4811
        %v5048 = vpack.c.b16 %v4816, %v4812
        %v5049 = vpack.c.b16 %v4817, %v4813
        %v5050 = vpack.c.b16 %v4818, %v4814
        %v5051 = vpack.c.b16 %v4823, %v4819
        %v5052 = vpack.c.b16 %v4824, %v4820
        %v5053 = vpack.c.b16 %v4825, %v4821
        %v5054 = vpack.c.b16 %v4826, %v4822
        %v5055 = vpack.c.b16 %v4831, %v4827
        %v5056 = vpack.c.b16 %v4832, %v4828
        %v5057 = vpack.c.b16 %v4833, %v4829
        %v5058 = vpack.c.b16 %v4834, %v4830
        %v5059 = vpack.c.b16 %v4839, %v4835
        %v5060 = vpack.c.b16 %v4840, %v4836
        %v5061 = vpack.c.b16 %v4841, %v4837
        %v5062 = vpack.c.b16 %v4842, %v4838
        %v5063 = vpack.c.b16 %v4847, %v4843
        %v5064 = vpack.c.b16 %v4848, %v4844
        %v5065 = vpack.c.b16 %v4849, %v4845
        %v5066 = vpack.c.b16 %v4850, %v4846
        %v5067 = vpack.c.b16 %v4855, %v4851
        %v5068 = vpack.c.b16 %v4856, %v4852
        %v5069 = vpack.c.b16 %v4857, %v4853
        %v5070 = vpack.c.b16 %v4858, %v4854
        %v5071 = vpack.c.b16 %v4863, %v4859
        %v5072 = vpack.c.b16 %v4864, %v4860
        %v5073 = vpack.c.b16 %v4865, %v4861
        %v5074 = vpack.c.b16 %v4866, %v4862
        %v5075 = vpack.c.b16 %v4871, %v4867
        %v5076 = vpack.c.b16 %v4872, %v4868
        %v5077 = vpack.c.b16 %v4873, %v4869
        %v5078 = vpack.c.b16 %v4874, %v4870
        %v5079 = vpack.c.b16 %v4879, %v4875
        %v5080 = vpack.c.b16 %v4880, %v4876
        %v5081 = vpack.c.b16 %v4881, %v4877
        %v5082 = vpack.c.b16 %v4882, %v4878
        %v5083 = vpack.c.b16 %v4887, %v4883
        %v5084 = vpack.c.b16 %v4888, %v4884
        %v5085 = vpack.c.b16 %v4889, %v4885
        %v5086 = vpack.c.b16 %v4890, %v4886
        %v5087 = vpack.c.b16 %v4895, %v4891
        %v5088 = vpack.c.b16 %v4896, %v4892
        %v5089 = vpack.c.b16 %v4897, %v4893
        %v5090 = vpack.c.b16 %v4898, %v4894
        %v5091 = vpack.c.b16 %v4903, %v4899
        %v5092 = vpack.c.b16 %v4904, %v4900
        %v5093 = vpack.c.b16 %v4905, %v4901
        %v5094 = vpack.c.b16 %v4906, %v4902
        %v5095 = vpack.c.b16 %v4911, %v4907
        %v5096 = vpack.c.b16 %v4912, %v4908
        %v5097 = vpack.c.b16 %v4913, %v4909
        %v5098 = vpack.c.b16 %v4914, %v4910
        %v5099 = vpack.c.b16 %v4919, %v4915
        %v5100 = vpack.c.b16 %v4920, %v4916
        %v5101 = vpack.c.b16 %v4921, %v4917
        %v5102 = vpack.c.b16 %v4922, %v4918
        %v5103 = vpack.c.b16 %v4927, %v4923
        %v5104 = vpack.c.b16 %v4928, %v4924
        %v5105 = vpack.c.b16 %v4929, %v4925
        %v5106 = vpack.c.b16 %v4930, %v4926
        %v5107 = vpack.c.b16 %v4935, %v4931
        %v5108 = vpack.c.b16 %v4936, %v4932
        %v5109 = vpack.c.b16 %v4937, %v4933
        %v5110 = vpack.c.b16 %v4938, %v4934
        %v5111 = vpack.c.b16 %v4943, %v4939
        %v5112 = vpack.c.b16 %v4944, %v4940
        %v5113 = vpack.c.b16 %v4945, %v4941
        %v5114 = vpack.c.b16 %v4946, %v4942
        %v5115 = vpack.c.b16 %v4951, %v4947
        %v5116 = vpack.c.b16 %v4952, %v4948
        %v5117 = vpack.c.b16 %v4953, %v4949
        %v5118 = vpack.c.b16 %v4954, %v4950
        %v5119 = vpack.c.b16 %v4959, %v4955
        %v5120 = vpack.c.b16 %v4960, %v4956
        %v5121 = vpack.c.b16 %v4961, %v4957
        %v5122 = vpack.c.b16 %v4962, %v4958
        %v5123 = vpack.c.b16 %v4967, %v4963
        %v5124 = vpack.c.b16 %v4968, %v4964
        %v5125 = vpack.c.b16 %v4969, %v4965
        %v5126 = vpack.c.b16 %v4970, %v4966
        %v5127 = vpack.c.b16 %v4975, %v4971
        %v5128 = vpack.c.b16 %v4976, %v4972
        %v5129 = vpack.c.b16 %v4977, %v4973
        %v5130 = vpack.c.b16 %v4978, %v4974
        %v5131 = vpack.c.b16 %v4983, %v4979
        %v5132 = vpack.c.b16 %v4984, %v4980
        %v5133 = vpack.c.b16 %v4985, %v4981
        %v5134 = vpack.c.b16 %v4986, %v4982
        %v5135 = vpack.c.b16 %v4991, %v4987
        %v5136 = vpack.c.b16 %v4992, %v4988
        %v5137 = vpack.c.b16 %v4993, %v4989
        %v5138 = vpack.c.b16 %v4994, %v4990
        %v5139 = vpack.c.b16 %v4999, %v4995
        %v5140 = vpack.c.b16 %v5000, %v4996
        %v5141 = vpack.c.b16 %v5001, %v4997
        %v5142 = vpack.c.b16 %v5002, %v4998
        %v5143 = vpack.c.b16 %v5007, %v5003
        %v5144 = vpack.c.b16 %v5008, %v5004
        %v5145 = vpack.c.b16 %v5009, %v5005
        %v5146 = vpack.c.b16 %v5010, %v5006
        %v5147 = vpack.c.b16 %v5015, %v5011
        %v5148 = vpack.c.b16 %v5016, %v5012
        %v5149 = vpack.c.b16 %v5017, %v5013
        %v5150 = vpack.c.b16 %v5018, %v5014
        %v5151 = vpack.c.b16 %v5023, %v5019
        %v5152 = vpack.c.b16 %v5024, %v5020
        %v5153 = vpack.c.b16 %v5025, %v5021
        %v5154 = vpack.c.b16 %v5026, %v5022
        %5283 = vmatprep.subr.bf16.mxu0 %v5028
        %5284 = vmatpush1.bf16.msra.mxu0 %v5027
        %5285 = vmatprep.subr.bf16.mxu0 %v5032
        %5286 = vmatpush1.bf16.msra.mxu0 %v5031
        %5287 = vmatprep.subr.bf16.mxu0 %v5036
        %5288 = vmatpush1.bf16.msra.mxu0 %v5035
        %5289 = vmatprep.subr.bf16.mxu0 %v5040
        %5290 = vmatpush1.bf16.msra.mxu0 %v5039
        %5291 = vmatprep.subr.bf16.mxu0 %v5044
        %5292 = vmatpush1.bf16.msra.mxu0 %v5043
        %5293 = vmatprep.subr.bf16.mxu0 %v5048
        %5294 = vmatpush1.bf16.msra.mxu0 %v5047
        %5295 = vmatprep.subr.bf16.mxu0 %v5052
        %5296 = vmatpush1.bf16.msra.mxu0 %v5051
        %5297 = vmatprep.subr.bf16.mxu0 %v5056
        %5298 = vmatpush1.bf16.msra.mxu0 %v5055
        %5299 = vmatprep.subr.bf16.mxu0 %v5060
        %5300 = vmatpush1.bf16.msra.mxu0 %v5059
        %5301 = vmatprep.subr.bf16.mxu0 %v5064
        %5302 = vmatpush1.bf16.msra.mxu0 %v5063
        %5303 = vmatprep.subr.bf16.mxu0 %v5068
        %5304 = vmatpush1.bf16.msra.mxu0 %v5067
        %5305 = vmatprep.subr.bf16.mxu0 %v5072
        %5306 = vmatpush1.bf16.msra.mxu0 %v5071
        %5307 = vmatprep.subr.bf16.mxu0 %v5076
        %5308 = vmatpush1.bf16.msra.mxu0 %v5075
        %5309 = vmatprep.subr.bf16.mxu0 %v5080
        %5310 = vmatpush1.bf16.msra.mxu0 %v5079
        %5311 = vmatprep.subr.bf16.mxu0 %v5084
        %5312 = vmatpush1.bf16.msra.mxu0 %v5083
        %5313 = vmatprep.subr.bf16.mxu0 %v5088
        %5314 = vmatpush1.bf16.msra.mxu0 %v5087
        %5315 = vmatprep.mubr.bf16.mxu0 %v3768
        %5316 = vmatmul.mubr.bf16.gmra.mrb[0].mxu0 %v3767
        %v5317 = vpop.f32.mrb[0].mxu0
        %v5318 = vadd.f32 %v4545, %v5317
        %v5319 = vpop.f32.mrb[0].mxu0
        %v5320 = vadd.f32 %v4547, %v5319
        %v5321 = vpop.f32.mrb[0].mxu0
        %v5322 = vadd.f32 %v4549, %v5321
        %v5323 = vpop.f32.mrb[0].mxu0
        %v5324 = vadd.f32 %v4551, %v5323
        %5325 = vdwg.mxu0
        %5326 = vmatprep.subr.bf16.mxu0 %v5092
        %5327 = vmatpush1.bf16.msra.mxu0 %v5091
        %5328 = vmatprep.subr.bf16.mxu0 %v5096
        %5329 = vmatpush1.bf16.msra.mxu0 %v5095
        %5330 = vmatprep.subr.bf16.mxu0 %v5100
        %5331 = vmatpush1.bf16.msra.mxu0 %v5099
        %5332 = vmatprep.subr.bf16.mxu0 %v5104
        %5333 = vmatpush1.bf16.msra.mxu0 %v5103
        %5334 = vmatprep.subr.bf16.mxu0 %v5108
        %5335 = vmatpush1.bf16.msra.mxu0 %v5107
        %5336 = vmatprep.subr.bf16.mxu0 %v5112
        %5337 = vmatpush1.bf16.msra.mxu0 %v5111
        %5338 = vmatprep.subr.bf16.mxu0 %v5116
        %5339 = vmatpush1.bf16.msra.mxu0 %v5115
        %5340 = vmatprep.subr.bf16.mxu0 %v5120
        %5341 = vmatpush1.bf16.msra.mxu0 %v5119
        %5342 = vmatprep.subr.bf16.mxu0 %v5124
        %5343 = vmatpush1.bf16.msra.mxu0 %v5123
        %5344 = vmatprep.subr.bf16.mxu0 %v5128
        %5345 = vmatpush1.bf16.msra.mxu0 %v5127
        %5346 = vmatprep.subr.bf16.mxu0 %v5132
        %5347 = vmatpush1.bf16.msra.mxu0 %v5131
        %5348 = vmatprep.subr.bf16.mxu0 %v5136
        %5349 = vmatpush1.bf16.msra.mxu0 %v5135
        %5350 = vmatprep.subr.bf16.mxu0 %v5140
        %5351 = vmatpush1.bf16.msra.mxu0 %v5139
        %5352 = vmatprep.subr.bf16.mxu0 %v5144
        %5353 = vmatpush1.bf16.msra.mxu0 %v5143
        %5354 = vmatprep.subr.bf16.mxu0 %v5148
        %5355 = vmatpush1.bf16.msra.mxu0 %v5147
        %5356 = vmatprep.subr.bf16.mxu0 %v5152
        %5357 = vmatpush1.bf16.msra.mxu0 %v5151
        %5358 = vmatprep.mubr.bf16.mxu0 %v3770
        %5359 = vmatmul.mubr.bf16.gmra.mrb[0].mxu0 %v3769
        %v5360 = vpop.f32.mrb[0].mxu0
        %v5361 = vadd.f32 %v5318, %v5360
        %v5362 = vpop.f32.mrb[0].mxu0
        %v5363 = vadd.f32 %v5320, %v5362
        %v5364 = vpop.f32.mrb[0].mxu0
        %v5365 = vadd.f32 %v5322, %v5364
        %v5366 = vpop.f32.mrb[0].mxu0
        %v5367 = vadd.f32 %v5324, %v5366
        %5368 = vdwg.mxu0
        %5369 = vmatprep.subr.bf16.mxu0 %v5030
        %5370 = vmatpush1.bf16.msra.mxu0 %v5029
        %5371 = vmatprep.subr.bf16.mxu0 %v5034
        %5372 = vmatpush1.bf16.msra.mxu0 %v5033
        %5373 = vmatprep.subr.bf16.mxu0 %v5038
        %5374 = vmatpush1.bf16.msra.mxu0 %v5037
        %5375 = vmatprep.subr.bf16.mxu0 %v5042
        %5376 = vmatpush1.bf16.msra.mxu0 %v5041
        %5377 = vmatprep.subr.bf16.mxu0 %v5046
        %5378 = vmatpush1.bf16.msra.mxu0 %v5045
        %5379 = vmatprep.subr.bf16.mxu0 %v5050
        %5380 = vmatpush1.bf16.msra.mxu0 %v5049
        %5381 = vmatprep.subr.bf16.mxu0 %v5054
        %5382 = vmatpush1.bf16.msra.mxu0 %v5053
        %5383 = vmatprep.subr.bf16.mxu0 %v5058
        %5384 = vmatpush1.bf16.msra.mxu0 %v5057
        %5385 = vmatprep.subr.bf16.mxu0 %v5062
        %5386 = vmatpush1.bf16.msra.mxu0 %v5061
        %5387 = vmatprep.subr.bf16.mxu0 %v5066
        %5388 = vmatpush1.bf16.msra.mxu0 %v5065
        %5389 = vmatprep.subr.bf16.mxu0 %v5070
        %5390 = vmatpush1.bf16.msra.mxu0 %v5069
        %5391 = vmatprep.subr.bf16.mxu0 %v5074
        %5392 = vmatpush1.bf16.msra.mxu0 %v5073
        %5393 = vmatprep.subr.bf16.mxu0 %v5078
        %5394 = vmatpush1.bf16.msra.mxu0 %v5077
        %5395 = vmatprep.subr.bf16.mxu0 %v5082
        %5396 = vmatpush1.bf16.msra.mxu0 %v5081
        %5397 = vmatprep.subr.bf16.mxu0 %v5086
        %5398 = vmatpush1.bf16.msra.mxu0 %v5085
        %5399 = vmatprep.subr.bf16.mxu0 %v5090
        %5400 = vmatpush1.bf16.msra.mxu0 %v5089
        %5401 = vmatprep.mubr.bf16.mxu0 %v3768
        %5402 = vmatmul.mubr.bf16.gmra.mrb[0].mxu0 %v3767
        %v5403 = vpop.f32.mrb[0].mxu0
        %v5404 = vadd.f32 %v4631, %v5403
        %v5405 = vpop.f32.mrb[0].mxu0
        %v5406 = vadd.f32 %v4633, %v5405
        %v5407 = vpop.f32.mrb[0].mxu0
        %v5408 = vadd.f32 %v4635, %v5407
        %v5409 = vpop.f32.mrb[0].mxu0
        %v5410 = vadd.f32 %v4637, %v5409
        %5411 = vdwg.mxu0
        %5412 = vmatprep.subr.bf16.mxu0 %v5094
        %5413 = vmatpush1.bf16.msra.mxu0 %v5093
        %5414 = vmatprep.subr.bf16.mxu0 %v5098
        %5415 = vmatpush1.bf16.msra.mxu0 %v5097
        %5416 = vmatprep.subr.bf16.mxu0 %v5102
        %5417 = vmatpush1.bf16.msra.mxu0 %v5101
        %5418 = vmatprep.subr.bf16.mxu0 %v5106
        %5419 = vmatpush1.bf16.msra.mxu0 %v5105
        %5420 = vmatprep.subr.bf16.mxu0 %v5110
        %5421 = vmatpush1.bf16.msra.mxu0 %v5109
        %5422 = vmatprep.subr.bf16.mxu0 %v5114
        %5423 = vmatpush1.bf16.msra.mxu0 %v5113
        %5424 = vmatprep.subr.bf16.mxu0 %v5118
        %5425 = vmatpush1.bf16.msra.mxu0 %v5117
        %5426 = vmatprep.subr.bf16.mxu0 %v5122
        %5427 = vmatpush1.bf16.msra.mxu0 %v5121
        %5428 = vmatprep.subr.bf16.mxu0 %v5126
        %5429 = vmatpush1.bf16.msra.mxu0 %v5125
        %5430 = vmatprep.subr.bf16.mxu0 %v5130
        %5431 = vmatpush1.bf16.msra.mxu0 %v5129
        %5432 = vmatprep.subr.bf16.mxu0 %v5134
        %5433 = vmatpush1.bf16.msra.mxu0 %v5133
        %5434 = vmatprep.subr.bf16.mxu0 %v5138
        %5435 = vmatpush1.bf16.msra.mxu0 %v5137
        %5436 = vmatprep.subr.bf16.mxu0 %v5142
        %5437 = vmatpush1.bf16.msra.mxu0 %v5141
        %5438 = vmatprep.subr.bf16.mxu0 %v5146
        %5439 = vmatpush1.bf16.msra.mxu0 %v5145
        %5440 = vmatprep.subr.bf16.mxu0 %v5150
        %5441 = vmatpush1.bf16.msra.mxu0 %v5149
        %5442 = vmatprep.subr.bf16.mxu0 %v5154
        %5443 = vmatpush1.bf16.msra.mxu0 %v5153
        %5444 = vmatprep.mubr.bf16.mxu0 %v3770
        %5445 = vmatmul.mubr.bf16.gmra.mrb[0].mxu0 %v3769
        %v5446 = vpop.f32.mrb[0].mxu0
        %v5447 = vadd.f32 %v5404, %v5446
        %v5448 = vpop.f32.mrb[0].mxu0
        %v5449 = vadd.f32 %v5406, %v5448
        %v5450 = vpop.f32.mrb[0].mxu0
        %v5451 = vadd.f32 %v5408, %v5450
        %v5452 = vpop.f32.mrb[0].mxu0
        %v5453 = vadd.f32 %v5410, %v5452
        %5454 = vdwg.mxu0
        %v5455 = vld [vmem:[#allocation2] sm:$0xee]
        %v5456 = vld [vmem:[#allocation2 + $0x8] sm:$0xee]
        %s5457 = scalar_lea.vmem [#allocation9], 2048
        %v5458 = vld [vmem:[%s5457] sm:$0xff]
        %v5459 = vld [vmem:[%s5457 + $0x8] sm:$0xff]
        %v5460 = vld [vmem:[%s5457 + $0x10] sm:$0xff]
        %v5461 = vld [vmem:[%s5457 + $0x18] sm:$0xff]
        %v5462 = vld [vmem:[%s5457 + $0x20] sm:$0xff]
        %v5463 = vld [vmem:[%s5457 + $0x28] sm:$0xff]
        %v5464 = vld [vmem:[%s5457 + $0x30] sm:$0xff]
        %v5465 = vld [vmem:[%s5457 + $0x38] sm:$0xff]
        %v5466 = vld [vmem:[%s5457 + $0x40] sm:$0xff]
        %v5467 = vld [vmem:[%s5457 + $0x48] sm:$0xff]
        %v5468 = vld [vmem:[%s5457 + $0x50] sm:$0xff]
        %v5469 = vld [vmem:[%s5457 + $0x58] sm:$0xff]
        %v5470 = vld [vmem:[%s5457 + $0x60] sm:$0xff]
        %v5471 = vld [vmem:[%s5457 + $0x68] sm:$0xff]
        %v5472 = vld [vmem:[%s5457 + $0x70] sm:$0xff]
        %v5473 = vld [vmem:[%s5457 + $0x78] sm:$0xff]
        %v5474 = vld [vmem:[%s5457 + $0x80] sm:$0xff]
        %v5475 = vld [vmem:[%s5457 + $0x88] sm:$0xff]
        %v5476 = vld [vmem:[%s5457 + $0x90] sm:$0xff]
        %v5477 = vld [vmem:[%s5457 + $0x98] sm:$0xff]
        %v5478 = vld [vmem:[%s5457 + $0xa0] sm:$0xff]
        %v5479 = vld [vmem:[%s5457 + $0xa8] sm:$0xff]
        %v5480 = vld [vmem:[%s5457 + $0xb0] sm:$0xff]
        %v5481 = vld [vmem:[%s5457 + $0xb8] sm:$0xff]
        %v5482 = vld [vmem:[%s5457 + $0xc0] sm:$0xff]
        %v5483 = vld [vmem:[%s5457 + $0xc8] sm:$0xff]
        %v5484 = vld [vmem:[%s5457 + $0xd0] sm:$0xff]
        %v5485 = vld [vmem:[%s5457 + $0xd8] sm:$0xff]
        %v5486 = vld [vmem:[%s5457 + $0xe0] sm:$0xff]
        %v5487 = vld [vmem:[%s5457 + $0xe8] sm:$0xff]
        %v5488 = vld [vmem:[%s5457 + $0xf0] sm:$0xff]
        %v5489 = vld [vmem:[%s5457 + $0xf8] sm:$0xff]
        %v5490 = vld [vmem:[%s5457 + $0x100] sm:$0xff]
        %v5491 = vld [vmem:[%s5457 + $0x108] sm:$0xff]
        %v5492 = vld [vmem:[%s5457 + $0x110] sm:$0xff]
        %v5493 = vld [vmem:[%s5457 + $0x118] sm:$0xff]
        %v5494 = vld [vmem:[%s5457 + $0x120] sm:$0xff]
        %v5495 = vld [vmem:[%s5457 + $0x128] sm:$0xff]
        %v5496 = vld [vmem:[%s5457 + $0x130] sm:$0xff]
        %v5497 = vld [vmem:[%s5457 + $0x138] sm:$0xff]
        %v5498 = vld [vmem:[%s5457 + $0x140] sm:$0xff]
        %v5499 = vld [vmem:[%s5457 + $0x148] sm:$0xff]
        %v5500 = vld [vmem:[%s5457 + $0x150] sm:$0xff]
        %v5501 = vld [vmem:[%s5457 + $0x158] sm:$0xff]
        %v5502 = vld [vmem:[%s5457 + $0x160] sm:$0xff]
        %v5503 = vld [vmem:[%s5457 + $0x168] sm:$0xff]
        %v5504 = vld [vmem:[%s5457 + $0x170] sm:$0xff]
        %v5505 = vld [vmem:[%s5457 + $0x178] sm:$0xff]
        %v5506 = vld [vmem:[%s5457 + $0x180] sm:$0xff]
        %v5507 = vld [vmem:[%s5457 + $0x188] sm:$0xff]
        %v5508 = vld [vmem:[%s5457 + $0x190] sm:$0xff]
        %v5509 = vld [vmem:[%s5457 + $0x198] sm:$0xff]
        %v5510 = vld [vmem:[%s5457 + $0x1a0] sm:$0xff]
        %v5511 = vld [vmem:[%s5457 + $0x1a8] sm:$0xff]
        %v5512 = vld [vmem:[%s5457 + $0x1b0] sm:$0xff]
        %v5513 = vld [vmem:[%s5457 + $0x1b8] sm:$0xff]
        %v5514 = vld [vmem:[%s5457 + $0x1c0] sm:$0xff]
        %v5515 = vld [vmem:[%s5457 + $0x1c8] sm:$0xff]
        %v5516 = vld [vmem:[%s5457 + $0x1d0] sm:$0xff]
        %v5517 = vld [vmem:[%s5457 + $0x1d8] sm:$0xff]
        %v5518 = vld [vmem:[%s5457 + $0x1e0] sm:$0xff]
        %v5519 = vld [vmem:[%s5457 + $0x1e8] sm:$0xff]
        %v5520 = vld [vmem:[%s5457 + $0x1f0] sm:$0xff]
        %v5521 = vld [vmem:[%s5457 + $0x1f8] sm:$0xff]
        %v5522 = vld [vmem:[%s5457 + $0x200] sm:$0xff]
        %v5523 = vld [vmem:[%s5457 + $0x208] sm:$0xff]
        %v5524 = vld [vmem:[%s5457 + $0x210] sm:$0xff]
        %v5525 = vld [vmem:[%s5457 + $0x218] sm:$0xff]
        %v5526 = vld [vmem:[%s5457 + $0x220] sm:$0xff]
        %v5527 = vld [vmem:[%s5457 + $0x228] sm:$0xff]
        %v5528 = vld [vmem:[%s5457 + $0x230] sm:$0xff]
        %v5529 = vld [vmem:[%s5457 + $0x238] sm:$0xff]
        %v5530 = vld [vmem:[%s5457 + $0x240] sm:$0xff]
        %v5531 = vld [vmem:[%s5457 + $0x248] sm:$0xff]
        %v5532 = vld [vmem:[%s5457 + $0x250] sm:$0xff]
        %v5533 = vld [vmem:[%s5457 + $0x258] sm:$0xff]
        %v5534 = vld [vmem:[%s5457 + $0x260] sm:$0xff]
        %v5535 = vld [vmem:[%s5457 + $0x268] sm:$0xff]
        %v5536 = vld [vmem:[%s5457 + $0x270] sm:$0xff]
        %v5537 = vld [vmem:[%s5457 + $0x278] sm:$0xff]
        %v5538 = vld [vmem:[%s5457 + $0x280] sm:$0xff]
        %v5539 = vld [vmem:[%s5457 + $0x288] sm:$0xff]
        %v5540 = vld [vmem:[%s5457 + $0x290] sm:$0xff]
        %v5541 = vld [vmem:[%s5457 + $0x298] sm:$0xff]
        %v5542 = vld [vmem:[%s5457 + $0x2a0] sm:$0xff]
        %v5543 = vld [vmem:[%s5457 + $0x2a8] sm:$0xff]
        %v5544 = vld [vmem:[%s5457 + $0x2b0] sm:$0xff]
        %v5545 = vld [vmem:[%s5457 + $0x2b8] sm:$0xff]
        %v5546 = vld [vmem:[%s5457 + $0x2c0] sm:$0xff]
        %v5547 = vld [vmem:[%s5457 + $0x2c8] sm:$0xff]
        %v5548 = vld [vmem:[%s5457 + $0x2d0] sm:$0xff]
        %v5549 = vld [vmem:[%s5457 + $0x2d8] sm:$0xff]
        %v5550 = vld [vmem:[%s5457 + $0x2e0] sm:$0xff]
        %v5551 = vld [vmem:[%s5457 + $0x2e8] sm:$0xff]
        %v5552 = vld [vmem:[%s5457 + $0x2f0] sm:$0xff]
        %v5553 = vld [vmem:[%s5457 + $0x2f8] sm:$0xff]
        %v5554 = vld [vmem:[%s5457 + $0x300] sm:$0xff]
        %v5555 = vld [vmem:[%s5457 + $0x308] sm:$0xff]
        %v5556 = vld [vmem:[%s5457 + $0x310] sm:$0xff]
        %v5557 = vld [vmem:[%s5457 + $0x318] sm:$0xff]
        %v5558 = vld [vmem:[%s5457 + $0x320] sm:$0xff]
        %v5559 = vld [vmem:[%s5457 + $0x328] sm:$0xff]
        %v5560 = vld [vmem:[%s5457 + $0x330] sm:$0xff]
        %v5561 = vld [vmem:[%s5457 + $0x338] sm:$0xff]
        %v5562 = vld [vmem:[%s5457 + $0x340] sm:$0xff]
        %v5563 = vld [vmem:[%s5457 + $0x348] sm:$0xff]
        %v5564 = vld [vmem:[%s5457 + $0x350] sm:$0xff]
        %v5565 = vld [vmem:[%s5457 + $0x358] sm:$0xff]
        %v5566 = vld [vmem:[%s5457 + $0x360] sm:$0xff]
        %v5567 = vld [vmem:[%s5457 + $0x368] sm:$0xff]
        %v5568 = vld [vmem:[%s5457 + $0x370] sm:$0xff]
        %v5569 = vld [vmem:[%s5457 + $0x378] sm:$0xff]
        %v5570 = vld [vmem:[%s5457 + $0x380] sm:$0xff]
        %v5571 = vld [vmem:[%s5457 + $0x388] sm:$0xff]
        %v5572 = vld [vmem:[%s5457 + $0x390] sm:$0xff]
        %v5573 = vld [vmem:[%s5457 + $0x398] sm:$0xff]
        %v5574 = vld [vmem:[%s5457 + $0x3a0] sm:$0xff]
        %v5575 = vld [vmem:[%s5457 + $0x3a8] sm:$0xff]
        %v5576 = vld [vmem:[%s5457 + $0x3b0] sm:$0xff]
        %v5577 = vld [vmem:[%s5457 + $0x3b8] sm:$0xff]
        %v5578 = vld [vmem:[%s5457 + $0x3c0] sm:$0xff]
        %v5579 = vld [vmem:[%s5457 + $0x3c8] sm:$0xff]
        %v5580 = vld [vmem:[%s5457 + $0x3d0] sm:$0xff]
        %v5581 = vld [vmem:[%s5457 + $0x3d8] sm:$0xff]
        %v5582 = vld [vmem:[%s5457 + $0x3e0] sm:$0xff]
        %v5583 = vld [vmem:[%s5457 + $0x3e8] sm:$0xff]
        %v5584 = vld [vmem:[%s5457 + $0x3f0] sm:$0xff]
        %v5585 = vld [vmem:[%s5457 + $0x3f8] sm:$0xff]
        %v5588 = vunpack.c.l.b16 %v5455
        %v5589 = vunpack.c.h.b16 %v5455
        %v5590 = vunpack.c.l.b16 %v5456
        %v5591 = vunpack.c.h.b16 %v5456
        %v5592 = vpack.c.b16 %v3759, %v5588
        %v5593 = vpack.c.b16 %v3760, %v5589
        %v5594 = vpack.c.b16 %v3761, %v5590
        %v5595 = vpack.c.b16 %v3762, %v5591
        %v5596 = vrot.slane %v5592, 1
        %v5597 = vrot.slane %v3771, 1
        %v5598 = vsel %vm2522, %v5596, %v5597
        %v5599 = vrot.slane %v5593, 1
        %v5600 = vrot.slane %v3772, 1
        %v5601 = vsel %vm2522, %v5599, %v5600
        %v5602 = vrot.slane %v5594, 1
        %v5603 = vrot.slane %v3773, 1
        %v5604 = vsel %vm2522, %v5602, %v5603
        %v5605 = vrot.slane %v5595, 1
        %v5606 = vrot.slane %v3774, 1
        %v5607 = vsel %vm2522, %v5605, %v5606
        %v5740 = vunpack.c.l.b16 %v5458
        %v5741 = vunpack.c.h.b16 %v5458
        %v5742 = vunpack.c.l.b16 %v5459
        %v5743 = vunpack.c.h.b16 %v5459
        %v5744 = vunpack.c.l.b16 %v5460
        %v5745 = vunpack.c.h.b16 %v5460
        %v5746 = vunpack.c.l.b16 %v5461
        %v5747 = vunpack.c.h.b16 %v5461
        %v5748 = vunpack.c.l.b16 %v5462
        %v5749 = vunpack.c.h.b16 %v5462
        %v5750 = vunpack.c.l.b16 %v5463
        %v5751 = vunpack.c.h.b16 %v5463
        %v5752 = vunpack.c.l.b16 %v5464
        %v5753 = vunpack.c.h.b16 %v5464
        %v5754 = vunpack.c.l.b16 %v5465
        %v5755 = vunpack.c.h.b16 %v5465
        %v5756 = vunpack.c.l.b16 %v5466
        %v5757 = vunpack.c.h.b16 %v5466
        %v5758 = vunpack.c.l.b16 %v5467
        %v5759 = vunpack.c.h.b16 %v5467
        %v5760 = vunpack.c.l.b16 %v5468
        %v5761 = vunpack.c.h.b16 %v5468
        %v5762 = vunpack.c.l.b16 %v5469
        %v5763 = vunpack.c.h.b16 %v5469
        %v5764 = vunpack.c.l.b16 %v5470
        %v5765 = vunpack.c.h.b16 %v5470
        %v5766 = vunpack.c.l.b16 %v5471
        %v5767 = vunpack.c.h.b16 %v5471
        %v5768 = vunpack.c.l.b16 %v5472
        %v5769 = vunpack.c.h.b16 %v5472
        %v5770 = vunpack.c.l.b16 %v5473
        %v5771 = vunpack.c.h.b16 %v5473
        %v5772 = vunpack.c.l.b16 %v5474
        %v5773 = vunpack.c.h.b16 %v5474
        %v5774 = vunpack.c.l.b16 %v5475
        %v5775 = vunpack.c.h.b16 %v5475
        %v5776 = vunpack.c.l.b16 %v5476
        %v5777 = vunpack.c.h.b16 %v5476
        %v5778 = vunpack.c.l.b16 %v5477
        %v5779 = vunpack.c.h.b16 %v5477
        %v5780 = vunpack.c.l.b16 %v5478
        %v5781 = vunpack.c.h.b16 %v5478
        %v5782 = vunpack.c.l.b16 %v5479
        %v5783 = vunpack.c.h.b16 %v5479
        %v5784 = vunpack.c.l.b16 %v5480
        %v5785 = vunpack.c.h.b16 %v5480
        %v5786 = vunpack.c.l.b16 %v5481
        %v5787 = vunpack.c.h.b16 %v5481
        %v5788 = vunpack.c.l.b16 %v5482
        %v5789 = vunpack.c.h.b16 %v5482
        %v5790 = vunpack.c.l.b16 %v5483
        %v5791 = vunpack.c.h.b16 %v5483
        %v5792 = vunpack.c.l.b16 %v5484
        %v5793 = vunpack.c.h.b16 %v5484
        %v5794 = vunpack.c.l.b16 %v5485
        %v5795 = vunpack.c.h.b16 %v5485
        %v5796 = vunpack.c.l.b16 %v5486
        %v5797 = vunpack.c.h.b16 %v5486
        %v5798 = vunpack.c.l.b16 %v5487
        %v5799 = vunpack.c.h.b16 %v5487
        %v5800 = vunpack.c.l.b16 %v5488
        %v5801 = vunpack.c.h.b16 %v5488
        %v5802 = vunpack.c.l.b16 %v5489
        %v5803 = vunpack.c.h.b16 %v5489
        %v5804 = vunpack.c.l.b16 %v5490
        %v5805 = vunpack.c.h.b16 %v5490
        %v5806 = vunpack.c.l.b16 %v5491
        %v5807 = vunpack.c.h.b16 %v5491
        %v5808 = vunpack.c.l.b16 %v5492
        %v5809 = vunpack.c.h.b16 %v5492
        %v5810 = vunpack.c.l.b16 %v5493
        %v5811 = vunpack.c.h.b16 %v5493
        %v5812 = vunpack.c.l.b16 %v5494
        %v5813 = vunpack.c.h.b16 %v5494
        %v5814 = vunpack.c.l.b16 %v5495
        %v5815 = vunpack.c.h.b16 %v5495
        %v5816 = vunpack.c.l.b16 %v5496
        %v5817 = vunpack.c.h.b16 %v5496
        %v5818 = vunpack.c.l.b16 %v5497
        %v5819 = vunpack.c.h.b16 %v5497
        %v5820 = vunpack.c.l.b16 %v5498
        %v5821 = vunpack.c.h.b16 %v5498
        %v5822 = vunpack.c.l.b16 %v5499
        %v5823 = vunpack.c.h.b16 %v5499
        %v5824 = vunpack.c.l.b16 %v5500
        %v5825 = vunpack.c.h.b16 %v5500
        %v5826 = vunpack.c.l.b16 %v5501
        %v5827 = vunpack.c.h.b16 %v5501
        %v5828 = vunpack.c.l.b16 %v5502
        %v5829 = vunpack.c.h.b16 %v5502
        %v5830 = vunpack.c.l.b16 %v5503
        %v5831 = vunpack.c.h.b16 %v5503
        %v5832 = vunpack.c.l.b16 %v5504
        %v5833 = vunpack.c.h.b16 %v5504
        %v5834 = vunpack.c.l.b16 %v5505
        %v5835 = vunpack.c.h.b16 %v5505
        %v5836 = vunpack.c.l.b16 %v5506
        %v5837 = vunpack.c.h.b16 %v5506
        %v5838 = vunpack.c.l.b16 %v5507
        %v5839 = vunpack.c.h.b16 %v5507
        %v5840 = vunpack.c.l.b16 %v5508
        %v5841 = vunpack.c.h.b16 %v5508
        %v5842 = vunpack.c.l.b16 %v5509
        %v5843 = vunpack.c.h.b16 %v5509
        %v5844 = vunpack.c.l.b16 %v5510
        %v5845 = vunpack.c.h.b16 %v5510
        %v5846 = vunpack.c.l.b16 %v5511
        %v5847 = vunpack.c.h.b16 %v5511
        %v5848 = vunpack.c.l.b16 %v5512
        %v5849 = vunpack.c.h.b16 %v5512
        %v5850 = vunpack.c.l.b16 %v5513
        %v5851 = vunpack.c.h.b16 %v5513
        %v5852 = vunpack.c.l.b16 %v5514
        %v5853 = vunpack.c.h.b16 %v5514
        %v5854 = vunpack.c.l.b16 %v5515
        %v5855 = vunpack.c.h.b16 %v5515
        %v5856 = vunpack.c.l.b16 %v5516
        %v5857 = vunpack.c.h.b16 %v5516
        %v5858 = vunpack.c.l.b16 %v5517
        %v5859 = vunpack.c.h.b16 %v5517
        %v5860 = vunpack.c.l.b16 %v5518
        %v5861 = vunpack.c.h.b16 %v5518
        %v5862 = vunpack.c.l.b16 %v5519
        %v5863 = vunpack.c.h.b16 %v5519
        %v5864 = vunpack.c.l.b16 %v5520
        %v5865 = vunpack.c.h.b16 %v5520
        %v5866 = vunpack.c.l.b16 %v5521
        %v5867 = vunpack.c.h.b16 %v5521
        %v5868 = vunpack.c.l.b16 %v5522
        %v5869 = vunpack.c.h.b16 %v5522
        %v5870 = vunpack.c.l.b16 %v5523
        %v5871 = vunpack.c.h.b16 %v5523
        %v5872 = vunpack.c.l.b16 %v5524
        %v5873 = vunpack.c.h.b16 %v5524
        %v5874 = vunpack.c.l.b16 %v5525
        %v5875 = vunpack.c.h.b16 %v5525
        %v5876 = vunpack.c.l.b16 %v5526
        %v5877 = vunpack.c.h.b16 %v5526
        %v5878 = vunpack.c.l.b16 %v5527
        %v5879 = vunpack.c.h.b16 %v5527
        %v5880 = vunpack.c.l.b16 %v5528
        %v5881 = vunpack.c.h.b16 %v5528
        %v5882 = vunpack.c.l.b16 %v5529
        %v5883 = vunpack.c.h.b16 %v5529
        %v5884 = vunpack.c.l.b16 %v5530
        %v5885 = vunpack.c.h.b16 %v5530
        %v5886 = vunpack.c.l.b16 %v5531
        %v5887 = vunpack.c.h.b16 %v5531
        %v5888 = vunpack.c.l.b16 %v5532
        %v5889 = vunpack.c.h.b16 %v5532
        %v5890 = vunpack.c.l.b16 %v5533
        %v5891 = vunpack.c.h.b16 %v5533
        %v5892 = vunpack.c.l.b16 %v5534
        %v5893 = vunpack.c.h.b16 %v5534
        %v5894 = vunpack.c.l.b16 %v5535
        %v5895 = vunpack.c.h.b16 %v5535
        %v5896 = vunpack.c.l.b16 %v5536
        %v5897 = vunpack.c.h.b16 %v5536
        %v5898 = vunpack.c.l.b16 %v5537
        %v5899 = vunpack.c.h.b16 %v5537
        %v5900 = vunpack.c.l.b16 %v5538
        %v5901 = vunpack.c.h.b16 %v5538
        %v5902 = vunpack.c.l.b16 %v5539
        %v5903 = vunpack.c.h.b16 %v5539
        %v5904 = vunpack.c.l.b16 %v5540
        %v5905 = vunpack.c.h.b16 %v5540
        %v5906 = vunpack.c.l.b16 %v5541
        %v5907 = vunpack.c.h.b16 %v5541
        %v5908 = vunpack.c.l.b16 %v5542
        %v5909 = vunpack.c.h.b16 %v5542
        %v5910 = vunpack.c.l.b16 %v5543
        %v5911 = vunpack.c.h.b16 %v5543
        %v5912 = vunpack.c.l.b16 %v5544
        %v5913 = vunpack.c.h.b16 %v5544
        %v5914 = vunpack.c.l.b16 %v5545
        %v5915 = vunpack.c.h.b16 %v5545
        %v5916 = vunpack.c.l.b16 %v5546
        %v5917 = vunpack.c.h.b16 %v5546
        %v5918 = vunpack.c.l.b16 %v5547
        %v5919 = vunpack.c.h.b16 %v5547
        %v5920 = vunpack.c.l.b16 %v5548
        %v5921 = vunpack.c.h.b16 %v5548
        %v5922 = vunpack.c.l.b16 %v5549
        %v5923 = vunpack.c.h.b16 %v5549
        %v5924 = vunpack.c.l.b16 %v5550
        %v5925 = vunpack.c.h.b16 %v5550
        %v5926 = vunpack.c.l.b16 %v5551
        %v5927 = vunpack.c.h.b16 %v5551
        %v5928 = vunpack.c.l.b16 %v5552
        %v5929 = vunpack.c.h.b16 %v5552
        %v5930 = vunpack.c.l.b16 %v5553
        %v5931 = vunpack.c.h.b16 %v5553
        %v5932 = vunpack.c.l.b16 %v5554
        %v5933 = vunpack.c.h.b16 %v5554
        %v5934 = vunpack.c.l.b16 %v5555
        %v5935 = vunpack.c.h.b16 %v5555
        %v5936 = vunpack.c.l.b16 %v5556
        %v5937 = vunpack.c.h.b16 %v5556
        %v5938 = vunpack.c.l.b16 %v5557
        %v5939 = vunpack.c.h.b16 %v5557
        %v5940 = vunpack.c.l.b16 %v5558
        %v5941 = vunpack.c.h.b16 %v5558
        %v5942 = vunpack.c.l.b16 %v5559
        %v5943 = vunpack.c.h.b16 %v5559
        %v5944 = vunpack.c.l.b16 %v5560
        %v5945 = vunpack.c.h.b16 %v5560
        %v5946 = vunpack.c.l.b16 %v5561
        %v5947 = vunpack.c.h.b16 %v5561
        %v5948 = vunpack.c.l.b16 %v5562
        %v5949 = vunpack.c.h.b16 %v5562
        %v5950 = vunpack.c.l.b16 %v5563
        %v5951 = vunpack.c.h.b16 %v5563
        %v5952 = vunpack.c.l.b16 %v5564
        %v5953 = vunpack.c.h.b16 %v5564
        %v5954 = vunpack.c.l.b16 %v5565
        %v5955 = vunpack.c.h.b16 %v5565
        %v5956 = vunpack.c.l.b16 %v5566
        %v5957 = vunpack.c.h.b16 %v5566
        %v5958 = vunpack.c.l.b16 %v5567
        %v5959 = vunpack.c.h.b16 %v5567
        %v5960 = vunpack.c.l.b16 %v5568
        %v5961 = vunpack.c.h.b16 %v5568
        %v5962 = vunpack.c.l.b16 %v5569
        %v5963 = vunpack.c.h.b16 %v5569
        %v5964 = vunpack.c.l.b16 %v5570
        %v5965 = vunpack.c.h.b16 %v5570
        %v5966 = vunpack.c.l.b16 %v5571
        %v5967 = vunpack.c.h.b16 %v5571
        %v5968 = vunpack.c.l.b16 %v5572
        %v5969 = vunpack.c.h.b16 %v5572
        %v5970 = vunpack.c.l.b16 %v5573
        %v5971 = vunpack.c.h.b16 %v5573
        %v5972 = vunpack.c.l.b16 %v5574
        %v5973 = vunpack.c.h.b16 %v5574
        %v5974 = vunpack.c.l.b16 %v5575
        %v5975 = vunpack.c.h.b16 %v5575
        %v5976 = vunpack.c.l.b16 %v5576
        %v5977 = vunpack.c.h.b16 %v5576
        %v5978 = vunpack.c.l.b16 %v5577
        %v5979 = vunpack.c.h.b16 %v5577
        %v5980 = vunpack.c.l.b16 %v5578
        %v5981 = vunpack.c.h.b16 %v5578
        %v5982 = vunpack.c.l.b16 %v5579
        %v5983 = vunpack.c.h.b16 %v5579
        %v5984 = vunpack.c.l.b16 %v5580
        %v5985 = vunpack.c.h.b16 %v5580
        %v5986 = vunpack.c.l.b16 %v5581
        %v5987 = vunpack.c.h.b16 %v5581
        %v5988 = vunpack.c.l.b16 %v5582
        %v5989 = vunpack.c.h.b16 %v5582
        %v5990 = vunpack.c.l.b16 %v5583
        %v5991 = vunpack.c.h.b16 %v5583
        %v5992 = vunpack.c.l.b16 %v5584
        %v5993 = vunpack.c.h.b16 %v5584
        %v5994 = vunpack.c.l.b16 %v5585
        %v5995 = vunpack.c.h.b16 %v5585
        %v5996 = vpack.c.b16 %v5744, %v5740
        %v5997 = vpack.c.b16 %v5745, %v5741
        %v5998 = vpack.c.b16 %v5746, %v5742
        %v5999 = vpack.c.b16 %v5747, %v5743
        %v6000 = vpack.c.b16 %v5752, %v5748
        %v6001 = vpack.c.b16 %v5753, %v5749
        %v6002 = vpack.c.b16 %v5754, %v5750
        %v6003 = vpack.c.b16 %v5755, %v5751
        %v6004 = vpack.c.b16 %v5760, %v5756
        %v6005 = vpack.c.b16 %v5761, %v5757
        %v6006 = vpack.c.b16 %v5762, %v5758
        %v6007 = vpack.c.b16 %v5763, %v5759
        %v6008 = vpack.c.b16 %v5768, %v5764
        %v6009 = vpack.c.b16 %v5769, %v5765
        %v6010 = vpack.c.b16 %v5770, %v5766
        %v6011 = vpack.c.b16 %v5771, %v5767
        %v6012 = vpack.c.b16 %v5776, %v5772
        %v6013 = vpack.c.b16 %v5777, %v5773
        %v6014 = vpack.c.b16 %v5778, %v5774
        %v6015 = vpack.c.b16 %v5779, %v5775
        %v6016 = vpack.c.b16 %v5784, %v5780
        %v6017 = vpack.c.b16 %v5785, %v5781
        %v6018 = vpack.c.b16 %v5786, %v5782
        %v6019 = vpack.c.b16 %v5787, %v5783
        %v6020 = vpack.c.b16 %v5792, %v5788
        %v6021 = vpack.c.b16 %v5793, %v5789
        %v6022 = vpack.c.b16 %v5794, %v5790
        %v6023 = vpack.c.b16 %v5795, %v5791
        %v6024 = vpack.c.b16 %v5800, %v5796
        %v6025 = vpack.c.b16 %v5801, %v5797
        %v6026 = vpack.c.b16 %v5802, %v5798
        %v6027 = vpack.c.b16 %v5803, %v5799
        %v6028 = vpack.c.b16 %v5808, %v5804
        %v6029 = vpack.c.b16 %v5809, %v5805
        %v6030 = vpack.c.b16 %v5810, %v5806
        %v6031 = vpack.c.b16 %v5811, %v5807
        %v6032 = vpack.c.b16 %v5816, %v5812
        %v6033 = vpack.c.b16 %v5817, %v5813
        %v6034 = vpack.c.b16 %v5818, %v5814
        %v6035 = vpack.c.b16 %v5819, %v5815
        %v6036 = vpack.c.b16 %v5824, %v5820
        %v6037 = vpack.c.b16 %v5825, %v5821
        %v6038 = vpack.c.b16 %v5826, %v5822
        %v6039 = vpack.c.b16 %v5827, %v5823
        %v6040 = vpack.c.b16 %v5832, %v5828
        %v6041 = vpack.c.b16 %v5833, %v5829
        %v6042 = vpack.c.b16 %v5834, %v5830
        %v6043 = vpack.c.b16 %v5835, %v5831
        %v6044 = vpack.c.b16 %v5840, %v5836
        %v6045 = vpack.c.b16 %v5841, %v5837
        %v6046 = vpack.c.b16 %v5842, %v5838
        %v6047 = vpack.c.b16 %v5843, %v5839
        %v6048 = vpack.c.b16 %v5848, %v5844
        %v6049 = vpack.c.b16 %v5849, %v5845
        %v6050 = vpack.c.b16 %v5850, %v5846
        %v6051 = vpack.c.b16 %v5851, %v5847
        %v6052 = vpack.c.b16 %v5856, %v5852
        %v6053 = vpack.c.b16 %v5857, %v5853
        %v6054 = vpack.c.b16 %v5858, %v5854
        %v6055 = vpack.c.b16 %v5859, %v5855
        %v6056 = vpack.c.b16 %v5864, %v5860
        %v6057 = vpack.c.b16 %v5865, %v5861
        %v6058 = vpack.c.b16 %v5866, %v5862
        %v6059 = vpack.c.b16 %v5867, %v5863
        %v6060 = vpack.c.b16 %v5872, %v5868
        %v6061 = vpack.c.b16 %v5873, %v5869
        %v6062 = vpack.c.b16 %v5874, %v5870
        %v6063 = vpack.c.b16 %v5875, %v5871
        %v6064 = vpack.c.b16 %v5880, %v5876
        %v6065 = vpack.c.b16 %v5881, %v5877
        %v6066 = vpack.c.b16 %v5882, %v5878
        %v6067 = vpack.c.b16 %v5883, %v5879
        %v6068 = vpack.c.b16 %v5888, %v5884
        %v6069 = vpack.c.b16 %v5889, %v5885
        %v6070 = vpack.c.b16 %v5890, %v5886
        %v6071 = vpack.c.b16 %v5891, %v5887
        %v6072 = vpack.c.b16 %v5896, %v5892
        %v6073 = vpack.c.b16 %v5897, %v5893
        %v6074 = vpack.c.b16 %v5898, %v5894
        %v6075 = vpack.c.b16 %v5899, %v5895
        %v6076 = vpack.c.b16 %v5904, %v5900
        %v6077 = vpack.c.b16 %v5905, %v5901
        %v6078 = vpack.c.b16 %v5906, %v5902
        %v6079 = vpack.c.b16 %v5907, %v5903
        %v6080 = vpack.c.b16 %v5912, %v5908
        %v6081 = vpack.c.b16 %v5913, %v5909
        %v6082 = vpack.c.b16 %v5914, %v5910
        %v6083 = vpack.c.b16 %v5915, %v5911
        %v6084 = vpack.c.b16 %v5920, %v5916
        %v6085 = vpack.c.b16 %v5921, %v5917
        %v6086 = vpack.c.b16 %v5922, %v5918
        %v6087 = vpack.c.b16 %v5923, %v5919
        %v6088 = vpack.c.b16 %v5928, %v5924
        %v6089 = vpack.c.b16 %v5929, %v5925
        %v6090 = vpack.c.b16 %v5930, %v5926
        %v6091 = vpack.c.b16 %v5931, %v5927
        %v6092 = vpack.c.b16 %v5936, %v5932
        %v6093 = vpack.c.b16 %v5937, %v5933
        %v6094 = vpack.c.b16 %v5938, %v5934
        %v6095 = vpack.c.b16 %v5939, %v5935
        %v6096 = vpack.c.b16 %v5944, %v5940
        %v6097 = vpack.c.b16 %v5945, %v5941
        %v6098 = vpack.c.b16 %v5946, %v5942
        %v6099 = vpack.c.b16 %v5947, %v5943
        %v6100 = vpack.c.b16 %v5952, %v5948
        %v6101 = vpack.c.b16 %v5953, %v5949
        %v6102 = vpack.c.b16 %v5954, %v5950
        %v6103 = vpack.c.b16 %v5955, %v5951
        %v6104 = vpack.c.b16 %v5960, %v5956
        %v6105 = vpack.c.b16 %v5961, %v5957
        %v6106 = vpack.c.b16 %v5962, %v5958
        %v6107 = vpack.c.b16 %v5963, %v5959
        %v6108 = vpack.c.b16 %v5968, %v5964
        %v6109 = vpack.c.b16 %v5969, %v5965
        %v6110 = vpack.c.b16 %v5970, %v5966
        %v6111 = vpack.c.b16 %v5971, %v5967
        %v6112 = vpack.c.b16 %v5976, %v5972
        %v6113 = vpack.c.b16 %v5977, %v5973
        %v6114 = vpack.c.b16 %v5978, %v5974
        %v6115 = vpack.c.b16 %v5979, %v5975
        %v6116 = vpack.c.b16 %v5984, %v5980
        %v6117 = vpack.c.b16 %v5985, %v5981
        %v6118 = vpack.c.b16 %v5986, %v5982
        %v6119 = vpack.c.b16 %v5987, %v5983
        %v6120 = vpack.c.b16 %v5992, %v5988
        %v6121 = vpack.c.b16 %v5993, %v5989
        %v6122 = vpack.c.b16 %v5994, %v5990
        %v6123 = vpack.c.b16 %v5995, %v5991
        %6252 = vmatprep.subr.bf16.mxu0 %v5997
        %6253 = vmatpush1.bf16.msra.mxu0 %v5996
        %6254 = vmatprep.subr.bf16.mxu0 %v6001
        %6255 = vmatpush1.bf16.msra.mxu0 %v6000
        %6256 = vmatprep.subr.bf16.mxu0 %v6005
        %6257 = vmatpush1.bf16.msra.mxu0 %v6004
        %6258 = vmatprep.subr.bf16.mxu0 %v6009
        %6259 = vmatpush1.bf16.msra.mxu0 %v6008
        %6260 = vmatprep.subr.bf16.mxu0 %v6013
        %6261 = vmatpush1.bf16.msra.mxu0 %v6012
        %6262 = vmatprep.subr.bf16.mxu0 %v6017
        %6263 = vmatpush1.bf16.msra.mxu0 %v6016
        %6264 = vmatprep.subr.bf16.mxu0 %v6021
        %6265 = vmatpush1.bf16.msra.mxu0 %v6020
        %6266 = vmatprep.subr.bf16.mxu0 %v6025
        %6267 = vmatpush1.bf16.msra.mxu0 %v6024
        %6268 = vmatprep.subr.bf16.mxu0 %v6029
        %6269 = vmatpush1.bf16.msra.mxu0 %v6028
        %6270 = vmatprep.subr.bf16.mxu0 %v6033
        %6271 = vmatpush1.bf16.msra.mxu0 %v6032
        %6272 = vmatprep.subr.bf16.mxu0 %v6037
        %6273 = vmatpush1.bf16.msra.mxu0 %v6036
        %6274 = vmatprep.subr.bf16.mxu0 %v6041
        %6275 = vmatpush1.bf16.msra.mxu0 %v6040
        %6276 = vmatprep.subr.bf16.mxu0 %v6045
        %6277 = vmatpush1.bf16.msra.mxu0 %v6044
        %6278 = vmatprep.subr.bf16.mxu0 %v6049
        %6279 = vmatpush1.bf16.msra.mxu0 %v6048
        %6280 = vmatprep.subr.bf16.mxu0 %v6053
        %6281 = vmatpush1.bf16.msra.mxu0 %v6052
        %6282 = vmatprep.subr.bf16.mxu0 %v6057
        %6283 = vmatpush1.bf16.msra.mxu0 %v6056
        %6284 = vmatprep.mubr.bf16.mxu0 %v5601
        %6285 = vmatmul.mubr.bf16.gmra.mrb[0].mxu0 %v5598
        %v6286 = vpop.f32.mrb[0].mxu0
        %v6287 = vadd.f32 0.0, %v6286
        %v6288 = vpop.f32.mrb[0].mxu0
        %v6289 = vadd.f32 0.0, %v6288
        %v6290 = vpop.f32.mrb[0].mxu0
        %v6291 = vadd.f32 0.0, %v6290
        %v6292 = vpop.f32.mrb[0].mxu0
        %v6293 = vadd.f32 0.0, %v6292
        %6294 = vdwg.mxu0
        %6295 = vmatprep.subr.bf16.mxu0 %v6061
        %6296 = vmatpush1.bf16.msra.mxu0 %v6060
        %6297 = vmatprep.subr.bf16.mxu0 %v6065
        %6298 = vmatpush1.bf16.msra.mxu0 %v6064
        %6299 = vmatprep.subr.bf16.mxu0 %v6069
        %6300 = vmatpush1.bf16.msra.mxu0 %v6068
        %6301 = vmatprep.subr.bf16.mxu0 %v6073
        %6302 = vmatpush1.bf16.msra.mxu0 %v6072
        %6303 = vmatprep.subr.bf16.mxu0 %v6077
        %6304 = vmatpush1.bf16.msra.mxu0 %v6076
        %6305 = vmatprep.subr.bf16.mxu0 %v6081
        %6306 = vmatpush1.bf16.msra.mxu0 %v6080
        %6307 = vmatprep.subr.bf16.mxu0 %v6085
        %6308 = vmatpush1.bf16.msra.mxu0 %v6084
        %6309 = vmatprep.subr.bf16.mxu0 %v6089
        %6310 = vmatpush1.bf16.msra.mxu0 %v6088
        %6311 = vmatprep.subr.bf16.mxu0 %v6093
        %6312 = vmatpush1.bf16.msra.mxu0 %v6092
        %6313 = vmatprep.subr.bf16.mxu0 %v6097
        %6314 = vmatpush1.bf16.msra.mxu0 %v6096
        %6315 = vmatprep.subr.bf16.mxu0 %v6101
        %6316 = vmatpush1.bf16.msra.mxu0 %v6100
        %6317 = vmatprep.subr.bf16.mxu0 %v6105
        %6318 = vmatpush1.bf16.msra.mxu0 %v6104
        %6319 = vmatprep.subr.bf16.mxu0 %v6109
        %6320 = vmatpush1.bf16.msra.mxu0 %v6108
        %6321 = vmatprep.subr.bf16.mxu0 %v6113
        %6322 = vmatpush1.bf16.msra.mxu0 %v6112
        %6323 = vmatprep.subr.bf16.mxu0 %v6117
        %6324 = vmatpush1.bf16.msra.mxu0 %v6116
        %6325 = vmatprep.subr.bf16.mxu0 %v6121
        %6326 = vmatpush1.bf16.msra.mxu0 %v6120
        %6327 = vmatprep.mubr.bf16.mxu0 %v5607
        %6328 = vmatmul.mubr.bf16.gmra.mrb[0].mxu0 %v5604
        %v6329 = vpop.f32.mrb[0].mxu0
        %v6330 = vadd.f32 %v6287, %v6329
        %v6331 = vpop.f32.mrb[0].mxu0
        %v6332 = vadd.f32 %v6289, %v6331
        %v6333 = vpop.f32.mrb[0].mxu0
        %v6334 = vadd.f32 %v6291, %v6333
        %v6335 = vpop.f32.mrb[0].mxu0
        %v6336 = vadd.f32 %v6293, %v6335
        %6337 = vdwg.mxu0
        %6338 = vmatprep.subr.bf16.mxu0 %v5999
        %6339 = vmatpush1.bf16.msra.mxu0 %v5998
        %6340 = vmatprep.subr.bf16.mxu0 %v6003
        %6341 = vmatpush1.bf16.msra.mxu0 %v6002
        %6342 = vmatprep.subr.bf16.mxu0 %v6007
        %6343 = vmatpush1.bf16.msra.mxu0 %v6006
        %6344 = vmatprep.subr.bf16.mxu0 %v6011
        %6345 = vmatpush1.bf16.msra.mxu0 %v6010
        %6346 = vmatprep.subr.bf16.mxu0 %v6015
        %6347 = vmatpush1.bf16.msra.mxu0 %v6014
        %6348 = vmatprep.subr.bf16.mxu0 %v6019
        %6349 = vmatpush1.bf16.msra.mxu0 %v6018
        %6350 = vmatprep.subr.bf16.mxu0 %v6023
        %6351 = vmatpush1.bf16.msra.mxu0 %v6022
        %6352 = vmatprep.subr.bf16.mxu0 %v6027
        %6353 = vmatpush1.bf16.msra.mxu0 %v6026
        %6354 = vmatprep.subr.bf16.mxu0 %v6031
        %6355 = vmatpush1.bf16.msra.mxu0 %v6030
        %6356 = vmatprep.subr.bf16.mxu0 %v6035
        %6357 = vmatpush1.bf16.msra.mxu0 %v6034
        %6358 = vmatprep.subr.bf16.mxu0 %v6039
        %6359 = vmatpush1.bf16.msra.mxu0 %v6038
        %6360 = vmatprep.subr.bf16.mxu0 %v6043
        %6361 = vmatpush1.bf16.msra.mxu0 %v6042
        %6362 = vmatprep.subr.bf16.mxu0 %v6047
        %6363 = vmatpush1.bf16.msra.mxu0 %v6046
        %6364 = vmatprep.subr.bf16.mxu0 %v6051
        %6365 = vmatpush1.bf16.msra.mxu0 %v6050
        %6366 = vmatprep.subr.bf16.mxu0 %v6055
        %6367 = vmatpush1.bf16.msra.mxu0 %v6054
        %6368 = vmatprep.subr.bf16.mxu0 %v6059
        %6369 = vmatpush1.bf16.msra.mxu0 %v6058
        %6370 = vmatprep.mubr.bf16.mxu0 %v5601
        %6371 = vmatmul.mubr.bf16.gmra.mrb[0].mxu0 %v5598
        %v6372 = vpop.f32.mrb[0].mxu0
        %v6373 = vadd.f32 0.0, %v6372
        %v6374 = vpop.f32.mrb[0].mxu0
        %v6375 = vadd.f32 0.0, %v6374
        %v6376 = vpop.f32.mrb[0].mxu0
        %v6377 = vadd.f32 0.0, %v6376
        %v6378 = vpop.f32.mrb[0].mxu0
        %v6379 = vadd.f32 0.0, %v6378
        %6380 = vdwg.mxu0
        %6381 = vmatprep.subr.bf16.mxu0 %v6063
        %6382 = vmatpush1.bf16.msra.mxu0 %v6062
        %6383 = vmatprep.subr.bf16.mxu0 %v6067
        %6384 = vmatpush1.bf16.msra.mxu0 %v6066
        %6385 = vmatprep.subr.bf16.mxu0 %v6071
        %6386 = vmatpush1.bf16.msra.mxu0 %v6070
        %6387 = vmatprep.subr.bf16.mxu0 %v6075
        %6388 = vmatpush1.bf16.msra.mxu0 %v6074
        %6389 = vmatprep.subr.bf16.mxu0 %v6079
        %6390 = vmatpush1.bf16.msra.mxu0 %v6078
        %6391 = vmatprep.subr.bf16.mxu0 %v6083
        %6392 = vmatpush1.bf16.msra.mxu0 %v6082
        %6393 = vmatprep.subr.bf16.mxu0 %v6087
        %6394 = vmatpush1.bf16.msra.mxu0 %v6086
        %6395 = vmatprep.subr.bf16.mxu0 %v6091
        %6396 = vmatpush1.bf16.msra.mxu0 %v6090
        %6397 = vmatprep.subr.bf16.mxu0 %v6095
        %6398 = vmatpush1.bf16.msra.mxu0 %v6094
        %6399 = vmatprep.subr.bf16.mxu0 %v6099
        %6400 = vmatpush1.bf16.msra.mxu0 %v6098
        %6401 = vmatprep.subr.bf16.mxu0 %v6103
        %6402 = vmatpush1.bf16.msra.mxu0 %v6102
        %6403 = vmatprep.subr.bf16.mxu0 %v6107
        %6404 = vmatpush1.bf16.msra.mxu0 %v6106
        %6405 = vmatprep.subr.bf16.mxu0 %v6111
        %6406 = vmatpush1.bf16.msra.mxu0 %v6110
        %6407 = vmatprep.subr.bf16.mxu0 %v6115
        %6408 = vmatpush1.bf16.msra.mxu0 %v6114
        %6409 = vmatprep.subr.bf16.mxu0 %v6119
        %6410 = vmatpush1.bf16.msra.mxu0 %v6118
        %6411 = vmatprep.subr.bf16.mxu0 %v6123
        %6412 = vmatpush1.bf16.msra.mxu0 %v6122
        %6413 = vmatprep.mubr.bf16.mxu0 %v5607
        %6414 = vmatmul.mubr.bf16.gmra.mrb[0].mxu0 %v5604
        %v6415 = vpop.f32.mrb[0].mxu0
        %v6416 = vadd.f32 %v6373, %v6415
        %v6417 = vpop.f32.mrb[0].mxu0
        %v6418 = vadd.f32 %v6375, %v6417
        %v6419 = vpop.f32.mrb[0].mxu0
        %v6420 = vadd.f32 %v6377, %v6419
        %v6421 = vpop.f32.mrb[0].mxu0
        %v6422 = vadd.f32 %v6379, %v6421
        %6423 = vdwg.mxu0
        %v6424 = vadd.f32 %v5361, %v6330
        %v6425 = vadd.f32 %v5363, %v6332
        %v6426 = vadd.f32 %v5447, %v6416
        %v6427 = vadd.f32 %v5449, %v6418
        %v6428 = vadd.f32 %v5365, %v6334
        %v6429 = vadd.f32 %v5367, %v6336
        %v6430 = vadd.f32 %v5451, %v6420
        %v6431 = vadd.f32 %v5453, %v6422
        %v6432 = vld [vmem:[#allocation11] sm:$0xf]
        %v6434 = vlaneseq
        %v6435 = vshrl.u32 %v6434, 7
        %v6436 = vsub.s32 0, %v6435
        %v6437 = vrot.slane %v6432, %v6436
        %v6438 = vlaneseq
        %v6439 = vshrl.u32 %v6438, 7
        %v6440 = vsub.s32 1, %v6439
        %v6441 = vrot.slane %v6432, %v6440
        %v6442 = vlaneseq
        %v6443 = vshrl.u32 %v6442, 7
        %v6444 = vsub.s32 2, %v6443
        %v6445 = vrot.slane %v6432, %v6444
        %v6446 = vlaneseq
        %v6447 = vshrl.u32 %v6446, 7
        %v6448 = vsub.s32 3, %v6447
        %v6449 = vrot.slane %v6432, %v6448
        %v6454 = vadd.f32 %v6424, %v6437
        %v6455 = vadd.f32 %v6425, %v6441
        %v6456 = vadd.f32 %v6426, %v6445
        %v6457 = vadd.f32 %v6427, %v6449
        %v6458 = vadd.f32 %v6428, %v6437
        %v6459 = vadd.f32 %v6429, %v6441
        %v6460 = vadd.f32 %v6430, %v6445
        %v6461 = vadd.f32 %v6431, %v6449
        %v6462 = vadd.f32 %v6454, %v322
        %v6463 = vadd.f32 %v6455, %v323
        %v6464 = vadd.f32 %v6456, %v324
        %v6465 = vadd.f32 %v6457, %v325
        %v6466 = vadd.f32 %v6458, %v326
        %v6467 = vadd.f32 %v6459, %v327
        %v6468 = vadd.f32 %v6460, %v328
        %v6469 = vadd.f32 %v6461, %v329
        %6470 = vst [vmem:[%s296] sm:$0xff] %v6462
        %6471 = vst [vmem:[%s296 + $0x8] sm:$0xff] %v6463
        %6472 = vst [vmem:[%s296 + $0x10] sm:$0xff] %v6464
        %6473 = vst [vmem:[%s296 + $0x18] sm:$0xff] %v6465
        %6474 = vst [vmem:[%s296 + $0x20] sm:$0xff] %v6466
        %6475 = vst [vmem:[%s296 + $0x28] sm:$0xff] %v6467
        %6476 = vst [vmem:[%s296 + $0x30] sm:$0xff] %v6468
        %6477 = vst [vmem:[%s296 + $0x38] sm:$0xff] %v6469
        %s6478 = sand.u32 %s142, 1
        %s6479 = scalar_lea.sflag [#allocation5], %s6478
        %s6480 = sand.u32 %s142, 1
        %s6481 = smul.addr %s6480, 64
        %s6482 = scalar_lea.vmem [#allocation12], %s6481
        // Predicated region
        $region61: #{tpu_custom_call.1} parent=39 // pred_check
          %p6483 = pneg %p152
        $region62: #{tpu_custom_call.1} parent=39 // pred_check_branch
          %6485 = sbr.rel (%p6483) target = $region64
        $region63: #{tpu_custom_call.1} parent=39 // pred_region
          %s6487 = ssub.s32 1024, 1024
          %6488 = vsyncadd %s6479, %s6487
          %s6489 = smul.addr %s24, 8
          %s6490 = smul.addr %s6489, 128
          %s6491 = scalar_lea.hbm %s5, %s6490
          %s6492 = sshll.u32 %s6482, 4
          %s6493 = int_to_ptr.vmem [resolvable:$true] %s6492
          %6498 = dma.vmem_to_hbm [thread:$0]  %s6493, 1024, %s6491, %s6479, 512, 512, 32
        $region64: #{tpu_custom_call.1} parent=39 // pred_fallthru
          _
      $region40: #{tpu_custom_call.1} parent=5 // pred_fallthru
        _
      %p6499 = scmp.le.s32.totalorder 2, %s19
      // Predicated region
      $region65: #{tpu_custom_call.1} parent=5 // pred_check
        %p6500 = pneg %p6499
      $region66: #{tpu_custom_call.1} parent=5 // pred_check_branch
        %6502 = sbr.rel (%p6500) target = $region68
      $region67: #{tpu_custom_call.1} parent=5 // pred_region
        %s6503 = ssub.s32 %s19, 2
        // Predicated region
        $region69: #{tpu_custom_call.1} parent=67 // pred_check
          %p6504 = pneg %p158
        $region70: #{tpu_custom_call.1} parent=67 // pred_check_branch
          %6506 = sbr.rel (%p6504) target = $region72
        $region71: #{tpu_custom_call.1} parent=67 // pred_region
          %s6507 = sand.u32 %s143, 1
          %s6508 = scalar_lea.sflag [#allocation5], %s6507
          %s6509 = sand.u32 %s143, 1
          %s6510 = smul.addr %s6509, 64
          %s6511 = scalar_lea.vmem [#allocation12], %s6510
          %6512 = dma.done %s6508, 1024
        $region72: #{tpu_custom_call.1} parent=67 // pred_fallthru
          _
      $region68: #{tpu_custom_call.1} parent=5 // pred_fallthru
        _
    $region6: #{tpu_custom_call.1} parent=1 // loop_footer
      %s23 = sadd.s32 1, %s19
    $region7: #{tpu_custom_call.1} parent=1 // loop_footer_branch
      %18 = sbr.rel target = $region3
    $region8: #{tpu_custom_call.1} parent=1 // loop_exit
      _
    %6513 = vsyncpa [#allocation4], 1
    %s6514 = scalar_lea.sflag [#allocation4], 1
    %6515 = vsyncpa %s6514, 1
    %6516 = vsyncpa [#allocation7], 1
    %6517 = vsyncpa [#allocation10], 1
    %6518 = vsyncpa [#allocation5], 1
    %s6519 = scalar_lea.sflag [#allocation5], 1
    %6520 = vsyncpa %s6519, 1

</llo_original>
